<compile_context>
chip_gen: v6e
topology: v6e:2x2x1
jax: 0.10.0
libtpu: 0.0.40
codegen_flags: <defaults>
</compile_context>

<pallas_src>
import functools

import jax
import jax.numpy as jnp
from jax.experimental import pallas as pl
from jax.experimental.pallas import tpu as pltpu

LANES = 128


def _round_up(x, m):
    return (x + m - 1) // m * m


def _next_word_kernel(ids_ref, sel_ref, m_ref, b1_ref, w2_ref, b2_ref,
                      w3_ref, b3_ref, w4_ref, b4_ref, wo_ref, bo_ref,
                      o_ref, *, vocab):
    """One batch tile: fused embedding gather + 5-layer MLP, fully VMEM-resident.

    lin1 is computed as  multihot @ M  where
      multihot[b, t*vocab + v] = (ids[b, t] == v)
      M[t*vocab + v, :]        = emb[v, :] @ W1[t*E:(t+1)*E, :]   (precomputed)
    which equals flatten(emb[ids[b]]) @ W1 exactly.  (Out-of-range ids produce a
    zero row instead of raising like nn.Embedding.)
    """
    tile_b = ids_ref.shape[0]
    bv = sel_ref.shape[1]                                   # block*vocab (lane-padded)

    # ids_expand[b, j] = ids[b, j // vocab] via a tiny selection matmul (exact:
    # ids are small integers, sel is 0/1).
    ids_f = ids_ref[...].astype(jnp.float32)                              # (tile_b, block)
    ids_expand = jnp.dot(ids_f, sel_ref[...],
                         preferred_element_type=jnp.float32)              # (tile_b, bv)
    v_of_j = (jax.lax.broadcasted_iota(jnp.int32, (tile_b, bv), 1) % vocab
              ).astype(jnp.float32)
    multihot = jnp.where(ids_expand == v_of_j, 1.0, 0.0).astype(m_ref.dtype)

    relu = lambda v: jnp.maximum(v, 0.0)                    # activation_fn == ReLU
    h = relu(jnp.dot(multihot, m_ref[...],
                     preferred_element_type=jnp.float32) + b1_ref[...])
    h = relu(jnp.dot(h.astype(w2_ref.dtype), w2_ref[...],
                     preferred_element_type=jnp.float32) + b2_ref[...])
    h = relu(jnp.dot(h.astype(w3_ref.dtype), w3_ref[...],
                     preferred_element_type=jnp.float32) + b3_ref[...])
    h = relu(jnp.dot(h.astype(w4_ref.dtype), w4_ref[...],
                     preferred_element_type=jnp.float32) + b4_ref[...])
    out = jnp.dot(h.astype(wo_ref.dtype), wo_ref[...],
                  preferred_element_type=jnp.float32) + bo_ref[...]
    o_ref[...] = out.astype(o_ref.dtype)


def next_word_forward(x_ids, pp, vocab_size, tile_b=None, trim_vocab=True,
                      single_buffer_weights=True):
    """x_ids: (B, block_size) int32 token ids.  pp: prepared params (prepare_params).

    Returns (B, vocab_size) logits if trim_vocab else (B, vocab_padded) where the
    extra columns are exactly zero (note: keep trim_vocab=True if the consumer
    takes an argmax over logits).
    """
    B, block = x_ids.shape
    bv, hidden_p = pp["m"].shape
    vocab_p = pp["wo"].shape[1]

    if tile_b is None:
        # Fill the MXU rows (>=128) but do not over-pad tiny batches.
        # On v7x (2 TensorCores) prefer a tile that yields >=2 grid steps when B allows.
        tile_b = min(256, _round_up(B, LANES))
    assert tile_b % 8 == 0, "batch tile must be a multiple of 8 sublanes"

    bp = _round_up(max(B, tile_b), tile_b)
    if bp != B:
        x_ids = jnp.pad(x_ids, ((0, bp - B), (0, 0)))
    x_ids = x_ids.astype(jnp.int32)

    const = lambda i: (0, 0)
    if single_buffer_weights:
        w_spec = lambda a: pl.BlockSpec(a.shape, const, pipeline_mode=pl.Buffered(1))
    else:
        w_spec = lambda a: pl.BlockSpec(a.shape, const)

    weight_order = ("sel", "m", "b1", "w2", "b2", "w3", "b3", "w4", "b4", "wo", "bo")
    weights = [pp[k] for k in weight_order]

    grid_spec = pltpu.PrefetchScalarGridSpec(
        num_scalar_prefetch=0,
        grid=(bp // tile_b,),
        in_specs=[pl.BlockSpec((tile_b, block), lambda i: (i, 0))]   # ids, per batch tile
                 + [w_spec(a) for a in weights],                      # resident params
        out_specs=pl.BlockSpec((tile_b, vocab_p), lambda i: (i, 0)),  # lane-dense output
    )

    # VMEM budget: resident weights (+ pipeline buffers) + IO tiles + activation slabs.
    nbytes = lambda a: int(a.size) * a.dtype.itemsize
    n_buf = 1 if single_buffer_weights else 2
    resident = n_buf * sum(nbytes(a) for a in weights)
    io = 2 * (tile_b * block * 4 + tile_b * vocab_p * 4)              # double-buffered
    acts = 4 * tile_b * (bv + 4 * hidden_p + vocab_p)                 # f32 intermediates
    vmem_limit = int(min(100 << 20, max(32 << 20, resident + io + 2 * acts)))

    flops = 2 * bp * (block * bv + bv * hidden_p
                      + 3 * hidden_p * hidden_p + hidden_p * vocab_p)
    bytes_accessed = int(x_ids.size * 4 + bp * vocab_p * 4
                         + sum(nbytes(a) for a in weights))

    out_padded = pl.pallas_call(
        functools.partial(_next_word_kernel, vocab=vocab_size),
        out_shape=jax.ShapeDtypeStruct((bp, vocab_p), jnp.float32),
        grid_spec=grid_spec,
        compiler_params=pltpu.CompilerParams(
            dimension_semantics=("parallel",),
            vmem_limit_bytes=vmem_limit),
        cost_estimate=pl.CostEstimate(flops=int(flops), transcendentals=0,
                                      bytes_accessed=bytes_accessed),
    )(x_ids, *weights)

    if trim_vocab:
        return out_padded[:B, :vocab_size]
    return out_padded[:B]


def init_params(key, block_size, vocab_size, embedding_dim, hidden_dim):
    """Deterministic synthetic init matching the PyTorch module's shapes.
    Weights stored as (in, out) so forward computes y = x @ W + b."""
    ks = jax.random.split(key, 11)
    in1 = embedding_dim * block_size

    def lin(kw, kb, fan_in, fan_out):
        scale = 1.0 / jnp.sqrt(fan_in)
        w = jax.random.uniform(kw, (fan_in, fan_out), jnp.float32, -scale, scale)
        b = jax.random.uniform(kb, (1, fan_out), jnp.float32, -scale, scale)
        return w, b

    params = {}
    params["embedding"] = jax.random.normal(ks[0], (vocab_size, embedding_dim),
                                            jnp.float32)
    params["w1"], params["b1"] = lin(ks[1], ks[2], in1, hidden_dim)
    params["w2"], params["b2"] = lin(ks[3], ks[4], hidden_dim, hidden_dim)
    params["w3"], params["b3"] = lin(ks[5], ks[6], hidden_dim, hidden_dim)
    params["w4"], params["b4"] = lin(ks[7], ks[8], hidden_dim, hidden_dim)
    params["wo"], params["bo"] = lin(ks[9], ks[10], hidden_dim, vocab_size)
    return params


def prepare_params(params, param_dtype=jnp.float32, lanes=LANES):
    """One-time (off hot path) parameter prep:
      * fold embedding + lin1: M[t*vocab+v, :] = emb[v, :] @ W1[t*E:(t+1)*E, :];
      * build the (block, block*vocab) position-selection matrix `sel`;
      * zero-pad hidden / vocab / block*vocab dims to multiples of 128 lanes (exact:
        padded hidden columns stay 0 through ReLU, padded logit columns are 0);
      * optionally cast matrices to bf16 (biases and `sel` stay f32; all dots
        accumulate in f32 inside the kernel)."""
    emb = params["embedding"]
    vocab, emb_dim = emb.shape
    in1, hidden = params["w1"].shape
    block = in1 // emb_dim

    hidden_p = _round_up(hidden, lanes)
    vocab_p = _round_up(vocab, lanes)
    bv = block * vocab
    bv_p = _round_up(bv, lanes)
    dh, dv = hidden_p - hidden, vocab_p - vocab

    w1 = params["w1"].reshape(block, emb_dim, hidden)
    m = jnp.einsum("ve,teh->tvh", emb, w1,
                   precision=jax.lax.Precision.HIGHEST).reshape(bv, hidden)
    m = jnp.pad(m, ((0, bv_p - bv), (0, dh)))

    j = jnp.arange(bv_p)
    sel = ((j[None, :] // vocab == jnp.arange(block)[:, None])
           & (j[None, :] < bv)).astype(jnp.float32)           # (block, bv_p)

    pp = {
        "sel": sel,
        "m": m.astype(param_dtype),
        "b1": jnp.pad(params["b1"], ((0, 0), (0, dh))),
        "wo": jnp.pad(params["wo"], ((0, dh), (0, dv))).astype(param_dtype),
        "bo": jnp.pad(params["bo"], ((0, 0), (0, dv))),
    }
    for k in ("w2", "w3", "w4"):
        pp[k] = jnp.pad(params[k], ((0, dh), (0, dh))).astype(param_dtype)
    for k in ("b2", "b3", "b4"):
        pp[k] = jnp.pad(params[k], ((0, 0), (0, dh)))
    return pp


def _reference_forward(x_ids, params):
    """Pure-JAX reference mirroring the PyTorch forward (ReLU activation)."""
    B, _ = x_ids.shape
    dot = lambda a, b: jnp.dot(a, b, precision=jax.lax.Precision.HIGHEST)
    act = lambda v: jnp.maximum(v, 0.0)
    h = jnp.take(params["embedding"], x_ids, axis=0).reshape(B, -1)
    h = act(dot(h, params["w1"]) + params["b1"])
    h = act(dot(h, params["w2"]) + params["b2"])
    h = act(dot(h, params["w3"]) + params["b3"])
    h = act(dot(h, params["w4"]) + params["b4"])
    return dot(h, params["wo"]) + params["bo"]


if __name__ == "__main__":
    # Small shapes consistent with the module's forward.
    block_size = 8
    vocab_size = 64
    embedding_dim = 16
    hidden_dim = 32
    batch = 200          # not a tile multiple -> exercises batch padding; 2 grid steps

    key = jax.random.PRNGKey(0)
    kp, kx = jax.random.split(key)
    params = init_params(kp, block_size, vocab_size, embedding_dim, hidden_dim)
    x_ids = jax.random.randint(kx, (batch, block_size), 0, vocab_size, dtype=jnp.int32)
    ref = _reference_forward(x_ids, params)

    fwd = jax.jit(next_word_forward,
                  static_argnames=("vocab_size", "tile_b", "trim_vocab",
                                   "single_buffer_weights"))

    def run(pp, single_buf):
        return jax.block_until_ready(
            fwd(x_ids, pp, vocab_size=vocab_size, tile_b=128,
                single_buffer_weights=single_buf))

    # f32-stored weights: tight check against the f32 reference.
    pp_f32 = prepare_params(params, param_dtype=jnp.float32)
    try:
        single_buf = True
        logits = run(pp_f32, single_buf)
    except Exception:
        # Fallback if this JAX build rejects single-buffered (Buffered(1)) BlockSpecs.
        single_buf = False
        logits = run(pp_f32, single_buf)
    assert logits.shape == (batch, vocab_size)
    assert jnp.allclose(logits, ref, atol=2e-4, rtol=2e-4), float(
        jnp.max(jnp.abs(logits - ref)))

    # bf16-stored weights (halves resident VMEM, doubles MXU throughput); f32 accum.
    pp_bf16 = prepare_params(params, param_dtype=jnp.bfloat16)
    logits_bf = run(pp_bf16, single_buf)
    assert logits_bf.shape == (batch, vocab_size)
    assert jnp.allclose(logits_bf, ref, atol=5e-2, rtol=5e-2), float(
        jnp.max(jnp.abs(logits_bf - ref)))

    print("KERNEL_OK")
</pallas_src>

<mosaic_0001>
module attributes {stable_mosaic.version = 11 : i64} {
  func.func @_next_word_kernel(%arg0: i32, %arg1: memref<128x8xi32, #tpu.memory_space<vmem>>, %arg2: memref<8x512xf32, #tpu.memory_space<vmem>>, %arg3: memref<512x128xf32, #tpu.memory_space<vmem>>, %arg4: memref<1x128xf32, #tpu.memory_space<vmem>>, %arg5: memref<128x128xf32, #tpu.memory_space<vmem>>, %arg6: memref<1x128xf32, #tpu.memory_space<vmem>>, %arg7: memref<128x128xf32, #tpu.memory_space<vmem>>, %arg8: memref<1x128xf32, #tpu.memory_space<vmem>>, %arg9: memref<128x128xf32, #tpu.memory_space<vmem>>, %arg10: memref<1x128xf32, #tpu.memory_space<vmem>>, %arg11: memref<128x128xf32, #tpu.memory_space<vmem>>, %arg12: memref<1x128xf32, #tpu.memory_space<vmem>>, %arg13: memref<128x128xf32, #tpu.memory_space<vmem>>) attributes {dimension_semantics = [#tpu.dimension_semantics<parallel>], iteration_bounds = array<i64: 2>, scalar_prefetch = 0 : i64, scratch_operands = 0 : i64, tpu.core_type = #tpu.core_type<tc>, window_params = [{transform_indices = @transform_0, window_bounds = array<i64: 128, 8>}, {pipeline_mode = #tpu.pipeline_mode<synchronous>, transform_indices = @transform_1, window_bounds = array<i64: 8, 512>}, {pipeline_mode = #tpu.pipeline_mode<synchronous>, transform_indices = @transform_2, window_bounds = array<i64: 512, 128>}, {pipeline_mode = #tpu.pipeline_mode<synchronous>, transform_indices = @transform_3, window_bounds = array<i64: 1, 128>}, {pipeline_mode = #tpu.pipeline_mode<synchronous>, transform_indices = @transform_4, window_bounds = array<i64: 128, 128>}, {pipeline_mode = #tpu.pipeline_mode<synchronous>, transform_indices = @transform_5, window_bounds = array<i64: 1, 128>}, {pipeline_mode = #tpu.pipeline_mode<synchronous>, transform_indices = @transform_6, window_bounds = array<i64: 128, 128>}, {pipeline_mode = #tpu.pipeline_mode<synchronous>, transform_indices = @transform_7, window_bounds = array<i64: 1, 128>}, {pipeline_mode = #tpu.pipeline_mode<synchronous>, transform_indices = @transform_8, window_bounds = array<i64: 128, 128>}, {pipeline_mode = #tpu.pipeline_mode<synchronous>, transform_indices = @transform_9, window_bounds = array<i64: 1, 128>}, {pipeline_mode = #tpu.pipeline_mode<synchronous>, transform_indices = @transform_10, window_bounds = array<i64: 128, 128>}, {pipeline_mode = #tpu.pipeline_mode<synchronous>, transform_indices = @transform_11, window_bounds = array<i64: 1, 128>}, {transform_indices = @transform_12, window_bounds = array<i64: 128, 128>}]} {
    %c0 = arith.constant 0 : index
    %c0_0 = arith.constant 0 : index
    %0 = vector.load %arg1[%c0, %c0_0] : memref<128x8xi32, #tpu.memory_space<vmem>>, vector<128x8xi32>
    %1 = arith.sitofp %0 : vector<128x8xi32> to vector<128x8xf32>
    %c0_1 = arith.constant 0 : index
    %c0_2 = arith.constant 0 : index
    %2 = vector.load %arg2[%c0_1, %c0_2] : memref<8x512xf32, #tpu.memory_space<vmem>>, vector<8x512xf32>
    %cst = arith.constant dense<0.000000e+00> : vector<128x512xf32>
    %3 = tpu.matmul %1, %2, %cst {dimension_numbers = #tpu.dot_dimension_numbers<[1], [0], [0], [1], [0, 0, 1, 1], [], []>} : vector<128x8xf32>, vector<8x512xf32>, vector<128x512xf32> -> vector<128x512xf32>
    %4 = tpu.iota {dimensions = array<i32: 1>} : vector<128x512xi32>
    %c64_i32 = arith.constant 64 : i32
    %c0_i32 = arith.constant 0 : i32
    %5 = arith.cmpi eq, %c64_i32, %c0_i32 : i32
    %c1_i32 = arith.constant 1 : i32
    %6 = arith.select %5, %c1_i32, %c64_i32 : i32
    %7 = vector.broadcast %6 : i32 to vector<128x512xi32>
    %8 = arith.remsi %4, %7 : vector<128x512xi32>
    %c0_i32_3 = arith.constant 0 : i32
    %9 = vector.broadcast %c0_i32_3 : i32 to vector<128x512xi32>
    %10 = arith.cmpi ne, %8, %9 : vector<128x512xi32>
    %c0_i32_4 = arith.constant 0 : i32
    %11 = vector.broadcast %c0_i32_4 : i32 to vector<128x512xi32>
    %12 = arith.cmpi slt, %8, %11 : vector<128x512xi32>
    %c0_i32_5 = arith.constant 0 : i32
    %13 = arith.cmpi slt, %6, %c0_i32_5 : i32
    %14 = vector.broadcast %13 : i1 to vector<128x512xi1>
    %15 = vector.broadcast %14 : vector<128x512xi1> to vector<128x512xi1>
    %16 = arith.xori %12, %15 : vector<128x512xi1>
    %17 = arith.andi %16, %10 : vector<128x512xi1>
    %18 = vector.broadcast %6 : i32 to vector<128x512xi32>
    %19 = arith.addi %8, %18 : vector<128x512xi32>
    %20 = arith.select %17, %19, %8 : vector<128x512xi1>, vector<128x512xi32>
    %21 = arith.sitofp %20 : vector<128x512xi32> to vector<128x512xf32>
    %22 = arith.cmpf oeq, %3, %21 : vector<128x512xf32>
    %cst_6 = arith.constant 1.000000e+00 : f32
    %cst_7 = arith.constant 0.000000e+00 : f32
    %23 = vector.broadcast %cst_6 : f32 to vector<128x512xf32>
    %24 = vector.broadcast %cst_7 : f32 to vector<128x512xf32>
    %25 = arith.select %22, %23, %24 : vector<128x512xi1>, vector<128x512xf32>
    %c0_8 = arith.constant 0 : index
    %c0_9 = arith.constant 0 : index
    %26 = vector.load %arg3[%c0_8, %c0_9] : memref<512x128xf32, #tpu.memory_space<vmem>>, vector<512x128xf32>
    %cst_10 = arith.constant dense<0.000000e+00> : vector<128x128xf32>
    %27 = tpu.matmul %25, %26, %cst_10 {dimension_numbers = #tpu.dot_dimension_numbers<[1], [0], [0], [1], [0, 0, 1, 1], [], []>} : vector<128x512xf32>, vector<512x128xf32>, vector<128x128xf32> -> vector<128x128xf32>
    %c0_11 = arith.constant 0 : index
    %c0_12 = arith.constant 0 : index
    %28 = vector.load %arg4[%c0_11, %c0_12] : memref<1x128xf32, #tpu.memory_space<vmem>>, vector<1x128xf32>
    %29 = vector.broadcast %28 : vector<1x128xf32> to vector<128x128xf32>
    %30 = arith.addf %27, %29 : vector<128x128xf32>
    %cst_13 = arith.constant 0.000000e+00 : f32
    %31 = vector.broadcast %cst_13 : f32 to vector<128x128xf32>
    %32 = arith.maximumf %30, %31 : vector<128x128xf32>
    %c0_14 = arith.constant 0 : index
    %c0_15 = arith.constant 0 : index
    %33 = vector.load %arg5[%c0_14, %c0_15] : memref<128x128xf32, #tpu.memory_space<vmem>>, vector<128x128xf32>
    %cst_16 = arith.constant dense<0.000000e+00> : vector<128x128xf32>
    %34 = tpu.matmul %32, %33, %cst_16 {dimension_numbers = #tpu.dot_dimension_numbers<[1], [0], [0], [1], [0, 0, 1, 1], [], []>} : vector<128x128xf32>, vector<128x128xf32>, vector<128x128xf32> -> vector<128x128xf32>
    %c0_17 = arith.constant 0 : index
    %c0_18 = arith.constant 0 : index
    %35 = vector.load %arg6[%c0_17, %c0_18] : memref<1x128xf32, #tpu.memory_space<vmem>>, vector<1x128xf32>
    %36 = vector.broadcast %35 : vector<1x128xf32> to vector<128x128xf32>
    %37 = arith.addf %34, %36 : vector<128x128xf32>
    %cst_19 = arith.constant 0.000000e+00 : f32
    %38 = vector.broadcast %cst_19 : f32 to vector<128x128xf32>
    %39 = arith.maximumf %37, %38 : vector<128x128xf32>
    %c0_20 = arith.constant 0 : index
    %c0_21 = arith.constant 0 : index
    %40 = vector.load %arg7[%c0_20, %c0_21] : memref<128x128xf32, #tpu.memory_space<vmem>>, vector<128x128xf32>
    %cst_22 = arith.constant dense<0.000000e+00> : vector<128x128xf32>
    %41 = tpu.matmul %39, %40, %cst_22 {dimension_numbers = #tpu.dot_dimension_numbers<[1], [0], [0], [1], [0, 0, 1, 1], [], []>} : vector<128x128xf32>, vector<128x128xf32>, vector<128x128xf32> -> vector<128x128xf32>
    %c0_23 = arith.constant 0 : index
    %c0_24 = arith.constant 0 : index
    %42 = vector.load %arg8[%c0_23, %c0_24] : memref<1x128xf32, #tpu.memory_space<vmem>>, vector<1x128xf32>
    %43 = vector.broadcast %42 : vector<1x128xf32> to vector<128x128xf32>
    %44 = arith.addf %41, %43 : vector<128x128xf32>
    %cst_25 = arith.constant 0.000000e+00 : f32
    %45 = vector.broadcast %cst_25 : f32 to vector<128x128xf32>
    %46 = arith.maximumf %44, %45 : vector<128x128xf32>
    %c0_26 = arith.constant 0 : index
    %c0_27 = arith.constant 0 : index
    %47 = vector.load %arg9[%c0_26, %c0_27] : memref<128x128xf32, #tpu.memory_space<vmem>>, vector<128x128xf32>
    %cst_28 = arith.constant dense<0.000000e+00> : vector<128x128xf32>
    %48 = tpu.matmul %46, %47, %cst_28 {dimension_numbers = #tpu.dot_dimension_numbers<[1], [0], [0], [1], [0, 0, 1, 1], [], []>} : vector<128x128xf32>, vector<128x128xf32>, vector<128x128xf32> -> vector<128x128xf32>
    %c0_29 = arith.constant 0 : index
    %c0_30 = arith.constant 0 : index
    %49 = vector.load %arg10[%c0_29, %c0_30] : memref<1x128xf32, #tpu.memory_space<vmem>>, vector<1x128xf32>
    %50 = vector.broadcast %49 : vector<1x128xf32> to vector<128x128xf32>
    %51 = arith.addf %48, %50 : vector<128x128xf32>
    %cst_31 = arith.constant 0.000000e+00 : f32
    %52 = vector.broadcast %cst_31 : f32 to vector<128x128xf32>
    %53 = arith.maximumf %51, %52 : vector<128x128xf32>
    %c0_32 = arith.constant 0 : index
    %c0_33 = arith.constant 0 : index
    %54 = vector.load %arg11[%c0_32, %c0_33] : memref<128x128xf32, #tpu.memory_space<vmem>>, vector<128x128xf32>
    %cst_34 = arith.constant dense<0.000000e+00> : vector<128x128xf32>
    %55 = tpu.matmul %53, %54, %cst_34 {dimension_numbers = #tpu.dot_dimension_numbers<[1], [0], [0], [1], [0, 0, 1, 1], [], []>} : vector<128x128xf32>, vector<128x128xf32>, vector<128x128xf32> -> vector<128x128xf32>
    %c0_35 = arith.constant 0 : index
    %c0_36 = arith.constant 0 : index
    %56 = vector.load %arg12[%c0_35, %c0_36] : memref<1x128xf32, #tpu.memory_space<vmem>>, vector<1x128xf32>
    %57 = vector.broadcast %56 : vector<1x128xf32> to vector<128x128xf32>
    %58 = arith.addf %55, %57 : vector<128x128xf32>
    %c0_37 = arith.constant 0 : index
    %c0_38 = arith.constant 0 : index
    %59 = vector.load %arg13[%c0_37, %c0_38] : memref<128x128xf32, #tpu.memory_space<vmem>>, vector<128x128xf32>
    tpu.vector_store %arg13[%c0_37, %c0_38], %58 {strides = array<i32>} : memref<128x128xf32, #tpu.memory_space<vmem>>, vector<128x128xf32>,
    return
  }
  func.func @transform_0(%arg0: i32) -> (i32, i32) {
    %c0_i32 = arith.constant 0 : i32
    %c0_i32_0 = arith.constant 0 : i32
    return %arg0, %c0_i32 : i32, i32
  }
  func.func @transform_1(%arg0: i32) -> (i32, i32) {
    %c0_i32 = arith.constant 0 : i32
    %c0_i32_0 = arith.constant 0 : i32
    %c0_i32_1 = arith.constant 0 : i32
    return %c0_i32, %c0_i32_0 : i32, i32
  }
  func.func @transform_2(%arg0: i32) -> (i32, i32) {
    %c0_i32 = arith.constant 0 : i32
    %c0_i32_0 = arith.constant 0 : i32
    %c0_i32_1 = arith.constant 0 : i32
    return %c0_i32, %c0_i32_0 : i32, i32
  }
  func.func @transform_3(%arg0: i32) -> (i32, i32) {
    %c0_i32 = arith.constant 0 : i32
    %c0_i32_0 = arith.constant 0 : i32
    %c0_i32_1 = arith.constant 0 : i32
    return %c0_i32, %c0_i32_0 : i32, i32
  }
  func.func @transform_4(%arg0: i32) -> (i32, i32) {
    %c0_i32 = arith.constant 0 : i32
    %c0_i32_0 = arith.constant 0 : i32
    %c0_i32_1 = arith.constant 0 : i32
    return %c0_i32, %c0_i32_0 : i32, i32
  }
  func.func @transform_5(%arg0: i32) -> (i32, i32) {
    %c0_i32 = arith.constant 0 : i32
    %c0_i32_0 = arith.constant 0 : i32
    %c0_i32_1 = arith.constant 0 : i32
    return %c0_i32, %c0_i32_0 : i32, i32
  }
  func.func @transform_6(%arg0: i32) -> (i32, i32) {
    %c0_i32 = arith.constant 0 : i32
    %c0_i32_0 = arith.constant 0 : i32
    %c0_i32_1 = arith.constant 0 : i32
    return %c0_i32, %c0_i32_0 : i32, i32
  }
  func.func @transform_7(%arg0: i32) -> (i32, i32) {
    %c0_i32 = arith.constant 0 : i32
    %c0_i32_0 = arith.constant 0 : i32
    %c0_i32_1 = arith.constant 0 : i32
    return %c0_i32, %c0_i32_0 : i32, i32
  }
  func.func @transform_8(%arg0: i32) -> (i32, i32) {
    %c0_i32 = arith.constant 0 : i32
    %c0_i32_0 = arith.constant 0 : i32
    %c0_i32_1 = arith.constant 0 : i32
    return %c0_i32, %c0_i32_0 : i32, i32
  }
  func.func @transform_9(%arg0: i32) -> (i32, i32) {
    %c0_i32 = arith.constant 0 : i32
    %c0_i32_0 = arith.constant 0 : i32
    %c0_i32_1 = arith.constant 0 : i32
    return %c0_i32, %c0_i32_0 : i32, i32
  }
  func.func @transform_10(%arg0: i32) -> (i32, i32) {
    %c0_i32 = arith.constant 0 : i32
    %c0_i32_0 = arith.constant 0 : i32
    %c0_i32_1 = arith.constant 0 : i32
    return %c0_i32, %c0_i32_0 : i32, i32
  }
  func.func @transform_11(%arg0: i32) -> (i32, i32) {
    %c0_i32 = arith.constant 0 : i32
    %c0_i32_0 = arith.constant 0 : i32
    %c0_i32_1 = arith.constant 0 : i32
    return %c0_i32, %c0_i32_0 : i32, i32
  }
  func.func @transform_12(%arg0: i32) -> (i32, i32) {
    %c0_i32 = arith.constant 0 : i32
    %c0_i32_0 = arith.constant 0 : i32
    return %arg0, %c0_i32 : i32, i32
  }
}

module attributes {stable_mosaic.version = 11 : i64} {
  func.func @_next_word_kernel(%arg0: i32, %arg1: memref<128x8xi32, #tpu.memory_space<vmem>>, %arg2: memref<8x512xf32, #tpu.memory_space<vmem>>, %arg3: memref<512x128xf32, #tpu.memory_space<vmem>>, %arg4: memref<1x128xf32, #tpu.memory_space<vmem>>, %arg5: memref<128x128xf32, #tpu.memory_space<vmem>>, %arg6: memref<1x128xf32, #tpu.memory_space<vmem>>, %arg7: memref<128x128xf32, #tpu.memory_space<vmem>>, %arg8: memref<1x128xf32, #tpu.memory_space<vmem>>, %arg9: memref<128x128xf32, #tpu.memory_space<vmem>>, %arg10: memref<1x128xf32, #tpu.memory_space<vmem>>, %arg11: memref<128x128xf32, #tpu.memory_space<vmem>>, %arg12: memref<1x128xf32, #tpu.memory_space<vmem>>, %arg13: memref<128x128xf32, #tpu.memory_space<vmem>>) attributes {dimension_semantics = [#tpu.dimension_semantics<parallel>], iteration_bounds = array<i64: 2>, scalar_prefetch = 0 : i64, scratch_operands = 0 : i64, tpu.core_type = #tpu.core_type<tc>, window_params = [{transform_indices = @transform_0, window_bounds = array<i64: 128, 8>}, {pipeline_mode = #tpu.pipeline_mode<synchronous>, transform_indices = @transform_1, window_bounds = array<i64: 8, 512>}, {pipeline_mode = #tpu.pipeline_mode<synchronous>, transform_indices = @transform_2, window_bounds = array<i64: 512, 128>}, {pipeline_mode = #tpu.pipeline_mode<synchronous>, transform_indices = @transform_3, window_bounds = array<i64: 1, 128>}, {pipeline_mode = #tpu.pipeline_mode<synchronous>, transform_indices = @transform_4, window_bounds = array<i64: 128, 128>}, {pipeline_mode = #tpu.pipeline_mode<synchronous>, transform_indices = @transform_5, window_bounds = array<i64: 1, 128>}, {pipeline_mode = #tpu.pipeline_mode<synchronous>, transform_indices = @transform_6, window_bounds = array<i64: 128, 128>}, {pipeline_mode = #tpu.pipeline_mode<synchronous>, transform_indices = @transform_7, window_bounds = array<i64: 1, 128>}, {pipeline_mode = #tpu.pipeline_mode<synchronous>, transform_indices = @transform_8, window_bounds = array<i64: 128, 128>}, {pipeline_mode = #tpu.pipeline_mode<synchronous>, transform_indices = @transform_9, window_bounds = array<i64: 1, 128>}, {pipeline_mode = #tpu.pipeline_mode<synchronous>, transform_indices = @transform_10, window_bounds = array<i64: 128, 128>}, {pipeline_mode = #tpu.pipeline_mode<synchronous>, transform_indices = @transform_11, window_bounds = array<i64: 1, 128>}, {transform_indices = @transform_12, window_bounds = array<i64: 128, 128>}]} {
    %c0 = arith.constant 0 : index
    %c0_0 = arith.constant 0 : index
    %0 = vector.load %arg1[%c0, %c0_0] : memref<128x8xi32, #tpu.memory_space<vmem>>, vector<128x8xi32>
    %1 = arith.sitofp %0 : vector<128x8xi32> to vector<128x8xf32>
    %c0_1 = arith.constant 0 : index
    %c0_2 = arith.constant 0 : index
    %2 = vector.load %arg2[%c0_1, %c0_2] : memref<8x512xf32, #tpu.memory_space<vmem>>, vector<8x512xf32>
    %cst = arith.constant dense<0.000000e+00> : vector<128x512xf32>
    %3 = tpu.matmul %1, %2, %cst {dimension_numbers = #tpu.dot_dimension_numbers<[1], [0], [0], [1], [0, 0, 1, 1], [], []>} : vector<128x8xf32>, vector<8x512xf32>, vector<128x512xf32> -> vector<128x512xf32>
    %4 = tpu.iota {dimensions = array<i32: 1>} : vector<128x512xi32>
    %c64_i32 = arith.constant 64 : i32
    %c0_i32 = arith.constant 0 : i32
    %5 = arith.cmpi eq, %c64_i32, %c0_i32 : i32
    %c1_i32 = arith.constant 1 : i32
    %6 = arith.select %5, %c1_i32, %c64_i32 : i32
    %7 = vector.broadcast %6 : i32 to vector<128x512xi32>
    %8 = arith.remsi %4, %7 : vector<128x512xi32>
    %c0_i32_3 = arith.constant 0 : i32
    %9 = vector.broadcast %c0_i32_3 : i32 to vector<128x512xi32>
    %10 = arith.cmpi ne, %8, %9 : vector<128x512xi32>
    %c0_i32_4 = arith.constant 0 : i32
    %11 = vector.broadcast %c0_i32_4 : i32 to vector<128x512xi32>
    %12 = arith.cmpi slt, %8, %11 : vector<128x512xi32>
    %c0_i32_5 = arith.constant 0 : i32
    %13 = arith.cmpi slt, %6, %c0_i32_5 : i32
    %14 = vector.broadcast %13 : i1 to vector<128x512xi1>
    %15 = vector.broadcast %14 : vector<128x512xi1> to vector<128x512xi1>
    %16 = arith.xori %12, %15 : vector<128x512xi1>
    %17 = arith.andi %16, %10 : vector<128x512xi1>
    %18 = vector.broadcast %6 : i32 to vector<128x512xi32>
    %19 = arith.addi %8, %18 : vector<128x512xi32>
    %20 = arith.select %17, %19, %8 : vector<128x512xi1>, vector<128x512xi32>
    %21 = arith.sitofp %20 : vector<128x512xi32> to vector<128x512xf32>
    %22 = arith.cmpf oeq, %3, %21 : vector<128x512xf32>
    %cst_6 = arith.constant 1.000000e+00 : f32
    %cst_7 = arith.constant 0.000000e+00 : f32
    %23 = vector.broadcast %cst_6 : f32 to vector<128x512xf32>
    %24 = vector.broadcast %cst_7 : f32 to vector<128x512xf32>
    %25 = arith.select %22, %23, %24 : vector<128x512xi1>, vector<128x512xf32>
    %c0_8 = arith.constant 0 : index
    %c0_9 = arith.constant 0 : index
    %26 = vector.load %arg3[%c0_8, %c0_9] : memref<512x128xf32, #tpu.memory_space<vmem>>, vector<512x128xf32>
    %cst_10 = arith.constant dense<0.000000e+00> : vector<128x128xf32>
    %27 = tpu.matmul %25, %26, %cst_10 {dimension_numbers = #tpu.dot_dimension_numbers<[1], [0], [0], [1], [0, 0, 1, 1], [], []>} : vector<128x512xf32>, vector<512x128xf32>, vector<128x128xf32> -> vector<128x128xf32>
    %c0_11 = arith.constant 0 : index
    %c0_12 = arith.constant 0 : index
    %28 = vector.load %arg4[%c0_11, %c0_12] : memref<1x128xf32, #tpu.memory_space<vmem>>, vector<1x128xf32>
    %29 = vector.broadcast %28 : vector<1x128xf32> to vector<128x128xf32>
    %30 = arith.addf %27, %29 : vector<128x128xf32>
    %cst_13 = arith.constant 0.000000e+00 : f32
    %31 = vector.broadcast %cst_13 : f32 to vector<128x128xf32>
    %32 = arith.maximumf %30, %31 : vector<128x128xf32>
    %c0_14 = arith.constant 0 : index
    %c0_15 = arith.constant 0 : index
    %33 = vector.load %arg5[%c0_14, %c0_15] : memref<128x128xf32, #tpu.memory_space<vmem>>, vector<128x128xf32>
    %cst_16 = arith.constant dense<0.000000e+00> : vector<128x128xf32>
    %34 = tpu.matmul %32, %33, %cst_16 {dimension_numbers = #tpu.dot_dimension_numbers<[1], [0], [0], [1], [0, 0, 1, 1], [], []>} : vector<128x128xf32>, vector<128x128xf32>, vector<128x128xf32> -> vector<128x128xf32>
    %c0_17 = arith.constant 0 : index
    %c0_18 = arith.constant 0 : index
    %35 = vector.load %arg6[%c0_17, %c0_18] : memref<1x128xf32, #tpu.memory_space<vmem>>, vector<1x128xf32>
    %36 = vector.broadcast %35 : vector<1x128xf32> to vector<128x128xf32>
    %37 = arith.addf %34, %36 : vector<128x128xf32>
    %cst_19 = arith.constant 0.000000e+00 : f32
    %38 = vector.broadcast %cst_19 : f32 to vector<128x128xf32>
    %39 = arith.maximumf %37, %38 : vector<128x128xf32>
    %c0_20 = arith.constant 0 : index
    %c0_21 = arith.constant 0 : index
    %40 = vector.load %arg7[%c0_20, %c0_21] : memref<128x128xf32, #tpu.memory_space<vmem>>, vector<128x128xf32>
    %cst_22 = arith.constant dense<0.000000e+00> : vector<128x128xf32>
    %41 = tpu.matmul %39, %40, %cst_22 {dimension_numbers = #tpu.dot_dimension_numbers<[1], [0], [0], [1], [0, 0, 1, 1], [], []>} : vector<128x128xf32>, vector<128x128xf32>, vector<128x128xf32> -> vector<128x128xf32>
    %c0_23 = arith.constant 0 : index
    %c0_24 = arith.constant 0 : index
    %42 = vector.load %arg8[%c0_23, %c0_24] : memref<1x128xf32, #tpu.memory_space<vmem>>, vector<1x128xf32>
    %43 = vector.broadcast %42 : vector<1x128xf32> to vector<128x128xf32>
    %44 = arith.addf %41, %43 : vector<128x128xf32>
    %cst_25 = arith.constant 0.000000e+00 : f32
    %45 = vector.broadcast %cst_25 : f32 to vector<128x128xf32>
    %46 = arith.maximumf %44, %45 : vector<128x128xf32>
    %c0_26 = arith.constant 0 : index
    %c0_27 = arith.constant 0 : index
    %47 = vector.load %arg9[%c0_26, %c0_27] : memref<128x128xf32, #tpu.memory_space<vmem>>, vector<128x128xf32>
    %cst_28 = arith.constant dense<0.000000e+00> : vector<128x128xf32>
    %48 = tpu.matmul %46, %47, %cst_28 {dimension_numbers = #tpu.dot_dimension_numbers<[1], [0], [0], [1], [0, 0, 1, 1], [], []>} : vector<128x128xf32>, vector<128x128xf32>, vector<128x128xf32> -> vector<128x128xf32>
    %c0_29 = arith.constant 0 : index
    %c0_30 = arith.constant 0 : index
    %49 = vector.load %arg10[%c0_29, %c0_30] : memref<1x128xf32, #tpu.memory_space<vmem>>, vector<1x128xf32>
    %50 = vector.broadcast %49 : vector<1x128xf32> to vector<128x128xf32>
    %51 = arith.addf %48, %50 : vector<128x128xf32>
    %cst_31 = arith.constant 0.000000e+00 : f32
    %52 = vector.broadcast %cst_31 : f32 to vector<128x128xf32>
    %53 = arith.maximumf %51, %52 : vector<128x128xf32>
    %c0_32 = arith.constant 0 : index
    %c0_33 = arith.constant 0 : index
    %54 = vector.load %arg11[%c0_32, %c0_33] : memref<128x128xf32, #tpu.memory_space<vmem>>, vector<128x128xf32>
    %cst_34 = arith.constant dense<0.000000e+00> : vector<128x128xf32>
    %55 = tpu.matmul %53, %54, %cst_34 {dimension_numbers = #tpu.dot_dimension_numbers<[1], [0], [0], [1], [0, 0, 1, 1], [], []>} : vector<128x128xf32>, vector<128x128xf32>, vector<128x128xf32> -> vector<128x128xf32>
    %c0_35 = arith.constant 0 : index
    %c0_36 = arith.constant 0 : index
    %56 = vector.load %arg12[%c0_35, %c0_36] : memref<1x128xf32, #tpu.memory_space<vmem>>, vector<1x128xf32>
    %57 = vector.broadcast %56 : vector<1x128xf32> to vector<128x128xf32>
    %58 = arith.addf %55, %57 : vector<128x128xf32>
    %c0_37 = arith.constant 0 : index
    %c0_38 = arith.constant 0 : index
    %59 = vector.load %arg13[%c0_37, %c0_38] : memref<128x128xf32, #tpu.memory_space<vmem>>, vector<128x128xf32>
    tpu.vector_store %arg13[%c0_37, %c0_38], %58 {strides = array<i32>} : memref<128x128xf32, #tpu.memory_space<vmem>>, vector<128x128xf32>,
    return
  }
  func.func @transform_0(%arg0: i32) -> (i32, i32) {
    %c0_i32 = arith.constant 0 : i32
    %c0_i32_0 = arith.constant 0 : i32
    return %arg0, %c0_i32 : i32, i32
  }
  func.func @transform_1(%arg0: i32) -> (i32, i32) {
    %c0_i32 = arith.constant 0 : i32
    %c0_i32_0 = arith.constant 0 : i32
    %c0_i32_1 = arith.constant 0 : i32
    return %c0_i32, %c0_i32_0 : i32, i32
  }
  func.func @transform_2(%arg0: i32) -> (i32, i32) {
    %c0_i32 = arith.constant 0 : i32
    %c0_i32_0 = arith.constant 0 : i32
    %c0_i32_1 = arith.constant 0 : i32
    return %c0_i32, %c0_i32_0 : i32, i32
  }
  func.func @transform_3(%arg0: i32) -> (i32, i32) {
    %c0_i32 = arith.constant 0 : i32
    %c0_i32_0 = arith.constant 0 : i32
    %c0_i32_1 = arith.constant 0 : i32
    return %c0_i32, %c0_i32_0 : i32, i32
  }
  func.func @transform_4(%arg0: i32) -> (i32, i32) {
    %c0_i32 = arith.constant 0 : i32
    %c0_i32_0 = arith.constant 0 : i32
    %c0_i32_1 = arith.constant 0 : i32
    return %c0_i32, %c0_i32_0 : i32, i32
  }
  func.func @transform_5(%arg0: i32) -> (i32, i32) {
    %c0_i32 = arith.constant 0 : i32
    %c0_i32_0 = arith.constant 0 : i32
    %c0_i32_1 = arith.constant 0 : i32
    return %c0_i32, %c0_i32_0 : i32, i32
  }
  func.func @transform_6(%arg0: i32) -> (i32, i32) {
    %c0_i32 = arith.constant 0 : i32
    %c0_i32_0 = arith.constant 0 : i32
    %c0_i32_1 = arith.constant 0 : i32
    return %c0_i32, %c0_i32_0 : i32, i32
  }
  func.func @transform_7(%arg0: i32) -> (i32, i32) {
    %c0_i32 = arith.constant 0 : i32
    %c0_i32_0 = arith.constant 0 : i32
    %c0_i32_1 = arith.constant 0 : i32
    return %c0_i32, %c0_i32_0 : i32, i32
  }
  func.func @transform_8(%arg0: i32) -> (i32, i32) {
    %c0_i32 = arith.constant 0 : i32
    %c0_i32_0 = arith.constant 0 : i32
    %c0_i32_1 = arith.constant 0 : i32
    return %c0_i32, %c0_i32_0 : i32, i32
  }
  func.func @transform_9(%arg0: i32) -> (i32, i32) {
    %c0_i32 = arith.constant 0 : i32
    %c0_i32_0 = arith.constant 0 : i32
    %c0_i32_1 = arith.constant 0 : i32
    return %c0_i32, %c0_i32_0 : i32, i32
  }
  func.func @transform_10(%arg0: i32) -> (i32, i32) {
    %c0_i32 = arith.constant 0 : i32
    %c0_i32_0 = arith.constant 0 : i32
    %c0_i32_1 = arith.constant 0 : i32
    return %c0_i32, %c0_i32_0 : i32, i32
  }
  func.func @transform_11(%arg0: i32) -> (i32, i32) {
    %c0_i32 = arith.constant 0 : i32
    %c0_i32_0 = arith.constant 0 : i32
    %c0_i32_1 = arith.constant 0 : i32
    return %c0_i32, %c0_i32_0 : i32, i32
  }
  func.func @transform_12(%arg0: i32) -> (i32, i32) {
    %c0_i32 = arith.constant 0 : i32
    %c0_i32_0 = arith.constant 0 : i32
    return %arg0, %c0_i32 : i32, i32
  }
}

</mosaic_0001>

<llo_original>
// kernel: next_word_forward.1
$region0: #{next_word_forward.1}
  #allocation0 [shape = 'u32[]', space=smem, size = 0x4, offset = 0x4, fixed_abs, tag = 'smem constant byte address 0x4 - core index']
  #allocation1 [shape = 'u32[144,128]{1,0:T(1,128)}', space=vmem, size = 0x12000, scoped, tag = 'internal scratch']
  %s0 = inlined_call_operand.vmem [shape: s32[256,8], index: 0, kind: input, shape index: {}]
  %s1 = inlined_call_operand.vmem [shape: f32[8,512], index: 1, kind: input, shape index: {}]
  %s2 = inlined_call_operand.vmem [shape: f32[512,128], index: 2, kind: input, shape index: {}]
  %s3 = inlined_call_operand.vmem [shape: f32[1,128], index: 3, kind: input, shape index: {}]
  %s4 = inlined_call_operand.vmem [shape: f32[128,128], index: 4, kind: input, shape index: {}]
  %s5 = inlined_call_operand.vmem [shape: f32[1,128], index: 5, kind: input, shape index: {}]
  %s6 = inlined_call_operand.hbm [shape: f32[128,128], index: 6, kind: input, shape index: {}]
  %s7 = inlined_call_operand.vmem [shape: f32[1,128], index: 7, kind: input, shape index: {}]
  %s8 = inlined_call_operand.hbm [shape: f32[128,128], index: 8, kind: input, shape index: {}]
  %s9 = inlined_call_operand.vmem [shape: f32[1,128], index: 9, kind: input, shape index: {}]
  %s10 = inlined_call_operand.hbm [shape: f32[128,128], index: 10, kind: input, shape index: {}]
  %s11 = inlined_call_operand.vmem [shape: f32[1,128], index: 11, kind: input, shape index: {}]
  %s12 = inlined_call_operand.vmem [shape: f32[256,128], index: 12, kind: output, shape index: {}]
  %s13 = sld [smem:[#allocation0]]
  $region93: #{next_word_forward.1} parent=0
    _
  %s15 = ssub.s32 1, %s13
  %s16 = scalar_select 0, %s15, %s13
  $region1: #{next_word_forward.1} parent=0
    #allocation2 [shape = 'u8[65536]{0}', space=vmem, size = 0x10000, scoped, tag = 'input window, operand 6, single buffered']
    #allocation3 [shape = 's32[2]{0}', space=sflag, size = 0x8, scoped, tag = 'scoped memory for next_word_forward.1']
    #allocation4 [shape = 'u8[65536]{0}', space=vmem, size = 0x10000, scoped, tag = 'input window, operand 8, single buffered']
    #allocation5 [shape = 's32[1]{0}', space=sflag, size = 0x4, scoped, tag = 'scoped memory for next_word_forward.1']
    #allocation6 [shape = 'u8[65536]{0}', space=vmem, size = 0x10000, scoped, tag = 'input window, operand 10, single buffered']
    %17 = vsyncpa [#allocation3], 0
    %18 = vsyncpa [#allocation5], 0
    loop: start=0, step=1, limit=4
    $region2: #{next_word_forward.1} parent=1 // loop_pre_header
      _
    $region3: #{next_word_forward.1} parent=1 // loop_header
      %s20 = sphi 0, %s24
      %p21 = scmp.ge.s32.totalorder %s20, 4
      %s30 = sphi 0, %s32
      %s33 = sphi 0, %s30
      %s34 = sphi 0, %s33
      %s50 = sphi 0, %s34
      %s54 = sphi 0, %s54
      %s56 = sphi 0, %s54
      %s57 = sphi 0, %s56
      %s71 = sphi 0, %s57
      %s75 = sphi 0, %s75
      %s77 = sphi 0, %s75
      %s78 = sphi 0, %s77
      %s92 = sphi 0, %s78
      %s96 = sphi 0, %s96
      %s98 = sphi 0, %s96
      %s99 = sphi 0, %s98
      %s113 = sphi 0, %s99
      %s117 = sphi 0, %s117
      %s119 = sphi 0, %s117
      %s120 = sphi 0, %s119
      %s134 = sphi 0, %s120
      %s138 = sphi 0, %s138
      %s140 = sphi 0, %s138
      %s141 = sphi 0, %s140
      %s155 = sphi 0, %s141
      %s159 = sphi 0, %s159
      %s161 = sphi 0, %s159
      %s162 = sphi 0, %s161
      %s176 = sphi 0, %s162
      %s180 = sphi 0, %s180
      %s182 = sphi 0, %s180
      %s183 = sphi 0, %s182
      %s197 = sphi 0, %s183
      %s201 = sphi 0, %s201
      %s203 = sphi 0, %s201
      %s204 = sphi 0, %s203
      %s218 = sphi 0, %s204
      %s222 = sphi 0, %s222
      %s224 = sphi 0, %s222
      %s225 = sphi 0, %s224
      %s239 = sphi 0, %s225
      %s243 = sphi 0, %s243
      %s245 = sphi 0, %s243
      %s246 = sphi 0, %s245
      %s260 = sphi 0, %s246
      %s264 = sphi 0, %s264
      %s266 = sphi 0, %s264
      %s267 = sphi 0, %s266
      %s281 = sphi 0, %s267
      %s287 = sphi 0, %s289
      %s290 = sphi 0, %s287
      %s291 = sphi 0, %s290
      %s307 = sphi 0, %s291
    $region4: #{next_word_forward.1} parent=1 // loop_header_branch
      %23 = sbr.rel (%p21) target = $region8
    $region5: #{next_word_forward.1} parent=1 // loop_body
      %s25 = ssub.s32 %s20, 1
      %s26 = ssub.s32 %s20, 2
      %s27 = sadd.s32 %s20, 1
      %s28 = ssub.s32 %s20, %s27
      %p29 = scmp.eq.s32.totalorder %s28, 0
      %s31 = sadd.s32 %s30, 1
      %s32 = scalar_select %p29, %s30, %s31
      %p35 = pneg %p29
      %p36 = scmp.eq.s32.totalorder %s20, 1
      %p37 = por %p35, %p36
      %p38 = scmp.ne.s32.totalorder %s30, %s33
      %p39 = scmp.eq.s32.totalorder %s20, 0
      %p40 = por %p38, %p39
      %p41 = scmp.ne.s32.totalorder %s30, %s33
      %p42 = scmp.eq.s32.totalorder %s25, 1
      %p43 = por %p41, %p42
      %p44 = scmp.ne.s32.totalorder %s33, %s34
      %p45 = scmp.eq.s32.totalorder %s25, 0
      %p46 = por %p44, %p45
      %p47 = scmp.ne.s32.totalorder %s33, %s34
      %p48 = scmp.eq.s32.totalorder %s26, 1
      %p49 = por %p47, %p48
      %p51 = scmp.ne.s32.totalorder %s34, %s50
      %p52 = scmp.eq.s32.totalorder %s26, 0
      %p53 = por %p51, %p52
      %s55 = sadd.s32 %s54, 1
      %p58 = scmp.eq.s32.totalorder %s20, 1
      %p59 = scmp.ne.s32.totalorder %s54, %s56
      %p60 = scmp.eq.s32.totalorder %s20, 0
      %p61 = por %p59, %p60
      %p62 = scmp.ne.s32.totalorder %s54, %s56
      %p63 = scmp.eq.s32.totalorder %s25, 1
      %p64 = por %p62, %p63
      %p65 = scmp.ne.s32.totalorder %s56, %s57
      %p66 = scmp.eq.s32.totalorder %s25, 0
      %p67 = por %p65, %p66
      %p68 = scmp.ne.s32.totalorder %s56, %s57
      %p69 = scmp.eq.s32.totalorder %s26, 1
      %p70 = por %p68, %p69
      %p72 = scmp.ne.s32.totalorder %s57, %s71
      %p73 = scmp.eq.s32.totalorder %s26, 0
      %p74 = por %p72, %p73
      %s76 = sadd.s32 %s75, 1
      %p79 = scmp.eq.s32.totalorder %s20, 1
      %p80 = scmp.ne.s32.totalorder %s75, %s77
      %p81 = scmp.eq.s32.totalorder %s20, 0
      %p82 = por %p80, %p81
      %p83 = scmp.ne.s32.totalorder %s75, %s77
      %p84 = scmp.eq.s32.totalorder %s25, 1
      %p85 = por %p83, %p84
      %p86 = scmp.ne.s32.totalorder %s77, %s78
      %p87 = scmp.eq.s32.totalorder %s25, 0
      %p88 = por %p86, %p87
      %p89 = scmp.ne.s32.totalorder %s77, %s78
      %p90 = scmp.eq.s32.totalorder %s26, 1
      %p91 = por %p89, %p90
      %p93 = scmp.ne.s32.totalorder %s78, %s92
      %p94 = scmp.eq.s32.totalorder %s26, 0
      %p95 = por %p93, %p94
      %s97 = sadd.s32 %s96, 1
      %p100 = scmp.eq.s32.totalorder %s20, 1
      %p101 = scmp.ne.s32.totalorder %s96, %s98
      %p102 = scmp.eq.s32.totalorder %s20, 0
      %p103 = por %p101, %p102
      %p104 = scmp.ne.s32.totalorder %s96, %s98
      %p105 = scmp.eq.s32.totalorder %s25, 1
      %p106 = por %p104, %p105
      %p107 = scmp.ne.s32.totalorder %s98, %s99
      %p108 = scmp.eq.s32.totalorder %s25, 0
      %p109 = por %p107, %p108
      %p110 = scmp.ne.s32.totalorder %s98, %s99
      %p111 = scmp.eq.s32.totalorder %s26, 1
      %p112 = por %p110, %p111
      %p114 = scmp.ne.s32.totalorder %s99, %s113
      %p115 = scmp.eq.s32.totalorder %s26, 0
      %p116 = por %p114, %p115
      %s118 = sadd.s32 %s117, 1
      %p121 = scmp.eq.s32.totalorder %s20, 1
      %p122 = scmp.ne.s32.totalorder %s117, %s119
      %p123 = scmp.eq.s32.totalorder %s20, 0
      %p124 = por %p122, %p123
      %p125 = scmp.ne.s32.totalorder %s117, %s119
      %p126 = scmp.eq.s32.totalorder %s25, 1
      %p127 = por %p125, %p126
      %p128 = scmp.ne.s32.totalorder %s119, %s120
      %p129 = scmp.eq.s32.totalorder %s25, 0
      %p130 = por %p128, %p129
      %p131 = scmp.ne.s32.totalorder %s119, %s120
      %p132 = scmp.eq.s32.totalorder %s26, 1
      %p133 = por %p131, %p132
      %p135 = scmp.ne.s32.totalorder %s120, %s134
      %p136 = scmp.eq.s32.totalorder %s26, 0
      %p137 = por %p135, %p136
      %s139 = sadd.s32 %s138, 1
      %p142 = scmp.eq.s32.totalorder %s20, 1
      %p143 = scmp.ne.s32.totalorder %s138, %s140
      %p144 = scmp.eq.s32.totalorder %s20, 0
      %p145 = por %p143, %p144
      %p146 = scmp.ne.s32.totalorder %s138, %s140
      %p147 = scmp.eq.s32.totalorder %s25, 1
      %p148 = por %p146, %p147
      %p149 = scmp.ne.s32.totalorder %s140, %s141
      %p150 = scmp.eq.s32.totalorder %s25, 0
      %p151 = por %p149, %p150
      %p152 = scmp.ne.s32.totalorder %s140, %s141
      %p153 = scmp.eq.s32.totalorder %s26, 1
      %p154 = por %p152, %p153
      %p156 = scmp.ne.s32.totalorder %s141, %s155
      %p157 = scmp.eq.s32.totalorder %s26, 0
      %p158 = por %p156, %p157
      %s160 = sadd.s32 %s159, 1
      %p163 = scmp.eq.s32.totalorder %s20, 1
      %p164 = scmp.ne.s32.totalorder %s159, %s161
      %p165 = scmp.eq.s32.totalorder %s20, 0
      %p166 = por %p164, %p165
      %p167 = scmp.ne.s32.totalorder %s159, %s161
      %p168 = scmp.eq.s32.totalorder %s25, 1
      %p169 = por %p167, %p168
      %p170 = scmp.ne.s32.totalorder %s161, %s162
      %p171 = scmp.eq.s32.totalorder %s25, 0
      %p172 = por %p170, %p171
      %p173 = scmp.ne.s32.totalorder %s161, %s162
      %p174 = scmp.eq.s32.totalorder %s26, 1
      %p175 = por %p173, %p174
      %p177 = scmp.ne.s32.totalorder %s162, %s176
      %p178 = scmp.eq.s32.totalorder %s26, 0
      %p179 = por %p177, %p178
      %s181 = sadd.s32 %s180, 1
      %p184 = scmp.eq.s32.totalorder %s20, 1
      %p185 = scmp.ne.s32.totalorder %s180, %s182
      %p186 = scmp.eq.s32.totalorder %s20, 0
      %p187 = por %p185, %p186
      %p188 = scmp.ne.s32.totalorder %s180, %s182
      %p189 = scmp.eq.s32.totalorder %s25, 1
      %p190 = por %p188, %p189
      %p191 = scmp.ne.s32.totalorder %s182, %s183
      %p192 = scmp.eq.s32.totalorder %s25, 0
      %p193 = por %p191, %p192
      %p194 = scmp.ne.s32.totalorder %s182, %s183
      %p195 = scmp.eq.s32.totalorder %s26, 1
      %p196 = por %p194, %p195
      %p198 = scmp.ne.s32.totalorder %s183, %s197
      %p199 = scmp.eq.s32.totalorder %s26, 0
      %p200 = por %p198, %p199
      %s202 = sadd.s32 %s201, 1
      %p205 = scmp.eq.s32.totalorder %s20, 1
      %p206 = scmp.ne.s32.totalorder %s201, %s203
      %p207 = scmp.eq.s32.totalorder %s20, 0
      %p208 = por %p206, %p207
      %p209 = scmp.ne.s32.totalorder %s201, %s203
      %p210 = scmp.eq.s32.totalorder %s25, 1
      %p211 = por %p209, %p210
      %p212 = scmp.ne.s32.totalorder %s203, %s204
      %p213 = scmp.eq.s32.totalorder %s25, 0
      %p214 = por %p212, %p213
      %p215 = scmp.ne.s32.totalorder %s203, %s204
      %p216 = scmp.eq.s32.totalorder %s26, 1
      %p217 = por %p215, %p216
      %p219 = scmp.ne.s32.totalorder %s204, %s218
      %p220 = scmp.eq.s32.totalorder %s26, 0
      %p221 = por %p219, %p220
      %s223 = sadd.s32 %s222, 1
      %p226 = scmp.eq.s32.totalorder %s20, 1
      %p227 = scmp.ne.s32.totalorder %s222, %s224
      %p228 = scmp.eq.s32.totalorder %s20, 0
      %p229 = por %p227, %p228
      %p230 = scmp.ne.s32.totalorder %s222, %s224
      %p231 = scmp.eq.s32.totalorder %s25, 1
      %p232 = por %p230, %p231
      %p233 = scmp.ne.s32.totalorder %s224, %s225
      %p234 = scmp.eq.s32.totalorder %s25, 0
      %p235 = por %p233, %p234
      %p236 = scmp.ne.s32.totalorder %s224, %s225
      %p237 = scmp.eq.s32.totalorder %s26, 1
      %p238 = por %p236, %p237
      %p240 = scmp.ne.s32.totalorder %s225, %s239
      %p241 = scmp.eq.s32.totalorder %s26, 0
      %p242 = por %p240, %p241
      %s244 = sadd.s32 %s243, 1
      %p247 = scmp.eq.s32.totalorder %s20, 1
      %p248 = scmp.ne.s32.totalorder %s243, %s245
      %p249 = scmp.eq.s32.totalorder %s20, 0
      %p250 = por %p248, %p249
      %p251 = scmp.ne.s32.totalorder %s243, %s245
      %p252 = scmp.eq.s32.totalorder %s25, 1
      %p253 = por %p251, %p252
      %p254 = scmp.ne.s32.totalorder %s245, %s246
      %p255 = scmp.eq.s32.totalorder %s25, 0
      %p256 = por %p254, %p255
      %p257 = scmp.ne.s32.totalorder %s245, %s246
      %p258 = scmp.eq.s32.totalorder %s26, 1
      %p259 = por %p257, %p258
      %p261 = scmp.ne.s32.totalorder %s246, %s260
      %p262 = scmp.eq.s32.totalorder %s26, 0
      %p263 = por %p261, %p262
      %s265 = sadd.s32 %s264, 1
      %p268 = scmp.eq.s32.totalorder %s20, 1
      %p269 = scmp.ne.s32.totalorder %s264, %s266
      %p270 = scmp.eq.s32.totalorder %s20, 0
      %p271 = por %p269, %p270
      %p272 = scmp.ne.s32.totalorder %s264, %s266
      %p273 = scmp.eq.s32.totalorder %s25, 1
      %p274 = por %p272, %p273
      %p275 = scmp.ne.s32.totalorder %s266, %s267
      %p276 = scmp.eq.s32.totalorder %s25, 0
      %p277 = por %p275, %p276
      %p278 = scmp.ne.s32.totalorder %s266, %s267
      %p279 = scmp.eq.s32.totalorder %s26, 1
      %p280 = por %p278, %p279
      %p282 = scmp.ne.s32.totalorder %s267, %s281
      %p283 = scmp.eq.s32.totalorder %s26, 0
      %p284 = por %p282, %p283
      %s285 = ssub.s32 %s20, %s27
      %p286 = scmp.eq.s32.totalorder %s285, 0
      %s288 = sadd.s32 %s287, 1
      %s289 = scalar_select %p286, %s287, %s288
      %p292 = pneg %p286
      %p293 = scmp.eq.s32.totalorder %s20, 1
      %p294 = por %p292, %p293
      %p295 = scmp.ne.s32.totalorder %s287, %s290
      %p296 = scmp.eq.s32.totalorder %s20, 0
      %p297 = por %p295, %p296
      %p298 = scmp.ne.s32.totalorder %s287, %s290
      %p299 = scmp.eq.s32.totalorder %s25, 1
      %p300 = por %p298, %p299
      %p301 = scmp.ne.s32.totalorder %s290, %s291
      %p302 = scmp.eq.s32.totalorder %s25, 0
      %p303 = por %p301, %p302
      %p304 = scmp.ne.s32.totalorder %s290, %s291
      %p305 = scmp.eq.s32.totalorder %s26, 1
      %p306 = por %p304, %p305
      %p308 = scmp.ne.s32.totalorder %s291, %s307
      %p309 = scmp.eq.s32.totalorder %s26, 0
      %p310 = por %p308, %p309
      %p311 = scmp.le.s32.totalorder 1, %s20
      %p312 = scmp.lt.s32.totalorder %s20, 3
      %p313 = pnand %p311, %p312
      %p314 = pneg %p313
      // Predicated region
      $region9: #{next_word_forward.1} parent=5 // pred_check
        _
      $region10: #{next_word_forward.1} parent=5 // pred_check_branch
        %316 = sbr.rel (%p313) target = $region12
      $region11: #{next_word_forward.1} parent=5 // pred_region
        %s317 = ssub.s32 %s20, 1
        // Predicated region
        $region13: #{next_word_forward.1} parent=11 // pred_check
          %p318 = pneg %p67
        $region14: #{next_word_forward.1} parent=11 // pred_check_branch
          %320 = sbr.rel (%p318) target = $region16
        $region15: #{next_word_forward.1} parent=11 // pred_region
          _
        $region16: #{next_word_forward.1} parent=11 // pred_fallthru
          _
        // Predicated region
        $region17: #{next_word_forward.1} parent=11 // pred_check
          %p321 = pneg %p88
        $region18: #{next_word_forward.1} parent=11 // pred_check_branch
          %323 = sbr.rel (%p321) target = $region20
        $region19: #{next_word_forward.1} parent=11 // pred_region
          _
        $region20: #{next_word_forward.1} parent=11 // pred_fallthru
          _
        // Predicated region
        $region21: #{next_word_forward.1} parent=11 // pred_check
          %p324 = pneg %p109
        $region22: #{next_word_forward.1} parent=11 // pred_check_branch
          %326 = sbr.rel (%p324) target = $region24
        $region23: #{next_word_forward.1} parent=11 // pred_region
          _
        $region24: #{next_word_forward.1} parent=11 // pred_fallthru
          _
        // Predicated region
        $region25: #{next_word_forward.1} parent=11 // pred_check
          %p327 = pneg %p130
        $region26: #{next_word_forward.1} parent=11 // pred_check_branch
          %329 = sbr.rel (%p327) target = $region28
        $region27: #{next_word_forward.1} parent=11 // pred_region
          _
        $region28: #{next_word_forward.1} parent=11 // pred_fallthru
          _
        // Predicated region
        $region29: #{next_word_forward.1} parent=11 // pred_check
          %p330 = pneg %p151
        $region30: #{next_word_forward.1} parent=11 // pred_check_branch
          %332 = sbr.rel (%p330) target = $region32
        $region31: #{next_word_forward.1} parent=11 // pred_region
          _
        $region32: #{next_word_forward.1} parent=11 // pred_fallthru
          _
        // Predicated region
        $region33: #{next_word_forward.1} parent=11 // pred_check
          %p333 = pneg %p172
        $region34: #{next_word_forward.1} parent=11 // pred_check_branch
          %335 = sbr.rel (%p333) target = $region36
        $region35: #{next_word_forward.1} parent=11 // pred_region
          %s337 = ssub.s32 2048, 2048
          %338 = vsyncadd [#allocation3], %s337
          %s339 = sshll.u32 [#allocation2], 4
          %s340 = int_to_ptr.vmem [resolvable:$true] %s339
          %345 = dma.hbm_to_vmem [thread:$0]  %s6, 2048, %s340, [#allocation3], 128, 128, 8
        $region36: #{next_word_forward.1} parent=11 // pred_fallthru
          _
        // Predicated region
        $region37: #{next_word_forward.1} parent=11 // pred_check
          %p346 = pneg %p193
        $region38: #{next_word_forward.1} parent=11 // pred_check_branch
          %348 = sbr.rel (%p346) target = $region40
        $region39: #{next_word_forward.1} parent=11 // pred_region
          _
        $region40: #{next_word_forward.1} parent=11 // pred_fallthru
          _
        // Predicated region
        $region41: #{next_word_forward.1} parent=11 // pred_check
          %p349 = pneg %p214
        $region42: #{next_word_forward.1} parent=11 // pred_check_branch
          %351 = sbr.rel (%p349) target = $region44
        $region43: #{next_word_forward.1} parent=11 // pred_region
          %s353 = ssub.s32 2048, 2048
          %354 = vsyncadd [#allocation5], %s353
          %s355 = sshll.u32 [#allocation4], 4
          %s356 = int_to_ptr.vmem [resolvable:$true] %s355
          %361 = dma.hbm_to_vmem [thread:$0]  %s8, 2048, %s356, [#allocation5], 128, 128, 8
        $region44: #{next_word_forward.1} parent=11 // pred_fallthru
          _
        // Predicated region
        $region45: #{next_word_forward.1} parent=11 // pred_check
          %p362 = pneg %p235
        $region46: #{next_word_forward.1} parent=11 // pred_check_branch
          %364 = sbr.rel (%p362) target = $region48
        $region47: #{next_word_forward.1} parent=11 // pred_region
          _
        $region48: #{next_word_forward.1} parent=11 // pred_fallthru
          _
        // Predicated region
        $region49: #{next_word_forward.1} parent=11 // pred_check
          %p365 = pneg %p256
        $region50: #{next_word_forward.1} parent=11 // pred_check_branch
          %367 = sbr.rel (%p365) target = $region52
        $region51: #{next_word_forward.1} parent=11 // pred_region
          %s369 = ssub.s32 2048, 2048
          %370 = vsyncadd [#allocation5], %s369
          %s371 = sshll.u32 [#allocation6], 4
          %s372 = int_to_ptr.vmem [resolvable:$true] %s371
          %377 = dma.hbm_to_vmem [thread:$0]  %s10, 2048, %s372, [#allocation5], 128, 128, 8
        $region52: #{next_word_forward.1} parent=11 // pred_fallthru
          _
        // Predicated region
        $region53: #{next_word_forward.1} parent=11 // pred_check
          %p378 = pneg %p277
        $region54: #{next_word_forward.1} parent=11 // pred_check_branch
          %380 = sbr.rel (%p378) target = $region56
        $region55: #{next_word_forward.1} parent=11 // pred_region
          _
        $region56: #{next_word_forward.1} parent=11 // pred_fallthru
          _
      $region12: #{next_word_forward.1} parent=5 // pred_fallthru
        _
      %p381 = scmp.lt.s32.totalorder %s20, 2
      // Predicated region
      $region57: #{next_word_forward.1} parent=5 // pred_check
        %p382 = pneg %p381
      $region58: #{next_word_forward.1} parent=5 // pred_check_branch
        %384 = sbr.rel (%p382) target = $region60
      $region59: #{next_word_forward.1} parent=5 // pred_region
        // Predicated region
        $region61: #{next_word_forward.1} parent=59 // pred_check
          %p385 = pneg %p40
        $region62: #{next_word_forward.1} parent=59 // pred_check_branch
          %387 = sbr.rel (%p385) target = $region64
        $region63: #{next_word_forward.1} parent=59 // pred_region
          %s388 = smul.u32 16, %s20
          %p389 = scmp.lt.s32.totalorder %s388, 31
          %s390 = scalar_select %p389, %s388, 31
          %s391 = smul.addr %s390, 8
          %s392 = scalar_lea.vmem %s0, %s391
          %s393 = smul.u32 16, %s20
        $region64: #{next_word_forward.1} parent=59 // pred_fallthru
          _
      $region60: #{next_word_forward.1} parent=5 // pred_fallthru
        _
      %p394 = scmp.le.s32.totalorder 1, %s20
      %p395 = scmp.lt.s32.totalorder %s20, 3
      %p396 = pnand %p394, %p395
      %p397 = pneg %p396
      // Predicated region
      $region65: #{next_word_forward.1} parent=5 // pred_check
        _
      $region66: #{next_word_forward.1} parent=5 // pred_check_branch
        %399 = sbr.rel (%p396) target = $region68
      $region67: #{next_word_forward.1} parent=5 // pred_region
        %s400 = ssub.s32 %s20, 1
        // Predicated region
        $region69: #{next_word_forward.1} parent=67 // pred_check
          %p401 = pneg %p172
        $region70: #{next_word_forward.1} parent=67 // pred_check_branch
          %403 = sbr.rel (%p401) target = $region72
        $region71: #{next_word_forward.1} parent=67 // pred_region
          %404 = dma.done [#allocation3], 2048
        $region72: #{next_word_forward.1} parent=67 // pred_fallthru
          _
        // Predicated region
        $region73: #{next_word_forward.1} parent=67 // pred_check
          %p405 = pneg %p214
        $region74: #{next_word_forward.1} parent=67 // pred_check_branch
          %407 = sbr.rel (%p405) target = $region76
        $region75: #{next_word_forward.1} parent=67 // pred_region
          %408 = dma.done [#allocation5], 2048
        $region76: #{next_word_forward.1} parent=67 // pred_fallthru
          _
        // Predicated region
        $region77: #{next_word_forward.1} parent=67 // pred_check
          %p409 = pneg %p256
        $region78: #{next_word_forward.1} parent=67 // pred_check_branch
          %411 = sbr.rel (%p409) target = $region80
        $region79: #{next_word_forward.1} parent=67 // pred_region
          %412 = dma.done [#allocation5], 2048
        $region80: #{next_word_forward.1} parent=67 // pred_fallthru
          _
        %s413 = smul.u32 16, %s25
        %p414 = scmp.lt.s32.totalorder %s413, 31
        %s415 = scalar_select %p414, %s413, 31
        %s416 = smul.addr %s415, 8
        %s417 = scalar_lea.vmem %s0, %s416
        %p418 = pneg %p46
        %p419 = pneg %p43
        %p420 = pneg %p67
        %p421 = pneg %p64
        %p422 = pneg %p88
        %p423 = pneg %p85
        %p424 = pneg %p109
        %p425 = pneg %p106
        %p426 = pneg %p130
        %p427 = pneg %p127
        %p428 = pneg %p151
        %p429 = pneg %p148
        %p430 = pneg %p172
        %p431 = pneg %p169
        %p432 = pneg %p193
        %p433 = pneg %p190
        %p434 = pneg %p214
        %p435 = pneg %p211
        %p436 = pneg %p235
        %p437 = pneg %p232
        %p438 = pneg %p256
        %p439 = pneg %p253
        %p440 = pneg %p277
        %p441 = pneg %p274
        %p442 = pneg %p303
        %p443 = pneg %p300
        %s444 = smul.u32 16, %s25
        %p445 = scmp.lt.s32.totalorder %s444, 31
        %s446 = scalar_select %p445, %s444, 31
        %s447 = smul.addr %s446, 8
        %s448 = scalar_lea.vmem %s12, %s447
        %s449 = smul.u32 16, %s25
        %p450 = scmp.lt.s32.totalorder %s449, 31
        %s451 = scalar_select %p450, %s449, 31
        %s452 = smul.addr %s451, 8
        %s453 = scalar_lea.vmem %s0, %s452
        %s454 = smul.u32 16, %s25
        %s455 = smul.u32 16, %s25
        %p456 = scmp.lt.s32.totalorder %s455, 31
        %s457 = scalar_select %p456, %s455, 31
        %s458 = smul.addr %s457, 8
        %s459 = scalar_lea.vmem %s12, %s458
        %s460 = smul.u32 16, %s25
        %v461 = vld [vmem:[%s453] sm:$0xff]
        %v462 = vld [vmem:[%s453 + $0x8] sm:$0xff]
        %v463 = vld [vmem:[%s453 + $0x10] sm:$0xff]
        %v464 = vld [vmem:[%s453 + $0x18] sm:$0xff]
        %v465 = vld [vmem:[%s453 + $0x20] sm:$0xff]
        %v466 = vld [vmem:[%s453 + $0x28] sm:$0xff]
        %v467 = vld [vmem:[%s453 + $0x30] sm:$0xff]
        %v468 = vld [vmem:[%s453 + $0x38] sm:$0xff]
        %v469 = vld [vmem:[%s453 + $0x40] sm:$0xff]
        %v470 = vld [vmem:[%s453 + $0x48] sm:$0xff]
        %v471 = vld [vmem:[%s453 + $0x50] sm:$0xff]
        %v472 = vld [vmem:[%s453 + $0x58] sm:$0xff]
        %v473 = vld [vmem:[%s453 + $0x60] sm:$0xff]
        %v474 = vld [vmem:[%s453 + $0x68] sm:$0xff]
        %v475 = vld [vmem:[%s453 + $0x70] sm:$0xff]
        %v476 = vld [vmem:[%s453 + $0x78] sm:$0xff]
        %v477 = vcvt.s32.f32 %v461
        %v478 = vcvt.s32.f32 %v462
        %v479 = vcvt.s32.f32 %v463
        %v480 = vcvt.s32.f32 %v464
        %v481 = vcvt.s32.f32 %v465
        %v482 = vcvt.s32.f32 %v466
        %v483 = vcvt.s32.f32 %v467
        %v484 = vcvt.s32.f32 %v468
        %v485 = vcvt.s32.f32 %v469
        %v486 = vcvt.s32.f32 %v470
        %v487 = vcvt.s32.f32 %v471
        %v488 = vcvt.s32.f32 %v472
        %v489 = vcvt.s32.f32 %v473
        %v490 = vcvt.s32.f32 %v474
        %v491 = vcvt.s32.f32 %v475
        %v492 = vcvt.s32.f32 %v476
        %v493 = vld [vmem:[%s1] sm:$0xff]
        %v494 = vld [vmem:[%s1 + $0x8] sm:$0xff]
        %v495 = vld [vmem:[%s1 + $0x10] sm:$0xff]
        %v496 = vld [vmem:[%s1 + $0x18] sm:$0xff]
        %vm497 = vcmask 64512
        %v499 = vsel %vm497, %v477, 0
        %v502 = vsel %vm497, %v478, 0
        %v505 = vsel %vm497, %v479, 0
        %v508 = vsel %vm497, %v480, 0
        %v511 = vsel %vm497, %v481, 0
        %v514 = vsel %vm497, %v482, 0
        %v517 = vsel %vm497, %v483, 0
        %v520 = vsel %vm497, %v484, 0
        %v523 = vsel %vm497, %v485, 0
        %v526 = vsel %vm497, %v486, 0
        %v529 = vsel %vm497, %v487, 0
        %v532 = vsel %vm497, %v488, 0
        %v535 = vsel %vm497, %v489, 0
        %v538 = vsel %vm497, %v490, 0
        %v541 = vsel %vm497, %v491, 0
        %v544 = vsel %vm497, %v492, 0
        %546 = vmatprep.subr.mxu0 0.0
        %547 = vmatpush1.msra.mxu0 0.0
        %548 = vmatprep.subr.mxu0 0.0
        %549 = vmatpush1.msra.mxu0 0.0
        %550 = vmatprep.subr.mxu0 0.0
        %551 = vmatpush1.msra.mxu0 0.0
        %552 = vmatprep.subr.mxu0 0.0
        %553 = vmatpush1.msra.mxu0 0.0
        %554 = vmatprep.subr.mxu0 0.0
        %555 = vmatpush1.msra.mxu0 0.0
        %556 = vmatprep.subr.mxu0 0.0
        %557 = vmatpush1.msra.mxu0 0.0
        %558 = vmatprep.subr.mxu0 0.0
        %559 = vmatpush1.msra.mxu0 0.0
        %560 = vmatprep.subr.mxu0 0.0
        %561 = vmatpush1.msra.mxu0 0.0
        %562 = vmatprep.subr.mxu0 0.0
        %563 = vmatpush1.msra.mxu0 0.0
        %564 = vmatprep.subr.mxu0 0.0
        %565 = vmatpush1.msra.mxu0 0.0
        %566 = vmatprep.subr.mxu0 0.0
        %567 = vmatpush1.msra.mxu0 0.0
        %568 = vmatprep.subr.mxu0 0.0
        %569 = vmatpush1.msra.mxu0 0.0
        %570 = vmatprep.subr.mxu0 0.0
        %571 = vmatpush1.msra.mxu0 0.0
        %572 = vmatprep.subr.mxu0 0.0
        %573 = vmatpush1.msra.mxu0 0.0
        %574 = vmatprep.subr.mxu0 0.0
        %575 = vmatpush1.msra.mxu0 0.0
        %576 = vmatprep.subr.mxu0 %v494
        %577 = vmatpush1.msra.mxu0 %v493
        %578 = vmatprep.subr.mxu0 0.0
        %579 = vmatpush2.msra.mxu0 0.0
        %580 = vmatprep.subr.mxu0 0.0
        %581 = vmatpush2.msra.mxu0 0.0
        %582 = vmatprep.subr.mxu0 0.0
        %583 = vmatpush2.msra.mxu0 0.0
        %584 = vmatprep.subr.mxu0 0.0
        %585 = vmatpush2.msra.mxu0 0.0
        %586 = vmatprep.subr.mxu0 0.0
        %587 = vmatpush2.msra.mxu0 0.0
        %588 = vmatprep.subr.mxu0 0.0
        %589 = vmatpush2.msra.mxu0 0.0
        %590 = vmatprep.subr.mxu0 0.0
        %591 = vmatpush2.msra.mxu0 0.0
        %592 = vmatprep.subr.mxu0 0.0
        %593 = vmatpush2.msra.mxu0 0.0
        %594 = vmatprep.subr.mxu0 0.0
        %595 = vmatpush2.msra.mxu0 0.0
        %596 = vmatprep.subr.mxu0 0.0
        %597 = vmatpush2.msra.mxu0 0.0
        %598 = vmatprep.subr.mxu0 0.0
        %599 = vmatpush2.msra.mxu0 0.0
        %600 = vmatprep.subr.mxu0 0.0
        %601 = vmatpush2.msra.mxu0 0.0
        %602 = vmatprep.subr.mxu0 0.0
        %603 = vmatpush2.msra.mxu0 0.0
        %604 = vmatprep.subr.mxu0 0.0
        %605 = vmatpush2.msra.mxu0 0.0
        %606 = vmatprep.subr.mxu0 0.0
        %607 = vmatpush2.msra.mxu0 0.0
        %608 = vmatprep.subr.mxu0 0.0
        %609 = vmatpush2.msra.mxu0 0.0
        %610 = vmatprep.mubr.f32.mxu0 0.0
        %611 = vmatmul.mubr.f32.gmra.mxu0 %v499
        %v612 = vpop.f32.mrf.mxu0
        %v613 = vadd.f32 0.0, %v612
        %v614 = vpop.f32.mrf.mxu0
        %v615 = vadd.f32 0.0, %v614
        %616 = vmatprep.mubr.f32.mxu0 0.0
        %617 = vmatmul.mubr.f32.gmra.mxu0 %v502
        %v618 = vpop.f32.mrf.mxu0
        %v619 = vadd.f32 0.0, %v618
        %v620 = vpop.f32.mrf.mxu0
        %v621 = vadd.f32 0.0, %v620
        %622 = vmatprep.mubr.f32.mxu0 0.0
        %623 = vmatmul.mubr.f32.gmra.mxu0 %v505
        %v624 = vpop.f32.mrf.mxu0
        %v625 = vadd.f32 0.0, %v624
        %v626 = vpop.f32.mrf.mxu0
        %v627 = vadd.f32 0.0, %v626
        %628 = vmatprep.mubr.f32.mxu0 0.0
        %629 = vmatmul.mubr.f32.gmra.mxu0 %v508
        %v630 = vpop.f32.mrf.mxu0
        %v631 = vadd.f32 0.0, %v630
        %v632 = vpop.f32.mrf.mxu0
        %v633 = vadd.f32 0.0, %v632
        %634 = vmatprep.mubr.f32.mxu0 0.0
        %635 = vmatmul.mubr.f32.gmra.mxu0 %v511
        %v636 = vpop.f32.mrf.mxu0
        %v637 = vadd.f32 0.0, %v636
        %v638 = vpop.f32.mrf.mxu0
        %v639 = vadd.f32 0.0, %v638
        %640 = vmatprep.mubr.f32.mxu0 0.0
        %641 = vmatmul.mubr.f32.gmra.mxu0 %v514
        %v642 = vpop.f32.mrf.mxu0
        %v643 = vadd.f32 0.0, %v642
        %v644 = vpop.f32.mrf.mxu0
        %v645 = vadd.f32 0.0, %v644
        %646 = vmatprep.mubr.f32.mxu0 0.0
        %647 = vmatmul.mubr.f32.gmra.mxu0 %v517
        %v648 = vpop.f32.mrf.mxu0
        %v649 = vadd.f32 0.0, %v648
        %v650 = vpop.f32.mrf.mxu0
        %v651 = vadd.f32 0.0, %v650
        %652 = vmatprep.mubr.f32.mxu0 0.0
        %653 = vmatmul.mubr.f32.gmra.mxu0 %v520
        %v654 = vpop.f32.mrf.mxu0
        %v655 = vadd.f32 0.0, %v654
        %v656 = vpop.f32.mrf.mxu0
        %v657 = vadd.f32 0.0, %v656
        %658 = vmatprep.mubr.f32.mxu0 0.0
        %659 = vmatmul.mubr.f32.gmra.mxu0 %v523
        %v660 = vpop.f32.mrf.mxu0
        %v661 = vadd.f32 0.0, %v660
        %v662 = vpop.f32.mrf.mxu0
        %v663 = vadd.f32 0.0, %v662
        %664 = vmatprep.mubr.f32.mxu0 0.0
        %665 = vmatmul.mubr.f32.gmra.mxu0 %v526
        %v666 = vpop.f32.mrf.mxu0
        %v667 = vadd.f32 0.0, %v666
        %v668 = vpop.f32.mrf.mxu0
        %v669 = vadd.f32 0.0, %v668
        %670 = vmatprep.mubr.f32.mxu0 0.0
        %671 = vmatmul.mubr.f32.gmra.mxu0 %v529
        %v672 = vpop.f32.mrf.mxu0
        %v673 = vadd.f32 0.0, %v672
        %v674 = vpop.f32.mrf.mxu0
        %v675 = vadd.f32 0.0, %v674
        %676 = vmatprep.mubr.f32.mxu0 0.0
        %677 = vmatmul.mubr.f32.gmra.mxu0 %v532
        %v678 = vpop.f32.mrf.mxu0
        %v679 = vadd.f32 0.0, %v678
        %v680 = vpop.f32.mrf.mxu0
        %v681 = vadd.f32 0.0, %v680
        %682 = vmatprep.mubr.f32.mxu0 0.0
        %683 = vmatmul.mubr.f32.gmra.mxu0 %v535
        %v684 = vpop.f32.mrf.mxu0
        %v685 = vadd.f32 0.0, %v684
        %v686 = vpop.f32.mrf.mxu0
        %v687 = vadd.f32 0.0, %v686
        %688 = vmatprep.mubr.f32.mxu0 0.0
        %689 = vmatmul.mubr.f32.gmra.mxu0 %v538
        %v690 = vpop.f32.mrf.mxu0
        %v691 = vadd.f32 0.0, %v690
        %v692 = vpop.f32.mrf.mxu0
        %v693 = vadd.f32 0.0, %v692
        %694 = vmatprep.mubr.f32.mxu0 0.0
        %695 = vmatmul.mubr.f32.gmra.mxu0 %v541
        %v696 = vpop.f32.mrf.mxu0
        %v697 = vadd.f32 0.0, %v696
        %v698 = vpop.f32.mrf.mxu0
        %v699 = vadd.f32 0.0, %v698
        %700 = vmatprep.mubr.f32.mxu0 0.0
        %701 = vmatmul.mubr.f32.gmra.mxu0 %v544
        %v702 = vpop.f32.mrf.mxu0
        %v703 = vadd.f32 0.0, %v702
        %v704 = vpop.f32.mrf.mxu0
        %v705 = vadd.f32 0.0, %v704
        %706 = vdwg.mxu0
        %707 = vmatprep.subr.mxu0 0.0
        %708 = vmatpush1.msra.mxu0 0.0
        %709 = vmatprep.subr.mxu0 0.0
        %710 = vmatpush1.msra.mxu0 0.0
        %711 = vmatprep.subr.mxu0 0.0
        %712 = vmatpush1.msra.mxu0 0.0
        %713 = vmatprep.subr.mxu0 0.0
        %714 = vmatpush1.msra.mxu0 0.0
        %715 = vmatprep.subr.mxu0 0.0
        %716 = vmatpush1.msra.mxu0 0.0
        %717 = vmatprep.subr.mxu0 0.0
        %718 = vmatpush1.msra.mxu0 0.0
        %719 = vmatprep.subr.mxu0 0.0
        %720 = vmatpush1.msra.mxu0 0.0
        %721 = vmatprep.subr.mxu0 0.0
        %722 = vmatpush1.msra.mxu0 0.0
        %723 = vmatprep.subr.mxu0 0.0
        %724 = vmatpush1.msra.mxu0 0.0
        %725 = vmatprep.subr.mxu0 0.0
        %726 = vmatpush1.msra.mxu0 0.0
        %727 = vmatprep.subr.mxu0 0.0
        %728 = vmatpush1.msra.mxu0 0.0
        %729 = vmatprep.subr.mxu0 0.0
        %730 = vmatpush1.msra.mxu0 0.0
        %731 = vmatprep.subr.mxu0 0.0
        %732 = vmatpush1.msra.mxu0 0.0
        %733 = vmatprep.subr.mxu0 0.0
        %734 = vmatpush1.msra.mxu0 0.0
        %735 = vmatprep.subr.mxu0 0.0
        %736 = vmatpush1.msra.mxu0 0.0
        %737 = vmatprep.subr.mxu0 %v496
        %738 = vmatpush1.msra.mxu0 %v495
        %739 = vmatprep.subr.mxu0 0.0
        %740 = vmatpush2.msra.mxu0 0.0
        %741 = vmatprep.subr.mxu0 0.0
        %742 = vmatpush2.msra.mxu0 0.0
        %743 = vmatprep.subr.mxu0 0.0
        %744 = vmatpush2.msra.mxu0 0.0
        %745 = vmatprep.subr.mxu0 0.0
        %746 = vmatpush2.msra.mxu0 0.0
        %747 = vmatprep.subr.mxu0 0.0
        %748 = vmatpush2.msra.mxu0 0.0
        %749 = vmatprep.subr.mxu0 0.0
        %750 = vmatpush2.msra.mxu0 0.0
        %751 = vmatprep.subr.mxu0 0.0
        %752 = vmatpush2.msra.mxu0 0.0
        %753 = vmatprep.subr.mxu0 0.0
        %754 = vmatpush2.msra.mxu0 0.0
        %755 = vmatprep.subr.mxu0 0.0
        %756 = vmatpush2.msra.mxu0 0.0
        %757 = vmatprep.subr.mxu0 0.0
        %758 = vmatpush2.msra.mxu0 0.0
        %759 = vmatprep.subr.mxu0 0.0
        %760 = vmatpush2.msra.mxu0 0.0
        %761 = vmatprep.subr.mxu0 0.0
        %762 = vmatpush2.msra.mxu0 0.0
        %763 = vmatprep.subr.mxu0 0.0
        %764 = vmatpush2.msra.mxu0 0.0
        %765 = vmatprep.subr.mxu0 0.0
        %766 = vmatpush2.msra.mxu0 0.0
        %767 = vmatprep.subr.mxu0 0.0
        %768 = vmatpush2.msra.mxu0 0.0
        %769 = vmatprep.subr.mxu0 0.0
        %770 = vmatpush2.msra.mxu0 0.0
        %771 = vmatprep.mubr.f32.mxu0 0.0
        %772 = vmatmul.mubr.f32.gmra.mxu0 %v499
        %v773 = vpop.f32.mrf.mxu0
        %v774 = vadd.f32 0.0, %v773
        %v775 = vpop.f32.mrf.mxu0
        %v776 = vadd.f32 0.0, %v775
        %777 = vmatprep.mubr.f32.mxu0 0.0
        %778 = vmatmul.mubr.f32.gmra.mxu0 %v502
        %v779 = vpop.f32.mrf.mxu0
        %v780 = vadd.f32 0.0, %v779
        %v781 = vpop.f32.mrf.mxu0
        %v782 = vadd.f32 0.0, %v781
        %783 = vmatprep.mubr.f32.mxu0 0.0
        %784 = vmatmul.mubr.f32.gmra.mxu0 %v505
        %v785 = vpop.f32.mrf.mxu0
        %v786 = vadd.f32 0.0, %v785
        %v787 = vpop.f32.mrf.mxu0
        %v788 = vadd.f32 0.0, %v787
        %789 = vmatprep.mubr.f32.mxu0 0.0
        %790 = vmatmul.mubr.f32.gmra.mxu0 %v508
        %v791 = vpop.f32.mrf.mxu0
        %v792 = vadd.f32 0.0, %v791
        %v793 = vpop.f32.mrf.mxu0
        %v794 = vadd.f32 0.0, %v793
        %795 = vmatprep.mubr.f32.mxu0 0.0
        %796 = vmatmul.mubr.f32.gmra.mxu0 %v511
        %v797 = vpop.f32.mrf.mxu0
        %v798 = vadd.f32 0.0, %v797
        %v799 = vpop.f32.mrf.mxu0
        %v800 = vadd.f32 0.0, %v799
        %801 = vmatprep.mubr.f32.mxu0 0.0
        %802 = vmatmul.mubr.f32.gmra.mxu0 %v514
        %v803 = vpop.f32.mrf.mxu0
        %v804 = vadd.f32 0.0, %v803
        %v805 = vpop.f32.mrf.mxu0
        %v806 = vadd.f32 0.0, %v805
        %807 = vmatprep.mubr.f32.mxu0 0.0
        %808 = vmatmul.mubr.f32.gmra.mxu0 %v517
        %v809 = vpop.f32.mrf.mxu0
        %v810 = vadd.f32 0.0, %v809
        %v811 = vpop.f32.mrf.mxu0
        %v812 = vadd.f32 0.0, %v811
        %813 = vmatprep.mubr.f32.mxu0 0.0
        %814 = vmatmul.mubr.f32.gmra.mxu0 %v520
        %v815 = vpop.f32.mrf.mxu0
        %v816 = vadd.f32 0.0, %v815
        %v817 = vpop.f32.mrf.mxu0
        %v818 = vadd.f32 0.0, %v817
        %819 = vmatprep.mubr.f32.mxu0 0.0
        %820 = vmatmul.mubr.f32.gmra.mxu0 %v523
        %v821 = vpop.f32.mrf.mxu0
        %v822 = vadd.f32 0.0, %v821
        %v823 = vpop.f32.mrf.mxu0
        %v824 = vadd.f32 0.0, %v823
        %825 = vmatprep.mubr.f32.mxu0 0.0
        %826 = vmatmul.mubr.f32.gmra.mxu0 %v526
        %v827 = vpop.f32.mrf.mxu0
        %v828 = vadd.f32 0.0, %v827
        %v829 = vpop.f32.mrf.mxu0
        %v830 = vadd.f32 0.0, %v829
        %831 = vmatprep.mubr.f32.mxu0 0.0
        %832 = vmatmul.mubr.f32.gmra.mxu0 %v529
        %v833 = vpop.f32.mrf.mxu0
        %v834 = vadd.f32 0.0, %v833
        %v835 = vpop.f32.mrf.mxu0
        %v836 = vadd.f32 0.0, %v835
        %837 = vmatprep.mubr.f32.mxu0 0.0
        %838 = vmatmul.mubr.f32.gmra.mxu0 %v532
        %v839 = vpop.f32.mrf.mxu0
        %v840 = vadd.f32 0.0, %v839
        %v841 = vpop.f32.mrf.mxu0
        %v842 = vadd.f32 0.0, %v841
        %843 = vmatprep.mubr.f32.mxu0 0.0
        %844 = vmatmul.mubr.f32.gmra.mxu0 %v535
        %v845 = vpop.f32.mrf.mxu0
        %v846 = vadd.f32 0.0, %v845
        %v847 = vpop.f32.mrf.mxu0
        %v848 = vadd.f32 0.0, %v847
        %849 = vmatprep.mubr.f32.mxu0 0.0
        %850 = vmatmul.mubr.f32.gmra.mxu0 %v538
        %v851 = vpop.f32.mrf.mxu0
        %v852 = vadd.f32 0.0, %v851
        %v853 = vpop.f32.mrf.mxu0
        %v854 = vadd.f32 0.0, %v853
        %855 = vmatprep.mubr.f32.mxu0 0.0
        %856 = vmatmul.mubr.f32.gmra.mxu0 %v541
        %v857 = vpop.f32.mrf.mxu0
        %v858 = vadd.f32 0.0, %v857
        %v859 = vpop.f32.mrf.mxu0
        %v860 = vadd.f32 0.0, %v859
        %861 = vmatprep.mubr.f32.mxu0 0.0
        %862 = vmatmul.mubr.f32.gmra.mxu0 %v544
        %v863 = vpop.f32.mrf.mxu0
        %v864 = vadd.f32 0.0, %v863
        %v865 = vpop.f32.mrf.mxu0
        %v866 = vadd.f32 0.0, %v865
        %867 = vdwg.mxu0
        %v868 = vlaneseq
        %v869 = vand.u32 %v868, 127
        %v870 = vadd.s32 %v869, 128
        %v871 = vadd.s32 %v869, 256
        %v872 = vadd.s32 %v869, 384
        %vm873 = vcmp.lt.s32.totalorder %v869, 0
        %v874 = vsub.s32 0, %v869
        %v875 = vsel %vm873, %v874, %v869
        %v876 = vshrl.u32 %v875, 6
        %v877 = vand.u32 %v875, 63
        %v878 = vsub.s32 0, %v877
        %v879 = vsel %vm873, %v878, %v877
        %vm880 = vcmp.lt.s32.totalorder %v870, 0
        %v881 = vsub.s32 0, %v870
        %v882 = vsel %vm880, %v881, %v870
        %v883 = vshrl.u32 %v882, 6
        %v884 = vand.u32 %v882, 63
        %v885 = vsub.s32 0, %v884
        %v886 = vsel %vm880, %v885, %v884
        %vm887 = vcmp.lt.s32.totalorder %v871, 0
        %v888 = vsub.s32 0, %v871
        %v889 = vsel %vm887, %v888, %v871
        %v890 = vshrl.u32 %v889, 6
        %v891 = vand.u32 %v889, 63
        %v892 = vsub.s32 0, %v891
        %v893 = vsel %vm887, %v892, %v891
        %vm894 = vcmp.lt.s32.totalorder %v872, 0
        %v895 = vsub.s32 0, %v872
        %v896 = vsel %vm894, %v895, %v872
        %v897 = vshrl.u32 %v896, 6
        %v898 = vand.u32 %v896, 63
        %v899 = vsub.s32 0, %v898
        %v900 = vsel %vm894, %v899, %v898
        %vm901 = vcmp.ne.s32.totalorder %v879, 0
        %vm902 = vcmp.ne.s32.totalorder %v886, 0
        %vm903 = vcmp.ne.s32.totalorder %v893, 0
        %vm904 = vcmp.ne.s32.totalorder %v900, 0
        %vm905 = vcmp.lt.s32.totalorder %v879, 0
        %vm906 = vcmp.lt.s32.totalorder %v886, 0
        %vm907 = vcmp.lt.s32.totalorder %v893, 0
        %vm908 = vcmp.lt.s32.totalorder %v900, 0
        %vm909 = vmand %vm905, %vm901
        %vm910 = vmand %vm906, %vm902
        %vm911 = vmand %vm907, %vm903
        %vm912 = vmand %vm908, %vm904
        %v913 = vadd.s32 %v879, 64
        %v914 = vadd.s32 %v886, 64
        %v915 = vadd.s32 %v893, 64
        %v916 = vadd.s32 %v900, 64
        %v917 = vsel %vm909, %v913, %v879
        %v918 = vsel %vm910, %v914, %v886
        %v919 = vsel %vm911, %v915, %v893
        %v920 = vsel %vm912, %v916, %v900
        %v921 = vcvt.s32.f32 %v917
        %v922 = vcvt.s32.f32 %v918
        %v923 = vcvt.s32.f32 %v919
        %v924 = vcvt.s32.f32 %v920
        %vm925 = vcmp.eq.f32.partialorder %v613, %v921
        %vm926 = vcmp.eq.f32.partialorder %v615, %v922
        %vm927 = vcmp.eq.f32.partialorder %v774, %v923
        %vm928 = vcmp.eq.f32.partialorder %v776, %v924
        %vm929 = vcmp.eq.f32.partialorder %v619, %v921
        %vm930 = vcmp.eq.f32.partialorder %v621, %v922
        %vm931 = vcmp.eq.f32.partialorder %v780, %v923
        %vm932 = vcmp.eq.f32.partialorder %v782, %v924
        %vm933 = vcmp.eq.f32.partialorder %v625, %v921
        %vm934 = vcmp.eq.f32.partialorder %v627, %v922
        %vm935 = vcmp.eq.f32.partialorder %v786, %v923
        %vm936 = vcmp.eq.f32.partialorder %v788, %v924
        %vm937 = vcmp.eq.f32.partialorder %v631, %v921
        %vm938 = vcmp.eq.f32.partialorder %v633, %v922
        %vm939 = vcmp.eq.f32.partialorder %v792, %v923
        %vm940 = vcmp.eq.f32.partialorder %v794, %v924
        %vm941 = vcmp.eq.f32.partialorder %v637, %v921
        %vm942 = vcmp.eq.f32.partialorder %v639, %v922
        %vm943 = vcmp.eq.f32.partialorder %v798, %v923
        %vm944 = vcmp.eq.f32.partialorder %v800, %v924
        %vm945 = vcmp.eq.f32.partialorder %v643, %v921
        %vm946 = vcmp.eq.f32.partialorder %v645, %v922
        %vm947 = vcmp.eq.f32.partialorder %v804, %v923
        %vm948 = vcmp.eq.f32.partialorder %v806, %v924
        %vm949 = vcmp.eq.f32.partialorder %v649, %v921
        %vm950 = vcmp.eq.f32.partialorder %v651, %v922
        %vm951 = vcmp.eq.f32.partialorder %v810, %v923
        %vm952 = vcmp.eq.f32.partialorder %v812, %v924
        %vm953 = vcmp.eq.f32.partialorder %v655, %v921
        %vm954 = vcmp.eq.f32.partialorder %v657, %v922
        %vm955 = vcmp.eq.f32.partialorder %v816, %v923
        %vm956 = vcmp.eq.f32.partialorder %v818, %v924
        %vm957 = vcmp.eq.f32.partialorder %v661, %v921
        %vm958 = vcmp.eq.f32.partialorder %v663, %v922
        %vm959 = vcmp.eq.f32.partialorder %v822, %v923
        %vm960 = vcmp.eq.f32.partialorder %v824, %v924
        %vm961 = vcmp.eq.f32.partialorder %v667, %v921
        %vm962 = vcmp.eq.f32.partialorder %v669, %v922
        %vm963 = vcmp.eq.f32.partialorder %v828, %v923
        %vm964 = vcmp.eq.f32.partialorder %v830, %v924
        %vm965 = vcmp.eq.f32.partialorder %v673, %v921
        %vm966 = vcmp.eq.f32.partialorder %v675, %v922
        %vm967 = vcmp.eq.f32.partialorder %v834, %v923
        %vm968 = vcmp.eq.f32.partialorder %v836, %v924
        %vm969 = vcmp.eq.f32.partialorder %v679, %v921
        %vm970 = vcmp.eq.f32.partialorder %v681, %v922
        %vm971 = vcmp.eq.f32.partialorder %v840, %v923
        %vm972 = vcmp.eq.f32.partialorder %v842, %v924
        %vm973 = vcmp.eq.f32.partialorder %v685, %v921
        %vm974 = vcmp.eq.f32.partialorder %v687, %v922
        %vm975 = vcmp.eq.f32.partialorder %v846, %v923
        %vm976 = vcmp.eq.f32.partialorder %v848, %v924
        %vm977 = vcmp.eq.f32.partialorder %v691, %v921
        %vm978 = vcmp.eq.f32.partialorder %v693, %v922
        %vm979 = vcmp.eq.f32.partialorder %v852, %v923
        %vm980 = vcmp.eq.f32.partialorder %v854, %v924
        %vm981 = vcmp.eq.f32.partialorder %v697, %v921
        %vm982 = vcmp.eq.f32.partialorder %v699, %v922
        %vm983 = vcmp.eq.f32.partialorder %v858, %v923
        %vm984 = vcmp.eq.f32.partialorder %v860, %v924
        %vm985 = vcmp.eq.f32.partialorder %v703, %v921
        %vm986 = vcmp.eq.f32.partialorder %v705, %v922
        %vm987 = vcmp.eq.f32.partialorder %v864, %v923
        %vm988 = vcmp.eq.f32.partialorder %v866, %v924
        %v989 = vsel %vm925, 1.0, 0.0
        %v990 = vsel %vm926, 1.0, 0.0
        %v991 = vsel %vm927, 1.0, 0.0
        %v992 = vsel %vm928, 1.0, 0.0
        %v993 = vsel %vm929, 1.0, 0.0
        %v994 = vsel %vm930, 1.0, 0.0
        %v995 = vsel %vm931, 1.0, 0.0
        %v996 = vsel %vm932, 1.0, 0.0
        %v997 = vsel %vm933, 1.0, 0.0
        %v998 = vsel %vm934, 1.0, 0.0
        %v999 = vsel %vm935, 1.0, 0.0
        %v1000 = vsel %vm936, 1.0, 0.0
        %v1001 = vsel %vm937, 1.0, 0.0
        %v1002 = vsel %vm938, 1.0, 0.0
        %v1003 = vsel %vm939, 1.0, 0.0
        %v1004 = vsel %vm940, 1.0, 0.0
        %v1005 = vsel %vm941, 1.0, 0.0
        %v1006 = vsel %vm942, 1.0, 0.0
        %v1007 = vsel %vm943, 1.0, 0.0
        %v1008 = vsel %vm944, 1.0, 0.0
        %v1009 = vsel %vm945, 1.0, 0.0
        %v1010 = vsel %vm946, 1.0, 0.0
        %v1011 = vsel %vm947, 1.0, 0.0
        %v1012 = vsel %vm948, 1.0, 0.0
        %v1013 = vsel %vm949, 1.0, 0.0
        %v1014 = vsel %vm950, 1.0, 0.0
        %v1015 = vsel %vm951, 1.0, 0.0
        %v1016 = vsel %vm952, 1.0, 0.0
        %v1017 = vsel %vm953, 1.0, 0.0
        %v1018 = vsel %vm954, 1.0, 0.0
        %v1019 = vsel %vm955, 1.0, 0.0
        %v1020 = vsel %vm956, 1.0, 0.0
        %v1021 = vsel %vm957, 1.0, 0.0
        %v1022 = vsel %vm958, 1.0, 0.0
        %v1023 = vsel %vm959, 1.0, 0.0
        %v1024 = vsel %vm960, 1.0, 0.0
        %v1025 = vsel %vm961, 1.0, 0.0
        %v1026 = vsel %vm962, 1.0, 0.0
        %v1027 = vsel %vm963, 1.0, 0.0
        %v1028 = vsel %vm964, 1.0, 0.0
        %v1029 = vsel %vm965, 1.0, 0.0
        %v1030 = vsel %vm966, 1.0, 0.0
        %v1031 = vsel %vm967, 1.0, 0.0
        %v1032 = vsel %vm968, 1.0, 0.0
        %v1033 = vsel %vm969, 1.0, 0.0
        %v1034 = vsel %vm970, 1.0, 0.0
        %v1035 = vsel %vm971, 1.0, 0.0
        %v1036 = vsel %vm972, 1.0, 0.0
        %v1037 = vsel %vm973, 1.0, 0.0
        %v1038 = vsel %vm974, 1.0, 0.0
        %v1039 = vsel %vm975, 1.0, 0.0
        %v1040 = vsel %vm976, 1.0, 0.0
        %v1041 = vsel %vm977, 1.0, 0.0
        %v1042 = vsel %vm978, 1.0, 0.0
        %v1043 = vsel %vm979, 1.0, 0.0
        %v1044 = vsel %vm980, 1.0, 0.0
        %v1045 = vsel %vm981, 1.0, 0.0
        %v1046 = vsel %vm982, 1.0, 0.0
        %v1047 = vsel %vm983, 1.0, 0.0
        %v1048 = vsel %vm984, 1.0, 0.0
        %v1049 = vsel %vm985, 1.0, 0.0
        %v1050 = vsel %vm986, 1.0, 0.0
        %v1051 = vsel %vm987, 1.0, 0.0
        %v1052 = vsel %vm988, 1.0, 0.0
        %v1053 = vld [vmem:[%s2] sm:$0xff]
        %v1054 = vld [vmem:[%s2 + $0x8] sm:$0xff]
        %v1055 = vld [vmem:[%s2 + $0x10] sm:$0xff]
        %v1056 = vld [vmem:[%s2 + $0x18] sm:$0xff]
        %v1057 = vld [vmem:[%s2 + $0x20] sm:$0xff]
        %v1058 = vld [vmem:[%s2 + $0x28] sm:$0xff]
        %v1059 = vld [vmem:[%s2 + $0x30] sm:$0xff]
        %v1060 = vld [vmem:[%s2 + $0x38] sm:$0xff]
        %v1061 = vld [vmem:[%s2 + $0x40] sm:$0xff]
        %v1062 = vld [vmem:[%s2 + $0x48] sm:$0xff]
        %v1063 = vld [vmem:[%s2 + $0x50] sm:$0xff]
        %v1064 = vld [vmem:[%s2 + $0x58] sm:$0xff]
        %v1065 = vld [vmem:[%s2 + $0x60] sm:$0xff]
        %v1066 = vld [vmem:[%s2 + $0x68] sm:$0xff]
        %v1067 = vld [vmem:[%s2 + $0x70] sm:$0xff]
        %v1068 = vld [vmem:[%s2 + $0x78] sm:$0xff]
        %v1069 = vld [vmem:[%s2 + $0x80] sm:$0xff]
        %v1070 = vld [vmem:[%s2 + $0x88] sm:$0xff]
        %v1071 = vld [vmem:[%s2 + $0x90] sm:$0xff]
        %v1072 = vld [vmem:[%s2 + $0x98] sm:$0xff]
        %v1073 = vld [vmem:[%s2 + $0xa0] sm:$0xff]
        %v1074 = vld [vmem:[%s2 + $0xa8] sm:$0xff]
        %v1075 = vld [vmem:[%s2 + $0xb0] sm:$0xff]
        %v1076 = vld [vmem:[%s2 + $0xb8] sm:$0xff]
        %v1077 = vld [vmem:[%s2 + $0xc0] sm:$0xff]
        %v1078 = vld [vmem:[%s2 + $0xc8] sm:$0xff]
        %v1079 = vld [vmem:[%s2 + $0xd0] sm:$0xff]
        %v1080 = vld [vmem:[%s2 + $0xd8] sm:$0xff]
        %v1081 = vld [vmem:[%s2 + $0xe0] sm:$0xff]
        %v1082 = vld [vmem:[%s2 + $0xe8] sm:$0xff]
        %v1083 = vld [vmem:[%s2 + $0xf0] sm:$0xff]
        %v1084 = vld [vmem:[%s2 + $0xf8] sm:$0xff]
        %v1085 = vld [vmem:[%s2 + $0x100] sm:$0xff]
        %v1086 = vld [vmem:[%s2 + $0x108] sm:$0xff]
        %v1087 = vld [vmem:[%s2 + $0x110] sm:$0xff]
        %v1088 = vld [vmem:[%s2 + $0x118] sm:$0xff]
        %v1089 = vld [vmem:[%s2 + $0x120] sm:$0xff]
        %v1090 = vld [vmem:[%s2 + $0x128] sm:$0xff]
        %v1091 = vld [vmem:[%s2 + $0x130] sm:$0xff]
        %v1092 = vld [vmem:[%s2 + $0x138] sm:$0xff]
        %v1093 = vld [vmem:[%s2 + $0x140] sm:$0xff]
        %v1094 = vld [vmem:[%s2 + $0x148] sm:$0xff]
        %v1095 = vld [vmem:[%s2 + $0x150] sm:$0xff]
        %v1096 = vld [vmem:[%s2 + $0x158] sm:$0xff]
        %v1097 = vld [vmem:[%s2 + $0x160] sm:$0xff]
        %v1098 = vld [vmem:[%s2 + $0x168] sm:$0xff]
        %v1099 = vld [vmem:[%s2 + $0x170] sm:$0xff]
        %v1100 = vld [vmem:[%s2 + $0x178] sm:$0xff]
        %v1101 = vld [vmem:[%s2 + $0x180] sm:$0xff]
        %v1102 = vld [vmem:[%s2 + $0x188] sm:$0xff]
        %v1103 = vld [vmem:[%s2 + $0x190] sm:$0xff]
        %v1104 = vld [vmem:[%s2 + $0x198] sm:$0xff]
        %v1105 = vld [vmem:[%s2 + $0x1a0] sm:$0xff]
        %v1106 = vld [vmem:[%s2 + $0x1a8] sm:$0xff]
        %v1107 = vld [vmem:[%s2 + $0x1b0] sm:$0xff]
        %v1108 = vld [vmem:[%s2 + $0x1b8] sm:$0xff]
        %v1109 = vld [vmem:[%s2 + $0x1c0] sm:$0xff]
        %v1110 = vld [vmem:[%s2 + $0x1c8] sm:$0xff]
        %v1111 = vld [vmem:[%s2 + $0x1d0] sm:$0xff]
        %v1112 = vld [vmem:[%s2 + $0x1d8] sm:$0xff]
        %v1113 = vld [vmem:[%s2 + $0x1e0] sm:$0xff]
        %v1114 = vld [vmem:[%s2 + $0x1e8] sm:$0xff]
        %v1115 = vld [vmem:[%s2 + $0x1f0] sm:$0xff]
        %v1116 = vld [vmem:[%s2 + $0x1f8] sm:$0xff]
        %v1117 = vld [vmem:[%s3] sm:$0x1]
        %v1119 = vlaneseq
        %v1120 = vshrl.u32 %v1119, 7
        %v1121 = vsub.s32 0, %v1120
        %v1122 = vrot.slane %v1117, %v1121
        %1124 = vmatprep.subr.mxu0 0.0
        %1125 = vmatpush1.msra.mxu0 %v1068
        %1126 = vmatprep.subr.mxu0 0.0
        %1127 = vmatpush1.msra.mxu0 %v1067
        %1128 = vmatprep.subr.mxu0 0.0
        %1129 = vmatpush1.msra.mxu0 %v1066
        %1130 = vmatprep.subr.mxu0 0.0
        %1131 = vmatpush1.msra.mxu0 %v1065
        %1132 = vmatprep.subr.mxu0 0.0
        %1133 = vmatpush1.msra.mxu0 %v1064
        %1134 = vmatprep.subr.mxu0 0.0
        %1135 = vmatpush1.msra.mxu0 %v1063
        %1136 = vmatprep.subr.mxu0 0.0
        %1137 = vmatpush1.msra.mxu0 %v1062
        %1138 = vmatprep.subr.mxu0 0.0
        %1139 = vmatpush1.msra.mxu0 %v1061
        %1140 = vmatprep.subr.mxu0 0.0
        %1141 = vmatpush1.msra.mxu0 %v1060
        %1142 = vmatprep.subr.mxu0 0.0
        %1143 = vmatpush1.msra.mxu0 %v1059
        %1144 = vmatprep.subr.mxu0 0.0
        %1145 = vmatpush1.msra.mxu0 %v1058
        %1146 = vmatprep.subr.mxu0 0.0
        %1147 = vmatpush1.msra.mxu0 %v1057
        %1148 = vmatprep.subr.mxu0 0.0
        %1149 = vmatpush1.msra.mxu0 %v1056
        %1150 = vmatprep.subr.mxu0 0.0
        %1151 = vmatpush1.msra.mxu0 %v1055
        %1152 = vmatprep.subr.mxu0 0.0
        %1153 = vmatpush1.msra.mxu0 %v1054
        %1154 = vmatprep.subr.mxu0 0.0
        %1155 = vmatpush1.msra.mxu0 %v1053
        %1156 = vmatprep.subr.mxu0 0.0
        %1157 = vmatpush2.msra.mxu0 %v1084
        %1158 = vmatprep.subr.mxu0 0.0
        %1159 = vmatpush2.msra.mxu0 %v1083
        %1160 = vmatprep.subr.mxu0 0.0
        %1161 = vmatpush2.msra.mxu0 %v1082
        %1162 = vmatprep.subr.mxu0 0.0
        %1163 = vmatpush2.msra.mxu0 %v1081
        %1164 = vmatprep.subr.mxu0 0.0
        %1165 = vmatpush2.msra.mxu0 %v1080
        %1166 = vmatprep.subr.mxu0 0.0
        %1167 = vmatpush2.msra.mxu0 %v1079
        %1168 = vmatprep.subr.mxu0 0.0
        %1169 = vmatpush2.msra.mxu0 %v1078
        %1170 = vmatprep.subr.mxu0 0.0
        %1171 = vmatpush2.msra.mxu0 %v1077
        %1172 = vmatprep.subr.mxu0 0.0
        %1173 = vmatpush2.msra.mxu0 %v1076
        %1174 = vmatprep.subr.mxu0 0.0
        %1175 = vmatpush2.msra.mxu0 %v1075
        %1176 = vmatprep.subr.mxu0 0.0
        %1177 = vmatpush2.msra.mxu0 %v1074
        %1178 = vmatprep.subr.mxu0 0.0
        %1179 = vmatpush2.msra.mxu0 %v1073
        %1180 = vmatprep.subr.mxu0 0.0
        %1181 = vmatpush2.msra.mxu0 %v1072
        %1182 = vmatprep.subr.mxu0 0.0
        %1183 = vmatpush2.msra.mxu0 %v1071
        %1184 = vmatprep.subr.mxu0 0.0
        %1185 = vmatpush2.msra.mxu0 %v1070
        %1186 = vmatprep.subr.mxu0 0.0
        %1187 = vmatpush2.msra.mxu0 %v1069
        %1188 = vmatprep.mubr.f32.mxu0 %v990
        %1189 = vmatmul.mubr.f32.gmra.mxu0 %v989
        %v1190 = vpop.f32.mrf.mxu0
        %v1191 = vadd.f32 %v1122, %v1190
        %v1192 = vpop.f32.mrf.mxu0
        %1193 = vmatprep.mubr.f32.mxu0 %v994
        %1194 = vmatmul.mubr.f32.gmra.mxu0 %v993
        %v1195 = vpop.f32.mrf.mxu0
        %v1196 = vadd.f32 %v1122, %v1195
        %v1197 = vpop.f32.mrf.mxu0
        %1198 = vmatprep.mubr.f32.mxu0 %v998
        %1199 = vmatmul.mubr.f32.gmra.mxu0 %v997
        %v1200 = vpop.f32.mrf.mxu0
        %v1201 = vadd.f32 %v1122, %v1200
        %v1202 = vpop.f32.mrf.mxu0
        %1203 = vmatprep.mubr.f32.mxu0 %v1002
        %1204 = vmatmul.mubr.f32.gmra.mxu0 %v1001
        %v1205 = vpop.f32.mrf.mxu0
        %v1206 = vadd.f32 %v1122, %v1205
        %v1207 = vpop.f32.mrf.mxu0
        %1208 = vmatprep.mubr.f32.mxu0 %v1006
        %1209 = vmatmul.mubr.f32.gmra.mxu0 %v1005
        %v1210 = vpop.f32.mrf.mxu0
        %v1211 = vadd.f32 %v1122, %v1210
        %v1212 = vpop.f32.mrf.mxu0
        %1213 = vmatprep.mubr.f32.mxu0 %v1010
        %1214 = vmatmul.mubr.f32.gmra.mxu0 %v1009
        %v1215 = vpop.f32.mrf.mxu0
        %v1216 = vadd.f32 %v1122, %v1215
        %v1217 = vpop.f32.mrf.mxu0
        %1218 = vmatprep.mubr.f32.mxu0 %v1014
        %1219 = vmatmul.mubr.f32.gmra.mxu0 %v1013
        %v1220 = vpop.f32.mrf.mxu0
        %v1221 = vadd.f32 %v1122, %v1220
        %v1222 = vpop.f32.mrf.mxu0
        %1223 = vmatprep.mubr.f32.mxu0 %v1018
        %1224 = vmatmul.mubr.f32.gmra.mxu0 %v1017
        %v1225 = vpop.f32.mrf.mxu0
        %v1226 = vadd.f32 %v1122, %v1225
        %v1227 = vpop.f32.mrf.mxu0
        %1228 = vmatprep.mubr.f32.mxu0 %v1022
        %1229 = vmatmul.mubr.f32.gmra.mxu0 %v1021
        %v1230 = vpop.f32.mrf.mxu0
        %v1231 = vadd.f32 %v1122, %v1230
        %v1232 = vpop.f32.mrf.mxu0
        %1233 = vmatprep.mubr.f32.mxu0 %v1026
        %1234 = vmatmul.mubr.f32.gmra.mxu0 %v1025
        %v1235 = vpop.f32.mrf.mxu0
        %v1236 = vadd.f32 %v1122, %v1235
        %v1237 = vpop.f32.mrf.mxu0
        %1238 = vmatprep.mubr.f32.mxu0 %v1030
        %1239 = vmatmul.mubr.f32.gmra.mxu0 %v1029
        %v1240 = vpop.f32.mrf.mxu0
        %v1241 = vadd.f32 %v1122, %v1240
        %v1242 = vpop.f32.mrf.mxu0
        %1243 = vmatprep.mubr.f32.mxu0 %v1034
        %1244 = vmatmul.mubr.f32.gmra.mxu0 %v1033
        %v1245 = vpop.f32.mrf.mxu0
        %v1246 = vadd.f32 %v1122, %v1245
        %v1247 = vpop.f32.mrf.mxu0
        %1248 = vmatprep.mubr.f32.mxu0 %v1038
        %1249 = vmatmul.mubr.f32.gmra.mxu0 %v1037
        %v1250 = vpop.f32.mrf.mxu0
        %v1251 = vadd.f32 %v1122, %v1250
        %v1252 = vpop.f32.mrf.mxu0
        %1253 = vmatprep.mubr.f32.mxu0 %v1042
        %1254 = vmatmul.mubr.f32.gmra.mxu0 %v1041
        %v1255 = vpop.f32.mrf.mxu0
        %v1256 = vadd.f32 %v1122, %v1255
        %v1257 = vpop.f32.mrf.mxu0
        %1258 = vmatprep.mubr.f32.mxu0 %v1046
        %1259 = vmatmul.mubr.f32.gmra.mxu0 %v1045
        %v1260 = vpop.f32.mrf.mxu0
        %v1261 = vadd.f32 %v1122, %v1260
        %v1262 = vpop.f32.mrf.mxu0
        %1263 = vmatprep.mubr.f32.mxu0 %v1050
        %1264 = vmatmul.mubr.f32.gmra.mxu0 %v1049
        %v1265 = vpop.f32.mrf.mxu0
        %v1266 = vadd.f32 %v1122, %v1265
        %v1267 = vpop.f32.mrf.mxu0
        %1268 = vdwg.mxu0
        %1269 = vmatprep.subr.mxu0 0.0
        %1270 = vmatpush1.msra.mxu0 %v1100
        %1271 = vmatprep.subr.mxu0 0.0
        %1272 = vmatpush1.msra.mxu0 %v1099
        %1273 = vmatprep.subr.mxu0 0.0
        %1274 = vmatpush1.msra.mxu0 %v1098
        %1275 = vmatprep.subr.mxu0 0.0
        %1276 = vmatpush1.msra.mxu0 %v1097
        %1277 = vmatprep.subr.mxu0 0.0
        %1278 = vmatpush1.msra.mxu0 %v1096
        %1279 = vmatprep.subr.mxu0 0.0
        %1280 = vmatpush1.msra.mxu0 %v1095
        %1281 = vmatprep.subr.mxu0 0.0
        %1282 = vmatpush1.msra.mxu0 %v1094
        %1283 = vmatprep.subr.mxu0 0.0
        %1284 = vmatpush1.msra.mxu0 %v1093
        %1285 = vmatprep.subr.mxu0 0.0
        %1286 = vmatpush1.msra.mxu0 %v1092
        %1287 = vmatprep.subr.mxu0 0.0
        %1288 = vmatpush1.msra.mxu0 %v1091
        %1289 = vmatprep.subr.mxu0 0.0
        %1290 = vmatpush1.msra.mxu0 %v1090
        %1291 = vmatprep.subr.mxu0 0.0
        %1292 = vmatpush1.msra.mxu0 %v1089
        %1293 = vmatprep.subr.mxu0 0.0
        %1294 = vmatpush1.msra.mxu0 %v1088
        %1295 = vmatprep.subr.mxu0 0.0
        %1296 = vmatpush1.msra.mxu0 %v1087
        %1297 = vmatprep.subr.mxu0 0.0
        %1298 = vmatpush1.msra.mxu0 %v1086
        %1299 = vmatprep.subr.mxu0 0.0
        %1300 = vmatpush1.msra.mxu0 %v1085
        %1301 = vmatprep.subr.mxu0 0.0
        %1302 = vmatpush2.msra.mxu0 %v1116
        %1303 = vmatprep.subr.mxu0 0.0
        %1304 = vmatpush2.msra.mxu0 %v1115
        %1305 = vmatprep.subr.mxu0 0.0
        %1306 = vmatpush2.msra.mxu0 %v1114
        %1307 = vmatprep.subr.mxu0 0.0
        %1308 = vmatpush2.msra.mxu0 %v1113
        %1309 = vmatprep.subr.mxu0 0.0
        %1310 = vmatpush2.msra.mxu0 %v1112
        %1311 = vmatprep.subr.mxu0 0.0
        %1312 = vmatpush2.msra.mxu0 %v1111
        %1313 = vmatprep.subr.mxu0 0.0
        %1314 = vmatpush2.msra.mxu0 %v1110
        %1315 = vmatprep.subr.mxu0 0.0
        %1316 = vmatpush2.msra.mxu0 %v1109
        %1317 = vmatprep.subr.mxu0 0.0
        %1318 = vmatpush2.msra.mxu0 %v1108
        %1319 = vmatprep.subr.mxu0 0.0
        %1320 = vmatpush2.msra.mxu0 %v1107
        %1321 = vmatprep.subr.mxu0 0.0
        %1322 = vmatpush2.msra.mxu0 %v1106
        %1323 = vmatprep.subr.mxu0 0.0
        %1324 = vmatpush2.msra.mxu0 %v1105
        %1325 = vmatprep.subr.mxu0 0.0
        %1326 = vmatpush2.msra.mxu0 %v1104
        %1327 = vmatprep.subr.mxu0 0.0
        %1328 = vmatpush2.msra.mxu0 %v1103
        %1329 = vmatprep.subr.mxu0 0.0
        %1330 = vmatpush2.msra.mxu0 %v1102
        %1331 = vmatprep.subr.mxu0 0.0
        %1332 = vmatpush2.msra.mxu0 %v1101
        %1333 = vmatprep.mubr.f32.mxu0 %v992
        %1334 = vmatmul.mubr.f32.gmra.mxu0 %v991
        %v1335 = vpop.f32.mrf.mxu0
        %v1336 = vadd.f32 %v1191, %v1335
        %v1337 = vpop.f32.mrf.mxu0
        %1338 = vmatprep.mubr.f32.mxu0 %v996
        %1339 = vmatmul.mubr.f32.gmra.mxu0 %v995
        %v1340 = vpop.f32.mrf.mxu0
        %v1341 = vadd.f32 %v1196, %v1340
        %v1342 = vpop.f32.mrf.mxu0
        %1343 = vmatprep.mubr.f32.mxu0 %v1000
        %1344 = vmatmul.mubr.f32.gmra.mxu0 %v999
        %v1345 = vpop.f32.mrf.mxu0
        %v1346 = vadd.f32 %v1201, %v1345
        %v1347 = vpop.f32.mrf.mxu0
        %1348 = vmatprep.mubr.f32.mxu0 %v1004
        %1349 = vmatmul.mubr.f32.gmra.mxu0 %v1003
        %v1350 = vpop.f32.mrf.mxu0
        %v1351 = vadd.f32 %v1206, %v1350
        %v1352 = vpop.f32.mrf.mxu0
        %1353 = vmatprep.mubr.f32.mxu0 %v1008
        %1354 = vmatmul.mubr.f32.gmra.mxu0 %v1007
        %v1355 = vpop.f32.mrf.mxu0
        %v1356 = vadd.f32 %v1211, %v1355
        %v1357 = vpop.f32.mrf.mxu0
        %1358 = vmatprep.mubr.f32.mxu0 %v1012
        %1359 = vmatmul.mubr.f32.gmra.mxu0 %v1011
        %v1360 = vpop.f32.mrf.mxu0
        %v1361 = vadd.f32 %v1216, %v1360
        %v1362 = vpop.f32.mrf.mxu0
        %1363 = vmatprep.mubr.f32.mxu0 %v1016
        %1364 = vmatmul.mubr.f32.gmra.mxu0 %v1015
        %v1365 = vpop.f32.mrf.mxu0
        %v1366 = vadd.f32 %v1221, %v1365
        %v1367 = vpop.f32.mrf.mxu0
        %1368 = vmatprep.mubr.f32.mxu0 %v1020
        %1369 = vmatmul.mubr.f32.gmra.mxu0 %v1019
        %v1370 = vpop.f32.mrf.mxu0
        %v1371 = vadd.f32 %v1226, %v1370
        %v1372 = vpop.f32.mrf.mxu0
        %1373 = vmatprep.mubr.f32.mxu0 %v1024
        %1374 = vmatmul.mubr.f32.gmra.mxu0 %v1023
        %v1375 = vpop.f32.mrf.mxu0
        %v1376 = vadd.f32 %v1231, %v1375
        %v1377 = vpop.f32.mrf.mxu0
        %1378 = vmatprep.mubr.f32.mxu0 %v1028
        %1379 = vmatmul.mubr.f32.gmra.mxu0 %v1027
        %v1380 = vpop.f32.mrf.mxu0
        %v1381 = vadd.f32 %v1236, %v1380
        %v1382 = vpop.f32.mrf.mxu0
        %1383 = vmatprep.mubr.f32.mxu0 %v1032
        %1384 = vmatmul.mubr.f32.gmra.mxu0 %v1031
        %v1385 = vpop.f32.mrf.mxu0
        %v1386 = vadd.f32 %v1241, %v1385
        %v1387 = vpop.f32.mrf.mxu0
        %1388 = vmatprep.mubr.f32.mxu0 %v1036
        %1389 = vmatmul.mubr.f32.gmra.mxu0 %v1035
        %v1390 = vpop.f32.mrf.mxu0
        %v1391 = vadd.f32 %v1246, %v1390
        %v1392 = vpop.f32.mrf.mxu0
        %1393 = vmatprep.mubr.f32.mxu0 %v1040
        %1394 = vmatmul.mubr.f32.gmra.mxu0 %v1039
        %v1395 = vpop.f32.mrf.mxu0
        %v1396 = vadd.f32 %v1251, %v1395
        %v1397 = vpop.f32.mrf.mxu0
        %1398 = vmatprep.mubr.f32.mxu0 %v1044
        %1399 = vmatmul.mubr.f32.gmra.mxu0 %v1043
        %v1400 = vpop.f32.mrf.mxu0
        %v1401 = vadd.f32 %v1256, %v1400
        %v1402 = vpop.f32.mrf.mxu0
        %1403 = vmatprep.mubr.f32.mxu0 %v1048
        %1404 = vmatmul.mubr.f32.gmra.mxu0 %v1047
        %v1405 = vpop.f32.mrf.mxu0
        %v1406 = vadd.f32 %v1261, %v1405
        %v1407 = vpop.f32.mrf.mxu0
        %1408 = vmatprep.mubr.f32.mxu0 %v1052
        %1409 = vmatmul.mubr.f32.gmra.mxu0 %v1051
        %v1410 = vpop.f32.mrf.mxu0
        %v1411 = vadd.f32 %v1266, %v1410
        %v1412 = vpop.f32.mrf.mxu0
        %1413 = vdwg.mxu0
        %v1414 = vmax.f32 %v1336, 0.0
        %v1415 = vmax.f32 %v1341, 0.0
        %v1416 = vmax.f32 %v1346, 0.0
        %v1417 = vmax.f32 %v1351, 0.0
        %v1418 = vmax.f32 %v1356, 0.0
        %v1419 = vmax.f32 %v1361, 0.0
        %v1420 = vmax.f32 %v1366, 0.0
        %v1421 = vmax.f32 %v1371, 0.0
        %v1422 = vmax.f32 %v1376, 0.0
        %v1423 = vmax.f32 %v1381, 0.0
        %v1424 = vmax.f32 %v1386, 0.0
        %v1425 = vmax.f32 %v1391, 0.0
        %v1426 = vmax.f32 %v1396, 0.0
        %v1427 = vmax.f32 %v1401, 0.0
        %v1428 = vmax.f32 %v1406, 0.0
        %v1429 = vmax.f32 %v1411, 0.0
        %v1430 = vld [vmem:[%s4] sm:$0xff]
        %v1431 = vld [vmem:[%s4 + $0x8] sm:$0xff]
        %v1432 = vld [vmem:[%s4 + $0x10] sm:$0xff]
        %v1433 = vld [vmem:[%s4 + $0x18] sm:$0xff]
        %v1434 = vld [vmem:[%s4 + $0x20] sm:$0xff]
        %v1435 = vld [vmem:[%s4 + $0x28] sm:$0xff]
        %v1436 = vld [vmem:[%s4 + $0x30] sm:$0xff]
        %v1437 = vld [vmem:[%s4 + $0x38] sm:$0xff]
        %v1438 = vld [vmem:[%s4 + $0x40] sm:$0xff]
        %v1439 = vld [vmem:[%s4 + $0x48] sm:$0xff]
        %v1440 = vld [vmem:[%s4 + $0x50] sm:$0xff]
        %v1441 = vld [vmem:[%s4 + $0x58] sm:$0xff]
        %v1442 = vld [vmem:[%s4 + $0x60] sm:$0xff]
        %v1443 = vld [vmem:[%s4 + $0x68] sm:$0xff]
        %v1444 = vld [vmem:[%s4 + $0x70] sm:$0xff]
        %v1445 = vld [vmem:[%s4 + $0x78] sm:$0xff]
        %v1446 = vld [vmem:[%s5] sm:$0x1]
        %v1448 = vlaneseq
        %v1449 = vshrl.u32 %v1448, 7
        %v1450 = vsub.s32 0, %v1449
        %v1451 = vrot.slane %v1446, %v1450
        %1453 = vmatprep.subr.mxu0 0.0
        %1454 = vmatpush1.msra.mxu0 %v1445
        %1455 = vmatprep.subr.mxu0 0.0
        %1456 = vmatpush1.msra.mxu0 %v1444
        %1457 = vmatprep.subr.mxu0 0.0
        %1458 = vmatpush1.msra.mxu0 %v1443
        %1459 = vmatprep.subr.mxu0 0.0
        %1460 = vmatpush1.msra.mxu0 %v1442
        %1461 = vmatprep.subr.mxu0 0.0
        %1462 = vmatpush1.msra.mxu0 %v1441
        %1463 = vmatprep.subr.mxu0 0.0
        %1464 = vmatpush1.msra.mxu0 %v1440
        %1465 = vmatprep.subr.mxu0 0.0
        %1466 = vmatpush1.msra.mxu0 %v1439
        %1467 = vmatprep.subr.mxu0 0.0
        %1468 = vmatpush1.msra.mxu0 %v1438
        %1469 = vmatprep.subr.mxu0 0.0
        %1470 = vmatpush1.msra.mxu0 %v1437
        %1471 = vmatprep.subr.mxu0 0.0
        %1472 = vmatpush1.msra.mxu0 %v1436
        %1473 = vmatprep.subr.mxu0 0.0
        %1474 = vmatpush1.msra.mxu0 %v1435
        %1475 = vmatprep.subr.mxu0 0.0
        %1476 = vmatpush1.msra.mxu0 %v1434
        %1477 = vmatprep.subr.mxu0 0.0
        %1478 = vmatpush1.msra.mxu0 %v1433
        %1479 = vmatprep.subr.mxu0 0.0
        %1480 = vmatpush1.msra.mxu0 %v1432
        %1481 = vmatprep.subr.mxu0 0.0
        %1482 = vmatpush1.msra.mxu0 %v1431
        %1483 = vmatprep.subr.mxu0 0.0
        %1484 = vmatpush1.msra.mxu0 %v1430
        %1485 = vmatprep.subr.mxu0 0.0
        %1486 = vmatpush2.msra.mxu0 0.0
        %1487 = vmatprep.subr.mxu0 0.0
        %1488 = vmatpush2.msra.mxu0 0.0
        %1489 = vmatprep.subr.mxu0 0.0
        %1490 = vmatpush2.msra.mxu0 0.0
        %1491 = vmatprep.subr.mxu0 0.0
        %1492 = vmatpush2.msra.mxu0 0.0
        %1493 = vmatprep.subr.mxu0 0.0
        %1494 = vmatpush2.msra.mxu0 0.0
        %1495 = vmatprep.subr.mxu0 0.0
        %1496 = vmatpush2.msra.mxu0 0.0
        %1497 = vmatprep.subr.mxu0 0.0
        %1498 = vmatpush2.msra.mxu0 0.0
        %1499 = vmatprep.subr.mxu0 0.0
        %1500 = vmatpush2.msra.mxu0 0.0
        %1501 = vmatprep.subr.mxu0 0.0
        %1502 = vmatpush2.msra.mxu0 0.0
        %1503 = vmatprep.subr.mxu0 0.0
        %1504 = vmatpush2.msra.mxu0 0.0
        %1505 = vmatprep.subr.mxu0 0.0
        %1506 = vmatpush2.msra.mxu0 0.0
        %1507 = vmatprep.subr.mxu0 0.0
        %1508 = vmatpush2.msra.mxu0 0.0
        %1509 = vmatprep.subr.mxu0 0.0
        %1510 = vmatpush2.msra.mxu0 0.0
        %1511 = vmatprep.subr.mxu0 0.0
        %1512 = vmatpush2.msra.mxu0 0.0
        %1513 = vmatprep.subr.mxu0 0.0
        %1514 = vmatpush2.msra.mxu0 0.0
        %1515 = vmatprep.subr.mxu0 0.0
        %1516 = vmatpush2.msra.mxu0 0.0
        %1517 = vmatprep.mubr.f32.mxu0 0.0
        %1518 = vmatmul.mubr.f32.gmra.mxu0 %v1414
        %v1519 = vpop.f32.mrf.mxu0
        %v1520 = vadd.f32 %v1451, %v1519
        %v1521 = vpop.f32.mrf.mxu0
        %1522 = vmatprep.mubr.f32.mxu0 0.0
        %1523 = vmatmul.mubr.f32.gmra.mxu0 %v1415
        %v1524 = vpop.f32.mrf.mxu0
        %v1525 = vadd.f32 %v1451, %v1524
        %v1526 = vpop.f32.mrf.mxu0
        %1527 = vmatprep.mubr.f32.mxu0 0.0
        %1528 = vmatmul.mubr.f32.gmra.mxu0 %v1416
        %v1529 = vpop.f32.mrf.mxu0
        %v1530 = vadd.f32 %v1451, %v1529
        %v1531 = vpop.f32.mrf.mxu0
        %1532 = vmatprep.mubr.f32.mxu0 0.0
        %1533 = vmatmul.mubr.f32.gmra.mxu0 %v1417
        %v1534 = vpop.f32.mrf.mxu0
        %v1535 = vadd.f32 %v1451, %v1534
        %v1536 = vpop.f32.mrf.mxu0
        %1537 = vmatprep.mubr.f32.mxu0 0.0
        %1538 = vmatmul.mubr.f32.gmra.mxu0 %v1418
        %v1539 = vpop.f32.mrf.mxu0
        %v1540 = vadd.f32 %v1451, %v1539
        %v1541 = vpop.f32.mrf.mxu0
        %1542 = vmatprep.mubr.f32.mxu0 0.0
        %1543 = vmatmul.mubr.f32.gmra.mxu0 %v1419
        %v1544 = vpop.f32.mrf.mxu0
        %v1545 = vadd.f32 %v1451, %v1544
        %v1546 = vpop.f32.mrf.mxu0
        %1547 = vmatprep.mubr.f32.mxu0 0.0
        %1548 = vmatmul.mubr.f32.gmra.mxu0 %v1420
        %v1549 = vpop.f32.mrf.mxu0
        %v1550 = vadd.f32 %v1451, %v1549
        %v1551 = vpop.f32.mrf.mxu0
        %1552 = vmatprep.mubr.f32.mxu0 0.0
        %1553 = vmatmul.mubr.f32.gmra.mxu0 %v1421
        %v1554 = vpop.f32.mrf.mxu0
        %v1555 = vadd.f32 %v1451, %v1554
        %v1556 = vpop.f32.mrf.mxu0
        %1557 = vmatprep.mubr.f32.mxu0 0.0
        %1558 = vmatmul.mubr.f32.gmra.mxu0 %v1422
        %v1559 = vpop.f32.mrf.mxu0
        %v1560 = vadd.f32 %v1451, %v1559
        %v1561 = vpop.f32.mrf.mxu0
        %1562 = vmatprep.mubr.f32.mxu0 0.0
        %1563 = vmatmul.mubr.f32.gmra.mxu0 %v1423
        %v1564 = vpop.f32.mrf.mxu0
        %v1565 = vadd.f32 %v1451, %v1564
        %v1566 = vpop.f32.mrf.mxu0
        %1567 = vmatprep.mubr.f32.mxu0 0.0
        %1568 = vmatmul.mubr.f32.gmra.mxu0 %v1424
        %v1569 = vpop.f32.mrf.mxu0
        %v1570 = vadd.f32 %v1451, %v1569
        %v1571 = vpop.f32.mrf.mxu0
        %1572 = vmatprep.mubr.f32.mxu0 0.0
        %1573 = vmatmul.mubr.f32.gmra.mxu0 %v1425
        %v1574 = vpop.f32.mrf.mxu0
        %v1575 = vadd.f32 %v1451, %v1574
        %v1576 = vpop.f32.mrf.mxu0
        %1577 = vmatprep.mubr.f32.mxu0 0.0
        %1578 = vmatmul.mubr.f32.gmra.mxu0 %v1426
        %v1579 = vpop.f32.mrf.mxu0
        %v1580 = vadd.f32 %v1451, %v1579
        %v1581 = vpop.f32.mrf.mxu0
        %1582 = vmatprep.mubr.f32.mxu0 0.0
        %1583 = vmatmul.mubr.f32.gmra.mxu0 %v1427
        %v1584 = vpop.f32.mrf.mxu0
        %v1585 = vadd.f32 %v1451, %v1584
        %v1586 = vpop.f32.mrf.mxu0
        %1587 = vmatprep.mubr.f32.mxu0 0.0
        %1588 = vmatmul.mubr.f32.gmra.mxu0 %v1428
        %v1589 = vpop.f32.mrf.mxu0
        %v1590 = vadd.f32 %v1451, %v1589
        %v1591 = vpop.f32.mrf.mxu0
        %1592 = vmatprep.mubr.f32.mxu0 0.0
        %1593 = vmatmul.mubr.f32.gmra.mxu0 %v1429
        %v1594 = vpop.f32.mrf.mxu0
        %v1595 = vadd.f32 %v1451, %v1594
        %v1596 = vpop.f32.mrf.mxu0
        %1597 = vdwg.mxu0
        %v1598 = vmax.f32 %v1520, 0.0
        %v1599 = vmax.f32 %v1525, 0.0
        %v1600 = vmax.f32 %v1530, 0.0
        %v1601 = vmax.f32 %v1535, 0.0
        %v1602 = vmax.f32 %v1540, 0.0
        %v1603 = vmax.f32 %v1545, 0.0
        %v1604 = vmax.f32 %v1550, 0.0
        %v1605 = vmax.f32 %v1555, 0.0
        %v1606 = vmax.f32 %v1560, 0.0
        %v1607 = vmax.f32 %v1565, 0.0
        %v1608 = vmax.f32 %v1570, 0.0
        %v1609 = vmax.f32 %v1575, 0.0
        %v1610 = vmax.f32 %v1580, 0.0
        %v1611 = vmax.f32 %v1585, 0.0
        %v1612 = vmax.f32 %v1590, 0.0
        %v1613 = vmax.f32 %v1595, 0.0
        %v1614 = vld [vmem:[#allocation2] sm:$0xff]
        %v1615 = vld [vmem:[#allocation2 + $0x8] sm:$0xff]
        %v1616 = vld [vmem:[#allocation2 + $0x10] sm:$0xff]
        %v1617 = vld [vmem:[#allocation2 + $0x18] sm:$0xff]
        %v1618 = vld [vmem:[#allocation2 + $0x20] sm:$0xff]
        %v1619 = vld [vmem:[#allocation2 + $0x28] sm:$0xff]
        %v1620 = vld [vmem:[#allocation2 + $0x30] sm:$0xff]
        %v1621 = vld [vmem:[#allocation2 + $0x38] sm:$0xff]
        %v1622 = vld [vmem:[#allocation2 + $0x40] sm:$0xff]
        %v1623 = vld [vmem:[#allocation2 + $0x48] sm:$0xff]
        %v1624 = vld [vmem:[#allocation2 + $0x50] sm:$0xff]
        %v1625 = vld [vmem:[#allocation2 + $0x58] sm:$0xff]
        %v1626 = vld [vmem:[#allocation2 + $0x60] sm:$0xff]
        %v1627 = vld [vmem:[#allocation2 + $0x68] sm:$0xff]
        %v1628 = vld [vmem:[#allocation2 + $0x70] sm:$0xff]
        %v1629 = vld [vmem:[#allocation2 + $0x78] sm:$0xff]
        %v1630 = vld [vmem:[%s7] sm:$0x1]
        %v1632 = vlaneseq
        %v1633 = vshrl.u32 %v1632, 7
        %v1634 = vsub.s32 0, %v1633
        %v1635 = vrot.slane %v1630, %v1634
        %1637 = vmatprep.subr.mxu0 0.0
        %1638 = vmatpush1.msra.mxu0 %v1629
        %1639 = vmatprep.subr.mxu0 0.0
        %1640 = vmatpush1.msra.mxu0 %v1628
        %1641 = vmatprep.subr.mxu0 0.0
        %1642 = vmatpush1.msra.mxu0 %v1627
        %1643 = vmatprep.subr.mxu0 0.0
        %1644 = vmatpush1.msra.mxu0 %v1626
        %1645 = vmatprep.subr.mxu0 0.0
        %1646 = vmatpush1.msra.mxu0 %v1625
        %1647 = vmatprep.subr.mxu0 0.0
        %1648 = vmatpush1.msra.mxu0 %v1624
        %1649 = vmatprep.subr.mxu0 0.0
        %1650 = vmatpush1.msra.mxu0 %v1623
        %1651 = vmatprep.subr.mxu0 0.0
        %1652 = vmatpush1.msra.mxu0 %v1622
        %1653 = vmatprep.subr.mxu0 0.0
        %1654 = vmatpush1.msra.mxu0 %v1621
        %1655 = vmatprep.subr.mxu0 0.0
        %1656 = vmatpush1.msra.mxu0 %v1620
        %1657 = vmatprep.subr.mxu0 0.0
        %1658 = vmatpush1.msra.mxu0 %v1619
        %1659 = vmatprep.subr.mxu0 0.0
        %1660 = vmatpush1.msra.mxu0 %v1618
        %1661 = vmatprep.subr.mxu0 0.0
        %1662 = vmatpush1.msra.mxu0 %v1617
        %1663 = vmatprep.subr.mxu0 0.0
        %1664 = vmatpush1.msra.mxu0 %v1616
        %1665 = vmatprep.subr.mxu0 0.0
        %1666 = vmatpush1.msra.mxu0 %v1615
        %1667 = vmatprep.subr.mxu0 0.0
        %1668 = vmatpush1.msra.mxu0 %v1614
        %1669 = vmatprep.subr.mxu0 0.0
        %1670 = vmatpush2.msra.mxu0 0.0
        %1671 = vmatprep.subr.mxu0 0.0
        %1672 = vmatpush2.msra.mxu0 0.0
        %1673 = vmatprep.subr.mxu0 0.0
        %1674 = vmatpush2.msra.mxu0 0.0
        %1675 = vmatprep.subr.mxu0 0.0
        %1676 = vmatpush2.msra.mxu0 0.0
        %1677 = vmatprep.subr.mxu0 0.0
        %1678 = vmatpush2.msra.mxu0 0.0
        %1679 = vmatprep.subr.mxu0 0.0
        %1680 = vmatpush2.msra.mxu0 0.0
        %1681 = vmatprep.subr.mxu0 0.0
        %1682 = vmatpush2.msra.mxu0 0.0
        %1683 = vmatprep.subr.mxu0 0.0
        %1684 = vmatpush2.msra.mxu0 0.0
        %1685 = vmatprep.subr.mxu0 0.0
        %1686 = vmatpush2.msra.mxu0 0.0
        %1687 = vmatprep.subr.mxu0 0.0
        %1688 = vmatpush2.msra.mxu0 0.0
        %1689 = vmatprep.subr.mxu0 0.0
        %1690 = vmatpush2.msra.mxu0 0.0
        %1691 = vmatprep.subr.mxu0 0.0
        %1692 = vmatpush2.msra.mxu0 0.0
        %1693 = vmatprep.subr.mxu0 0.0
        %1694 = vmatpush2.msra.mxu0 0.0
        %1695 = vmatprep.subr.mxu0 0.0
        %1696 = vmatpush2.msra.mxu0 0.0
        %1697 = vmatprep.subr.mxu0 0.0
        %1698 = vmatpush2.msra.mxu0 0.0
        %1699 = vmatprep.subr.mxu0 0.0
        %1700 = vmatpush2.msra.mxu0 0.0
        %1701 = vmatprep.mubr.f32.mxu0 0.0
        %1702 = vmatmul.mubr.f32.gmra.mxu0 %v1598
        %v1703 = vpop.f32.mrf.mxu0
        %v1704 = vadd.f32 %v1635, %v1703
        %v1705 = vpop.f32.mrf.mxu0
        %1706 = vmatprep.mubr.f32.mxu0 0.0
        %1707 = vmatmul.mubr.f32.gmra.mxu0 %v1599
        %v1708 = vpop.f32.mrf.mxu0
        %v1709 = vadd.f32 %v1635, %v1708
        %v1710 = vpop.f32.mrf.mxu0
        %1711 = vmatprep.mubr.f32.mxu0 0.0
        %1712 = vmatmul.mubr.f32.gmra.mxu0 %v1600
        %v1713 = vpop.f32.mrf.mxu0
        %v1714 = vadd.f32 %v1635, %v1713
        %v1715 = vpop.f32.mrf.mxu0
        %1716 = vmatprep.mubr.f32.mxu0 0.0
        %1717 = vmatmul.mubr.f32.gmra.mxu0 %v1601
        %v1718 = vpop.f32.mrf.mxu0
        %v1719 = vadd.f32 %v1635, %v1718
        %v1720 = vpop.f32.mrf.mxu0
        %1721 = vmatprep.mubr.f32.mxu0 0.0
        %1722 = vmatmul.mubr.f32.gmra.mxu0 %v1602
        %v1723 = vpop.f32.mrf.mxu0
        %v1724 = vadd.f32 %v1635, %v1723
        %v1725 = vpop.f32.mrf.mxu0
        %1726 = vmatprep.mubr.f32.mxu0 0.0
        %1727 = vmatmul.mubr.f32.gmra.mxu0 %v1603
        %v1728 = vpop.f32.mrf.mxu0
        %v1729 = vadd.f32 %v1635, %v1728
        %v1730 = vpop.f32.mrf.mxu0
        %1731 = vmatprep.mubr.f32.mxu0 0.0
        %1732 = vmatmul.mubr.f32.gmra.mxu0 %v1604
        %v1733 = vpop.f32.mrf.mxu0
        %v1734 = vadd.f32 %v1635, %v1733
        %v1735 = vpop.f32.mrf.mxu0
        %1736 = vmatprep.mubr.f32.mxu0 0.0
        %1737 = vmatmul.mubr.f32.gmra.mxu0 %v1605
        %v1738 = vpop.f32.mrf.mxu0
        %v1739 = vadd.f32 %v1635, %v1738
        %v1740 = vpop.f32.mrf.mxu0
        %1741 = vmatprep.mubr.f32.mxu0 0.0
        %1742 = vmatmul.mubr.f32.gmra.mxu0 %v1606
        %v1743 = vpop.f32.mrf.mxu0
        %v1744 = vadd.f32 %v1635, %v1743
        %v1745 = vpop.f32.mrf.mxu0
        %1746 = vmatprep.mubr.f32.mxu0 0.0
        %1747 = vmatmul.mubr.f32.gmra.mxu0 %v1607
        %v1748 = vpop.f32.mrf.mxu0
        %v1749 = vadd.f32 %v1635, %v1748
        %v1750 = vpop.f32.mrf.mxu0
        %1751 = vmatprep.mubr.f32.mxu0 0.0
        %1752 = vmatmul.mubr.f32.gmra.mxu0 %v1608
        %v1753 = vpop.f32.mrf.mxu0
        %v1754 = vadd.f32 %v1635, %v1753
        %v1755 = vpop.f32.mrf.mxu0
        %1756 = vmatprep.mubr.f32.mxu0 0.0
        %1757 = vmatmul.mubr.f32.gmra.mxu0 %v1609
        %v1758 = vpop.f32.mrf.mxu0
        %v1759 = vadd.f32 %v1635, %v1758
        %v1760 = vpop.f32.mrf.mxu0
        %1761 = vmatprep.mubr.f32.mxu0 0.0
        %1762 = vmatmul.mubr.f32.gmra.mxu0 %v1610
        %v1763 = vpop.f32.mrf.mxu0
        %v1764 = vadd.f32 %v1635, %v1763
        %v1765 = vpop.f32.mrf.mxu0
        %1766 = vmatprep.mubr.f32.mxu0 0.0
        %1767 = vmatmul.mubr.f32.gmra.mxu0 %v1611
        %v1768 = vpop.f32.mrf.mxu0
        %v1769 = vadd.f32 %v1635, %v1768
        %v1770 = vpop.f32.mrf.mxu0
        %1771 = vmatprep.mubr.f32.mxu0 0.0
        %1772 = vmatmul.mubr.f32.gmra.mxu0 %v1612
        %v1773 = vpop.f32.mrf.mxu0
        %v1774 = vadd.f32 %v1635, %v1773
        %v1775 = vpop.f32.mrf.mxu0
        %1776 = vmatprep.mubr.f32.mxu0 0.0
        %1777 = vmatmul.mubr.f32.gmra.mxu0 %v1613
        %v1778 = vpop.f32.mrf.mxu0
        %v1779 = vadd.f32 %v1635, %v1778
        %v1780 = vpop.f32.mrf.mxu0
        %1781 = vdwg.mxu0
        %v1782 = vmax.f32 %v1704, 0.0
        %v1783 = vmax.f32 %v1709, 0.0
        %v1784 = vmax.f32 %v1714, 0.0
        %v1785 = vmax.f32 %v1719, 0.0
        %v1786 = vmax.f32 %v1724, 0.0
        %v1787 = vmax.f32 %v1729, 0.0
        %v1788 = vmax.f32 %v1734, 0.0
        %v1789 = vmax.f32 %v1739, 0.0
        %v1790 = vmax.f32 %v1744, 0.0
        %v1791 = vmax.f32 %v1749, 0.0
        %v1792 = vmax.f32 %v1754, 0.0
        %v1793 = vmax.f32 %v1759, 0.0
        %v1794 = vmax.f32 %v1764, 0.0
        %v1795 = vmax.f32 %v1769, 0.0
        %v1796 = vmax.f32 %v1774, 0.0
        %v1797 = vmax.f32 %v1779, 0.0
        %v1798 = vld [vmem:[#allocation4] sm:$0xff]
        %v1799 = vld [vmem:[#allocation4 + $0x8] sm:$0xff]
        %v1800 = vld [vmem:[#allocation4 + $0x10] sm:$0xff]
        %v1801 = vld [vmem:[#allocation4 + $0x18] sm:$0xff]
        %v1802 = vld [vmem:[#allocation4 + $0x20] sm:$0xff]
        %v1803 = vld [vmem:[#allocation4 + $0x28] sm:$0xff]
        %v1804 = vld [vmem:[#allocation4 + $0x30] sm:$0xff]
        %v1805 = vld [vmem:[#allocation4 + $0x38] sm:$0xff]
        %v1806 = vld [vmem:[#allocation4 + $0x40] sm:$0xff]
        %v1807 = vld [vmem:[#allocation4 + $0x48] sm:$0xff]
        %v1808 = vld [vmem:[#allocation4 + $0x50] sm:$0xff]
        %v1809 = vld [vmem:[#allocation4 + $0x58] sm:$0xff]
        %v1810 = vld [vmem:[#allocation4 + $0x60] sm:$0xff]
        %v1811 = vld [vmem:[#allocation4 + $0x68] sm:$0xff]
        %v1812 = vld [vmem:[#allocation4 + $0x70] sm:$0xff]
        %v1813 = vld [vmem:[#allocation4 + $0x78] sm:$0xff]
        %v1814 = vld [vmem:[%s9] sm:$0x1]
        %v1816 = vlaneseq
        %v1817 = vshrl.u32 %v1816, 7
        %v1818 = vsub.s32 0, %v1817
        %v1819 = vrot.slane %v1814, %v1818
        %1821 = vmatprep.subr.mxu0 0.0
        %1822 = vmatpush1.msra.mxu0 %v1813
        %1823 = vmatprep.subr.mxu0 0.0
        %1824 = vmatpush1.msra.mxu0 %v1812
        %1825 = vmatprep.subr.mxu0 0.0
        %1826 = vmatpush1.msra.mxu0 %v1811
        %1827 = vmatprep.subr.mxu0 0.0
        %1828 = vmatpush1.msra.mxu0 %v1810
        %1829 = vmatprep.subr.mxu0 0.0
        %1830 = vmatpush1.msra.mxu0 %v1809
        %1831 = vmatprep.subr.mxu0 0.0
        %1832 = vmatpush1.msra.mxu0 %v1808
        %1833 = vmatprep.subr.mxu0 0.0
        %1834 = vmatpush1.msra.mxu0 %v1807
        %1835 = vmatprep.subr.mxu0 0.0
        %1836 = vmatpush1.msra.mxu0 %v1806
        %1837 = vmatprep.subr.mxu0 0.0
        %1838 = vmatpush1.msra.mxu0 %v1805
        %1839 = vmatprep.subr.mxu0 0.0
        %1840 = vmatpush1.msra.mxu0 %v1804
        %1841 = vmatprep.subr.mxu0 0.0
        %1842 = vmatpush1.msra.mxu0 %v1803
        %1843 = vmatprep.subr.mxu0 0.0
        %1844 = vmatpush1.msra.mxu0 %v1802
        %1845 = vmatprep.subr.mxu0 0.0
        %1846 = vmatpush1.msra.mxu0 %v1801
        %1847 = vmatprep.subr.mxu0 0.0
        %1848 = vmatpush1.msra.mxu0 %v1800
        %1849 = vmatprep.subr.mxu0 0.0
        %1850 = vmatpush1.msra.mxu0 %v1799
        %1851 = vmatprep.subr.mxu0 0.0
        %1852 = vmatpush1.msra.mxu0 %v1798
        %1853 = vmatprep.subr.mxu0 0.0
        %1854 = vmatpush2.msra.mxu0 0.0
        %1855 = vmatprep.subr.mxu0 0.0
        %1856 = vmatpush2.msra.mxu0 0.0
        %1857 = vmatprep.subr.mxu0 0.0
        %1858 = vmatpush2.msra.mxu0 0.0
        %1859 = vmatprep.subr.mxu0 0.0
        %1860 = vmatpush2.msra.mxu0 0.0
        %1861 = vmatprep.subr.mxu0 0.0
        %1862 = vmatpush2.msra.mxu0 0.0
        %1863 = vmatprep.subr.mxu0 0.0
        %1864 = vmatpush2.msra.mxu0 0.0
        %1865 = vmatprep.subr.mxu0 0.0
        %1866 = vmatpush2.msra.mxu0 0.0
        %1867 = vmatprep.subr.mxu0 0.0
        %1868 = vmatpush2.msra.mxu0 0.0
        %1869 = vmatprep.subr.mxu0 0.0
        %1870 = vmatpush2.msra.mxu0 0.0
        %1871 = vmatprep.subr.mxu0 0.0
        %1872 = vmatpush2.msra.mxu0 0.0
        %1873 = vmatprep.subr.mxu0 0.0
        %1874 = vmatpush2.msra.mxu0 0.0
        %1875 = vmatprep.subr.mxu0 0.0
        %1876 = vmatpush2.msra.mxu0 0.0
        %1877 = vmatprep.subr.mxu0 0.0
        %1878 = vmatpush2.msra.mxu0 0.0
        %1879 = vmatprep.subr.mxu0 0.0
        %1880 = vmatpush2.msra.mxu0 0.0
        %1881 = vmatprep.subr.mxu0 0.0
        %1882 = vmatpush2.msra.mxu0 0.0
        %1883 = vmatprep.subr.mxu0 0.0
        %1884 = vmatpush2.msra.mxu0 0.0
        %1885 = vmatprep.mubr.f32.mxu0 0.0
        %1886 = vmatmul.mubr.f32.gmra.mxu0 %v1782
        %v1887 = vpop.f32.mrf.mxu0
        %v1888 = vadd.f32 %v1819, %v1887
        %v1889 = vpop.f32.mrf.mxu0
        %1890 = vmatprep.mubr.f32.mxu0 0.0
        %1891 = vmatmul.mubr.f32.gmra.mxu0 %v1783
        %v1892 = vpop.f32.mrf.mxu0
        %v1893 = vadd.f32 %v1819, %v1892
        %v1894 = vpop.f32.mrf.mxu0
        %1895 = vmatprep.mubr.f32.mxu0 0.0
        %1896 = vmatmul.mubr.f32.gmra.mxu0 %v1784
        %v1897 = vpop.f32.mrf.mxu0
        %v1898 = vadd.f32 %v1819, %v1897
        %v1899 = vpop.f32.mrf.mxu0
        %1900 = vmatprep.mubr.f32.mxu0 0.0
        %1901 = vmatmul.mubr.f32.gmra.mxu0 %v1785
        %v1902 = vpop.f32.mrf.mxu0
        %v1903 = vadd.f32 %v1819, %v1902
        %v1904 = vpop.f32.mrf.mxu0
        %1905 = vmatprep.mubr.f32.mxu0 0.0
        %1906 = vmatmul.mubr.f32.gmra.mxu0 %v1786
        %v1907 = vpop.f32.mrf.mxu0
        %v1908 = vadd.f32 %v1819, %v1907
        %v1909 = vpop.f32.mrf.mxu0
        %1910 = vmatprep.mubr.f32.mxu0 0.0
        %1911 = vmatmul.mubr.f32.gmra.mxu0 %v1787
        %v1912 = vpop.f32.mrf.mxu0
        %v1913 = vadd.f32 %v1819, %v1912
        %v1914 = vpop.f32.mrf.mxu0
        %1915 = vmatprep.mubr.f32.mxu0 0.0
        %1916 = vmatmul.mubr.f32.gmra.mxu0 %v1788
        %v1917 = vpop.f32.mrf.mxu0
        %v1918 = vadd.f32 %v1819, %v1917
        %v1919 = vpop.f32.mrf.mxu0
        %1920 = vmatprep.mubr.f32.mxu0 0.0
        %1921 = vmatmul.mubr.f32.gmra.mxu0 %v1789
        %v1922 = vpop.f32.mrf.mxu0
        %v1923 = vadd.f32 %v1819, %v1922
        %v1924 = vpop.f32.mrf.mxu0
        %1925 = vmatprep.mubr.f32.mxu0 0.0
        %1926 = vmatmul.mubr.f32.gmra.mxu0 %v1790
        %v1927 = vpop.f32.mrf.mxu0
        %v1928 = vadd.f32 %v1819, %v1927
        %v1929 = vpop.f32.mrf.mxu0
        %1930 = vmatprep.mubr.f32.mxu0 0.0
        %1931 = vmatmul.mubr.f32.gmra.mxu0 %v1791
        %v1932 = vpop.f32.mrf.mxu0
        %v1933 = vadd.f32 %v1819, %v1932
        %v1934 = vpop.f32.mrf.mxu0
        %1935 = vmatprep.mubr.f32.mxu0 0.0
        %1936 = vmatmul.mubr.f32.gmra.mxu0 %v1792
        %v1937 = vpop.f32.mrf.mxu0
        %v1938 = vadd.f32 %v1819, %v1937
        %v1939 = vpop.f32.mrf.mxu0
        %1940 = vmatprep.mubr.f32.mxu0 0.0
        %1941 = vmatmul.mubr.f32.gmra.mxu0 %v1793
        %v1942 = vpop.f32.mrf.mxu0
        %v1943 = vadd.f32 %v1819, %v1942
        %v1944 = vpop.f32.mrf.mxu0
        %1945 = vmatprep.mubr.f32.mxu0 0.0
        %1946 = vmatmul.mubr.f32.gmra.mxu0 %v1794
        %v1947 = vpop.f32.mrf.mxu0
        %v1948 = vadd.f32 %v1819, %v1947
        %v1949 = vpop.f32.mrf.mxu0
        %1950 = vmatprep.mubr.f32.mxu0 0.0
        %1951 = vmatmul.mubr.f32.gmra.mxu0 %v1795
        %v1952 = vpop.f32.mrf.mxu0
        %v1953 = vadd.f32 %v1819, %v1952
        %v1954 = vpop.f32.mrf.mxu0
        %1955 = vmatprep.mubr.f32.mxu0 0.0
        %1956 = vmatmul.mubr.f32.gmra.mxu0 %v1796
        %v1957 = vpop.f32.mrf.mxu0
        %v1958 = vadd.f32 %v1819, %v1957
        %v1959 = vpop.f32.mrf.mxu0
        %1960 = vmatprep.mubr.f32.mxu0 0.0
        %1961 = vmatmul.mubr.f32.gmra.mxu0 %v1797
        %v1962 = vpop.f32.mrf.mxu0
        %v1963 = vadd.f32 %v1819, %v1962
        %v1964 = vpop.f32.mrf.mxu0
        %1965 = vdwg.mxu0
        %v1966 = vmax.f32 %v1888, 0.0
        %v1967 = vmax.f32 %v1893, 0.0
        %v1968 = vmax.f32 %v1898, 0.0
        %v1969 = vmax.f32 %v1903, 0.0
        %v1970 = vmax.f32 %v1908, 0.0
        %v1971 = vmax.f32 %v1913, 0.0
        %v1972 = vmax.f32 %v1918, 0.0
        %v1973 = vmax.f32 %v1923, 0.0
        %v1974 = vmax.f32 %v1928, 0.0
        %v1975 = vmax.f32 %v1933, 0.0
        %v1976 = vmax.f32 %v1938, 0.0
        %v1977 = vmax.f32 %v1943, 0.0
        %v1978 = vmax.f32 %v1948, 0.0
        %v1979 = vmax.f32 %v1953, 0.0
        %v1980 = vmax.f32 %v1958, 0.0
        %v1981 = vmax.f32 %v1963, 0.0
        %v1982 = vld [vmem:[#allocation6] sm:$0xff]
        %v1983 = vld [vmem:[#allocation6 + $0x8] sm:$0xff]
        %v1984 = vld [vmem:[#allocation6 + $0x10] sm:$0xff]
        %v1985 = vld [vmem:[#allocation6 + $0x18] sm:$0xff]
        %v1986 = vld [vmem:[#allocation6 + $0x20] sm:$0xff]
        %v1987 = vld [vmem:[#allocation6 + $0x28] sm:$0xff]
        %v1988 = vld [vmem:[#allocation6 + $0x30] sm:$0xff]
        %v1989 = vld [vmem:[#allocation6 + $0x38] sm:$0xff]
        %v1990 = vld [vmem:[#allocation6 + $0x40] sm:$0xff]
        %v1991 = vld [vmem:[#allocation6 + $0x48] sm:$0xff]
        %v1992 = vld [vmem:[#allocation6 + $0x50] sm:$0xff]
        %v1993 = vld [vmem:[#allocation6 + $0x58] sm:$0xff]
        %v1994 = vld [vmem:[#allocation6 + $0x60] sm:$0xff]
        %v1995 = vld [vmem:[#allocation6 + $0x68] sm:$0xff]
        %v1996 = vld [vmem:[#allocation6 + $0x70] sm:$0xff]
        %v1997 = vld [vmem:[#allocation6 + $0x78] sm:$0xff]
        %v1998 = vld [vmem:[%s11] sm:$0x1]
        %v2000 = vlaneseq
        %v2001 = vshrl.u32 %v2000, 7
        %v2002 = vsub.s32 0, %v2001
        %v2003 = vrot.slane %v1998, %v2002
        %2005 = vmatprep.subr.mxu0 0.0
        %2006 = vmatpush1.msra.mxu0 %v1997
        %2007 = vmatprep.subr.mxu0 0.0
        %2008 = vmatpush1.msra.mxu0 %v1996
        %2009 = vmatprep.subr.mxu0 0.0
        %2010 = vmatpush1.msra.mxu0 %v1995
        %2011 = vmatprep.subr.mxu0 0.0
        %2012 = vmatpush1.msra.mxu0 %v1994
        %2013 = vmatprep.subr.mxu0 0.0
        %2014 = vmatpush1.msra.mxu0 %v1993
        %2015 = vmatprep.subr.mxu0 0.0
        %2016 = vmatpush1.msra.mxu0 %v1992
        %2017 = vmatprep.subr.mxu0 0.0
        %2018 = vmatpush1.msra.mxu0 %v1991
        %2019 = vmatprep.subr.mxu0 0.0
        %2020 = vmatpush1.msra.mxu0 %v1990
        %2021 = vmatprep.subr.mxu0 0.0
        %2022 = vmatpush1.msra.mxu0 %v1989
        %2023 = vmatprep.subr.mxu0 0.0
        %2024 = vmatpush1.msra.mxu0 %v1988
        %2025 = vmatprep.subr.mxu0 0.0
        %2026 = vmatpush1.msra.mxu0 %v1987
        %2027 = vmatprep.subr.mxu0 0.0
        %2028 = vmatpush1.msra.mxu0 %v1986
        %2029 = vmatprep.subr.mxu0 0.0
        %2030 = vmatpush1.msra.mxu0 %v1985
        %2031 = vmatprep.subr.mxu0 0.0
        %2032 = vmatpush1.msra.mxu0 %v1984
        %2033 = vmatprep.subr.mxu0 0.0
        %2034 = vmatpush1.msra.mxu0 %v1983
        %2035 = vmatprep.subr.mxu0 0.0
        %2036 = vmatpush1.msra.mxu0 %v1982
        %2037 = vmatprep.subr.mxu0 0.0
        %2038 = vmatpush2.msra.mxu0 0.0
        %2039 = vmatprep.subr.mxu0 0.0
        %2040 = vmatpush2.msra.mxu0 0.0
        %2041 = vmatprep.subr.mxu0 0.0
        %2042 = vmatpush2.msra.mxu0 0.0
        %2043 = vmatprep.subr.mxu0 0.0
        %2044 = vmatpush2.msra.mxu0 0.0
        %2045 = vmatprep.subr.mxu0 0.0
        %2046 = vmatpush2.msra.mxu0 0.0
        %2047 = vmatprep.subr.mxu0 0.0
        %2048 = vmatpush2.msra.mxu0 0.0
        %2049 = vmatprep.subr.mxu0 0.0
        %2050 = vmatpush2.msra.mxu0 0.0
        %2051 = vmatprep.subr.mxu0 0.0
        %2052 = vmatpush2.msra.mxu0 0.0
        %2053 = vmatprep.subr.mxu0 0.0
        %2054 = vmatpush2.msra.mxu0 0.0
        %2055 = vmatprep.subr.mxu0 0.0
        %2056 = vmatpush2.msra.mxu0 0.0
        %2057 = vmatprep.subr.mxu0 0.0
        %2058 = vmatpush2.msra.mxu0 0.0
        %2059 = vmatprep.subr.mxu0 0.0
        %2060 = vmatpush2.msra.mxu0 0.0
        %2061 = vmatprep.subr.mxu0 0.0
        %2062 = vmatpush2.msra.mxu0 0.0
        %2063 = vmatprep.subr.mxu0 0.0
        %2064 = vmatpush2.msra.mxu0 0.0
        %2065 = vmatprep.subr.mxu0 0.0
        %2066 = vmatpush2.msra.mxu0 0.0
        %2067 = vmatprep.subr.mxu0 0.0
        %2068 = vmatpush2.msra.mxu0 0.0
        %2069 = vmatprep.mubr.f32.mxu0 0.0
        %2070 = vmatmul.mubr.f32.gmra.mxu0 %v1966
        %v2071 = vpop.f32.mrf.mxu0
        %v2072 = vadd.f32 %v2003, %v2071
        %v2073 = vpop.f32.mrf.mxu0
        %2074 = vmatprep.mubr.f32.mxu0 0.0
        %2075 = vmatmul.mubr.f32.gmra.mxu0 %v1967
        %v2076 = vpop.f32.mrf.mxu0
        %v2077 = vadd.f32 %v2003, %v2076
        %v2078 = vpop.f32.mrf.mxu0
        %2079 = vmatprep.mubr.f32.mxu0 0.0
        %2080 = vmatmul.mubr.f32.gmra.mxu0 %v1968
        %v2081 = vpop.f32.mrf.mxu0
        %v2082 = vadd.f32 %v2003, %v2081
        %v2083 = vpop.f32.mrf.mxu0
        %2084 = vmatprep.mubr.f32.mxu0 0.0
        %2085 = vmatmul.mubr.f32.gmra.mxu0 %v1969
        %v2086 = vpop.f32.mrf.mxu0
        %v2087 = vadd.f32 %v2003, %v2086
        %v2088 = vpop.f32.mrf.mxu0
        %2089 = vmatprep.mubr.f32.mxu0 0.0
        %2090 = vmatmul.mubr.f32.gmra.mxu0 %v1970
        %v2091 = vpop.f32.mrf.mxu0
        %v2092 = vadd.f32 %v2003, %v2091
        %v2093 = vpop.f32.mrf.mxu0
        %2094 = vmatprep.mubr.f32.mxu0 0.0
        %2095 = vmatmul.mubr.f32.gmra.mxu0 %v1971
        %v2096 = vpop.f32.mrf.mxu0
        %v2097 = vadd.f32 %v2003, %v2096
        %v2098 = vpop.f32.mrf.mxu0
        %2099 = vmatprep.mubr.f32.mxu0 0.0
        %2100 = vmatmul.mubr.f32.gmra.mxu0 %v1972
        %v2101 = vpop.f32.mrf.mxu0
        %v2102 = vadd.f32 %v2003, %v2101
        %v2103 = vpop.f32.mrf.mxu0
        %2104 = vmatprep.mubr.f32.mxu0 0.0
        %2105 = vmatmul.mubr.f32.gmra.mxu0 %v1973
        %v2106 = vpop.f32.mrf.mxu0
        %v2107 = vadd.f32 %v2003, %v2106
        %v2108 = vpop.f32.mrf.mxu0
        %2109 = vmatprep.mubr.f32.mxu0 0.0
        %2110 = vmatmul.mubr.f32.gmra.mxu0 %v1974
        %v2111 = vpop.f32.mrf.mxu0
        %v2112 = vadd.f32 %v2003, %v2111
        %v2113 = vpop.f32.mrf.mxu0
        %2114 = vmatprep.mubr.f32.mxu0 0.0
        %2115 = vmatmul.mubr.f32.gmra.mxu0 %v1975
        %v2116 = vpop.f32.mrf.mxu0
        %v2117 = vadd.f32 %v2003, %v2116
        %v2118 = vpop.f32.mrf.mxu0
        %2119 = vmatprep.mubr.f32.mxu0 0.0
        %2120 = vmatmul.mubr.f32.gmra.mxu0 %v1976
        %v2121 = vpop.f32.mrf.mxu0
        %v2122 = vadd.f32 %v2003, %v2121
        %v2123 = vpop.f32.mrf.mxu0
        %2124 = vmatprep.mubr.f32.mxu0 0.0
        %2125 = vmatmul.mubr.f32.gmra.mxu0 %v1977
        %v2126 = vpop.f32.mrf.mxu0
        %v2127 = vadd.f32 %v2003, %v2126
        %v2128 = vpop.f32.mrf.mxu0
        %2129 = vmatprep.mubr.f32.mxu0 0.0
        %2130 = vmatmul.mubr.f32.gmra.mxu0 %v1978
        %v2131 = vpop.f32.mrf.mxu0
        %v2132 = vadd.f32 %v2003, %v2131
        %v2133 = vpop.f32.mrf.mxu0
        %2134 = vmatprep.mubr.f32.mxu0 0.0
        %2135 = vmatmul.mubr.f32.gmra.mxu0 %v1979
        %v2136 = vpop.f32.mrf.mxu0
        %v2137 = vadd.f32 %v2003, %v2136
        %v2138 = vpop.f32.mrf.mxu0
        %2139 = vmatprep.mubr.f32.mxu0 0.0
        %2140 = vmatmul.mubr.f32.gmra.mxu0 %v1980
        %v2141 = vpop.f32.mrf.mxu0
        %v2142 = vadd.f32 %v2003, %v2141
        %v2143 = vpop.f32.mrf.mxu0
        %2144 = vmatprep.mubr.f32.mxu0 0.0
        %2145 = vmatmul.mubr.f32.gmra.mxu0 %v1981
        %v2146 = vpop.f32.mrf.mxu0
        %v2147 = vadd.f32 %v2003, %v2146
        %v2148 = vpop.f32.mrf.mxu0
        %2149 = vdwg.mxu0
        %2150 = vst [vmem:[%s459] sm:$0xff] %v2072
        %2151 = vst [vmem:[%s459 + $0x8] sm:$0xff] %v2077
        %2152 = vst [vmem:[%s459 + $0x10] sm:$0xff] %v2082
        %2153 = vst [vmem:[%s459 + $0x18] sm:$0xff] %v2087
        %2154 = vst [vmem:[%s459 + $0x20] sm:$0xff] %v2092
        %2155 = vst [vmem:[%s459 + $0x28] sm:$0xff] %v2097
        %2156 = vst [vmem:[%s459 + $0x30] sm:$0xff] %v2102
        %2157 = vst [vmem:[%s459 + $0x38] sm:$0xff] %v2107
        %2158 = vst [vmem:[%s459 + $0x40] sm:$0xff] %v2112
        %2159 = vst [vmem:[%s459 + $0x48] sm:$0xff] %v2117
        %2160 = vst [vmem:[%s459 + $0x50] sm:$0xff] %v2122
        %2161 = vst [vmem:[%s459 + $0x58] sm:$0xff] %v2127
        %2162 = vst [vmem:[%s459 + $0x60] sm:$0xff] %v2132
        %2163 = vst [vmem:[%s459 + $0x68] sm:$0xff] %v2137
        %2164 = vst [vmem:[%s459 + $0x70] sm:$0xff] %v2142
        %2165 = vst [vmem:[%s459 + $0x78] sm:$0xff] %v2147
        %s2166 = smul.u32 16, %s25
        %p2167 = scmp.lt.s32.totalorder %s2166, 31
        %s2168 = scalar_select %p2167, %s2166, 31
        %s2169 = smul.addr %s2168, 8
        %s2170 = scalar_lea.vmem %s12, %s2169
        // Predicated region
        $region81: #{next_word_forward.1} parent=67 // pred_check
          %p2171 = pneg %p300
        $region82: #{next_word_forward.1} parent=67 // pred_check_branch
          %2173 = sbr.rel (%p2171) target = $region84
        $region83: #{next_word_forward.1} parent=67 // pred_region
          %s2174 = smul.u32 16, %s25
        $region84: #{next_word_forward.1} parent=67 // pred_fallthru
          _
      $region68: #{next_word_forward.1} parent=5 // pred_fallthru
        _
      %p2175 = scmp.le.s32.totalorder 2, %s20
      // Predicated region
      $region85: #{next_word_forward.1} parent=5 // pred_check
        %p2176 = pneg %p2175
      $region86: #{next_word_forward.1} parent=5 // pred_check_branch
        %2178 = sbr.rel (%p2176) target = $region88
      $region87: #{next_word_forward.1} parent=5 // pred_region
        %s2179 = ssub.s32 %s20, 2
        // Predicated region
        $region89: #{next_word_forward.1} parent=87 // pred_check
          %p2180 = pneg %p306
        $region90: #{next_word_forward.1} parent=87 // pred_check_branch
          %2182 = sbr.rel (%p2180) target = $region92
        $region91: #{next_word_forward.1} parent=87 // pred_region
          %s2183 = smul.u32 16, %s26
          %p2184 = scmp.lt.s32.totalorder %s2183, 31
          %s2185 = scalar_select %p2184, %s2183, 31
          %s2186 = smul.addr %s2185, 8
          %s2187 = scalar_lea.vmem %s12, %s2186
        $region92: #{next_word_forward.1} parent=87 // pred_fallthru
          _
      $region88: #{next_word_forward.1} parent=5 // pred_fallthru
        _
    $region6: #{next_word_forward.1} parent=1 // loop_footer
      %s24 = sadd.s32 1, %s20
    $region7: #{next_word_forward.1} parent=1 // loop_footer_branch
      %19 = sbr.rel target = $region3
    $region8: #{next_word_forward.1} parent=1 // loop_exit
      _
    %2188 = vsyncpa [#allocation3], 1
    %s2189 = scalar_lea.sflag [#allocation3], 1
    %2190 = vsyncpa %s2189, 1
    %2191 = vsyncpa [#allocation5], 1

// kernel: next_word_forward.1
$region0: #{next_word_forward.1}
  #allocation0 [shape = 'u32[]', space=smem, size = 0x4, offset = 0x4, fixed_abs, tag = 'smem constant byte address 0x4 - core index']
  #allocation1 [shape = 'u32[144,128]{1,0:T(1,128)}', space=vmem, size = 0x12000, scoped, tag = 'internal scratch']
  %s0 = inlined_call_operand.vmem [shape: s32[256,8], index: 0, kind: input, shape index: {}]
  %s1 = inlined_call_operand.vmem [shape: f32[8,512], index: 1, kind: input, shape index: {}]
  %s2 = inlined_call_operand.vmem [shape: f32[512,128], index: 2, kind: input, shape index: {}]
  %s3 = inlined_call_operand.vmem [shape: f32[1,128], index: 3, kind: input, shape index: {}]
  %s4 = inlined_call_operand.vmem [shape: f32[128,128], index: 4, kind: input, shape index: {}]
  %s5 = inlined_call_operand.vmem [shape: f32[1,128], index: 5, kind: input, shape index: {}]
  %s6 = inlined_call_operand.hbm [shape: f32[128,128], index: 6, kind: input, shape index: {}]
  %s7 = inlined_call_operand.vmem [shape: f32[1,128], index: 7, kind: input, shape index: {}]
  %s8 = inlined_call_operand.hbm [shape: f32[128,128], index: 8, kind: input, shape index: {}]
  %s9 = inlined_call_operand.vmem [shape: f32[1,128], index: 9, kind: input, shape index: {}]
  %s10 = inlined_call_operand.hbm [shape: f32[128,128], index: 10, kind: input, shape index: {}]
  %s11 = inlined_call_operand.vmem [shape: f32[1,128], index: 11, kind: input, shape index: {}]
  %s12 = inlined_call_operand.vmem [shape: f32[256,128], index: 12, kind: output, shape index: {}]
  %s13 = sld [smem:[#allocation0]]
  $region93: #{next_word_forward.1} parent=0
    _
  %s15 = ssub.s32 1, %s13
  %s16 = scalar_select 0, %s15, %s13
  $region1: #{next_word_forward.1} parent=0
    #allocation2 [shape = 'u8[65536]{0}', space=vmem, size = 0x10000, scoped, tag = 'input window, operand 6, single buffered']
    #allocation3 [shape = 's32[2]{0}', space=sflag, size = 0x8, scoped, tag = 'scoped memory for next_word_forward.1']
    #allocation4 [shape = 'u8[65536]{0}', space=vmem, size = 0x10000, scoped, tag = 'input window, operand 8, single buffered']
    #allocation5 [shape = 's32[1]{0}', space=sflag, size = 0x4, scoped, tag = 'scoped memory for next_word_forward.1']
    #allocation6 [shape = 'u8[65536]{0}', space=vmem, size = 0x10000, scoped, tag = 'input window, operand 10, single buffered']
    %17 = vsyncpa [#allocation3], 0
    %18 = vsyncpa [#allocation5], 0
    loop: start=0, step=1, limit=4
    $region2: #{next_word_forward.1} parent=1 // loop_pre_header
      _
    $region3: #{next_word_forward.1} parent=1 // loop_header
      %s20 = sphi 0, %s24
      %p21 = scmp.ge.s32.totalorder %s20, 4
      %s30 = sphi 0, %s32
      %s33 = sphi 0, %s30
      %s34 = sphi 0, %s33
      %s50 = sphi 0, %s34
      %s54 = sphi 0, %s54
      %s56 = sphi 0, %s54
      %s57 = sphi 0, %s56
      %s71 = sphi 0, %s57
      %s75 = sphi 0, %s75
      %s77 = sphi 0, %s75
      %s78 = sphi 0, %s77
      %s92 = sphi 0, %s78
      %s96 = sphi 0, %s96
      %s98 = sphi 0, %s96
      %s99 = sphi 0, %s98
      %s113 = sphi 0, %s99
      %s117 = sphi 0, %s117
      %s119 = sphi 0, %s117
      %s120 = sphi 0, %s119
      %s134 = sphi 0, %s120
      %s138 = sphi 0, %s138
      %s140 = sphi 0, %s138
      %s141 = sphi 0, %s140
      %s155 = sphi 0, %s141
      %s159 = sphi 0, %s159
      %s161 = sphi 0, %s159
      %s162 = sphi 0, %s161
      %s176 = sphi 0, %s162
      %s180 = sphi 0, %s180
      %s182 = sphi 0, %s180
      %s183 = sphi 0, %s182
      %s197 = sphi 0, %s183
      %s201 = sphi 0, %s201
      %s203 = sphi 0, %s201
      %s204 = sphi 0, %s203
      %s218 = sphi 0, %s204
      %s222 = sphi 0, %s222
      %s224 = sphi 0, %s222
      %s225 = sphi 0, %s224
      %s239 = sphi 0, %s225
      %s243 = sphi 0, %s243
      %s245 = sphi 0, %s243
      %s246 = sphi 0, %s245
      %s260 = sphi 0, %s246
      %s264 = sphi 0, %s264
      %s266 = sphi 0, %s264
      %s267 = sphi 0, %s266
      %s281 = sphi 0, %s267
      %s287 = sphi 0, %s289
      %s290 = sphi 0, %s287
      %s291 = sphi 0, %s290
      %s307 = sphi 0, %s291
    $region4: #{next_word_forward.1} parent=1 // loop_header_branch
      %23 = sbr.rel (%p21) target = $region8
    $region5: #{next_word_forward.1} parent=1 // loop_body
      %s25 = ssub.s32 %s20, 1
      %s26 = ssub.s32 %s20, 2
      %s27 = sadd.s32 %s20, 1
      %s28 = ssub.s32 %s20, %s27
      %p29 = scmp.eq.s32.totalorder %s28, 0
      %s31 = sadd.s32 %s30, 1
      %s32 = scalar_select %p29, %s30, %s31
      %p35 = pneg %p29
      %p36 = scmp.eq.s32.totalorder %s20, 1
      %p37 = por %p35, %p36
      %p38 = scmp.ne.s32.totalorder %s30, %s33
      %p39 = scmp.eq.s32.totalorder %s20, 0
      %p40 = por %p38, %p39
      %p41 = scmp.ne.s32.totalorder %s30, %s33
      %p42 = scmp.eq.s32.totalorder %s25, 1
      %p43 = por %p41, %p42
      %p44 = scmp.ne.s32.totalorder %s33, %s34
      %p45 = scmp.eq.s32.totalorder %s25, 0
      %p46 = por %p44, %p45
      %p47 = scmp.ne.s32.totalorder %s33, %s34
      %p48 = scmp.eq.s32.totalorder %s26, 1
      %p49 = por %p47, %p48
      %p51 = scmp.ne.s32.totalorder %s34, %s50
      %p52 = scmp.eq.s32.totalorder %s26, 0
      %p53 = por %p51, %p52
      %s55 = sadd.s32 %s54, 1
      %p58 = scmp.eq.s32.totalorder %s20, 1
      %p59 = scmp.ne.s32.totalorder %s54, %s56
      %p60 = scmp.eq.s32.totalorder %s20, 0
      %p61 = por %p59, %p60
      %p62 = scmp.ne.s32.totalorder %s54, %s56
      %p63 = scmp.eq.s32.totalorder %s25, 1
      %p64 = por %p62, %p63
      %p65 = scmp.ne.s32.totalorder %s56, %s57
      %p66 = scmp.eq.s32.totalorder %s25, 0
      %p67 = por %p65, %p66
      %p68 = scmp.ne.s32.totalorder %s56, %s57
      %p69 = scmp.eq.s32.totalorder %s26, 1
      %p70 = por %p68, %p69
      %p72 = scmp.ne.s32.totalorder %s57, %s71
      %p73 = scmp.eq.s32.totalorder %s26, 0
      %p74 = por %p72, %p73
      %s76 = sadd.s32 %s75, 1
      %p79 = scmp.eq.s32.totalorder %s20, 1
      %p80 = scmp.ne.s32.totalorder %s75, %s77
      %p81 = scmp.eq.s32.totalorder %s20, 0
      %p82 = por %p80, %p81
      %p83 = scmp.ne.s32.totalorder %s75, %s77
      %p84 = scmp.eq.s32.totalorder %s25, 1
      %p85 = por %p83, %p84
      %p86 = scmp.ne.s32.totalorder %s77, %s78
      %p87 = scmp.eq.s32.totalorder %s25, 0
      %p88 = por %p86, %p87
      %p89 = scmp.ne.s32.totalorder %s77, %s78
      %p90 = scmp.eq.s32.totalorder %s26, 1
      %p91 = por %p89, %p90
      %p93 = scmp.ne.s32.totalorder %s78, %s92
      %p94 = scmp.eq.s32.totalorder %s26, 0
      %p95 = por %p93, %p94
      %s97 = sadd.s32 %s96, 1
      %p100 = scmp.eq.s32.totalorder %s20, 1
      %p101 = scmp.ne.s32.totalorder %s96, %s98
      %p102 = scmp.eq.s32.totalorder %s20, 0
      %p103 = por %p101, %p102
      %p104 = scmp.ne.s32.totalorder %s96, %s98
      %p105 = scmp.eq.s32.totalorder %s25, 1
      %p106 = por %p104, %p105
      %p107 = scmp.ne.s32.totalorder %s98, %s99
      %p108 = scmp.eq.s32.totalorder %s25, 0
      %p109 = por %p107, %p108
      %p110 = scmp.ne.s32.totalorder %s98, %s99
      %p111 = scmp.eq.s32.totalorder %s26, 1
      %p112 = por %p110, %p111
      %p114 = scmp.ne.s32.totalorder %s99, %s113
      %p115 = scmp.eq.s32.totalorder %s26, 0
      %p116 = por %p114, %p115
      %s118 = sadd.s32 %s117, 1
      %p121 = scmp.eq.s32.totalorder %s20, 1
      %p122 = scmp.ne.s32.totalorder %s117, %s119
      %p123 = scmp.eq.s32.totalorder %s20, 0
      %p124 = por %p122, %p123
      %p125 = scmp.ne.s32.totalorder %s117, %s119
      %p126 = scmp.eq.s32.totalorder %s25, 1
      %p127 = por %p125, %p126
      %p128 = scmp.ne.s32.totalorder %s119, %s120
      %p129 = scmp.eq.s32.totalorder %s25, 0
      %p130 = por %p128, %p129
      %p131 = scmp.ne.s32.totalorder %s119, %s120
      %p132 = scmp.eq.s32.totalorder %s26, 1
      %p133 = por %p131, %p132
      %p135 = scmp.ne.s32.totalorder %s120, %s134
      %p136 = scmp.eq.s32.totalorder %s26, 0
      %p137 = por %p135, %p136
      %s139 = sadd.s32 %s138, 1
      %p142 = scmp.eq.s32.totalorder %s20, 1
      %p143 = scmp.ne.s32.totalorder %s138, %s140
      %p144 = scmp.eq.s32.totalorder %s20, 0
      %p145 = por %p143, %p144
      %p146 = scmp.ne.s32.totalorder %s138, %s140
      %p147 = scmp.eq.s32.totalorder %s25, 1
      %p148 = por %p146, %p147
      %p149 = scmp.ne.s32.totalorder %s140, %s141
      %p150 = scmp.eq.s32.totalorder %s25, 0
      %p151 = por %p149, %p150
      %p152 = scmp.ne.s32.totalorder %s140, %s141
      %p153 = scmp.eq.s32.totalorder %s26, 1
      %p154 = por %p152, %p153
      %p156 = scmp.ne.s32.totalorder %s141, %s155
      %p157 = scmp.eq.s32.totalorder %s26, 0
      %p158 = por %p156, %p157
      %s160 = sadd.s32 %s159, 1
      %p163 = scmp.eq.s32.totalorder %s20, 1
      %p164 = scmp.ne.s32.totalorder %s159, %s161
      %p165 = scmp.eq.s32.totalorder %s20, 0
      %p166 = por %p164, %p165
      %p167 = scmp.ne.s32.totalorder %s159, %s161
      %p168 = scmp.eq.s32.totalorder %s25, 1
      %p169 = por %p167, %p168
      %p170 = scmp.ne.s32.totalorder %s161, %s162
      %p171 = scmp.eq.s32.totalorder %s25, 0
      %p172 = por %p170, %p171
      %p173 = scmp.ne.s32.totalorder %s161, %s162
      %p174 = scmp.eq.s32.totalorder %s26, 1
      %p175 = por %p173, %p174
      %p177 = scmp.ne.s32.totalorder %s162, %s176
      %p178 = scmp.eq.s32.totalorder %s26, 0
      %p179 = por %p177, %p178
      %s181 = sadd.s32 %s180, 1
      %p184 = scmp.eq.s32.totalorder %s20, 1
      %p185 = scmp.ne.s32.totalorder %s180, %s182
      %p186 = scmp.eq.s32.totalorder %s20, 0
      %p187 = por %p185, %p186
      %p188 = scmp.ne.s32.totalorder %s180, %s182
      %p189 = scmp.eq.s32.totalorder %s25, 1
      %p190 = por %p188, %p189
      %p191 = scmp.ne.s32.totalorder %s182, %s183
      %p192 = scmp.eq.s32.totalorder %s25, 0
      %p193 = por %p191, %p192
      %p194 = scmp.ne.s32.totalorder %s182, %s183
      %p195 = scmp.eq.s32.totalorder %s26, 1
      %p196 = por %p194, %p195
      %p198 = scmp.ne.s32.totalorder %s183, %s197
      %p199 = scmp.eq.s32.totalorder %s26, 0
      %p200 = por %p198, %p199
      %s202 = sadd.s32 %s201, 1
      %p205 = scmp.eq.s32.totalorder %s20, 1
      %p206 = scmp.ne.s32.totalorder %s201, %s203
      %p207 = scmp.eq.s32.totalorder %s20, 0
      %p208 = por %p206, %p207
      %p209 = scmp.ne.s32.totalorder %s201, %s203
      %p210 = scmp.eq.s32.totalorder %s25, 1
      %p211 = por %p209, %p210
      %p212 = scmp.ne.s32.totalorder %s203, %s204
      %p213 = scmp.eq.s32.totalorder %s25, 0
      %p214 = por %p212, %p213
      %p215 = scmp.ne.s32.totalorder %s203, %s204
      %p216 = scmp.eq.s32.totalorder %s26, 1
      %p217 = por %p215, %p216
      %p219 = scmp.ne.s32.totalorder %s204, %s218
      %p220 = scmp.eq.s32.totalorder %s26, 0
      %p221 = por %p219, %p220
      %s223 = sadd.s32 %s222, 1
      %p226 = scmp.eq.s32.totalorder %s20, 1
      %p227 = scmp.ne.s32.totalorder %s222, %s224
      %p228 = scmp.eq.s32.totalorder %s20, 0
      %p229 = por %p227, %p228
      %p230 = scmp.ne.s32.totalorder %s222, %s224
      %p231 = scmp.eq.s32.totalorder %s25, 1
      %p232 = por %p230, %p231
      %p233 = scmp.ne.s32.totalorder %s224, %s225
      %p234 = scmp.eq.s32.totalorder %s25, 0
      %p235 = por %p233, %p234
      %p236 = scmp.ne.s32.totalorder %s224, %s225
      %p237 = scmp.eq.s32.totalorder %s26, 1
      %p238 = por %p236, %p237
      %p240 = scmp.ne.s32.totalorder %s225, %s239
      %p241 = scmp.eq.s32.totalorder %s26, 0
      %p242 = por %p240, %p241
      %s244 = sadd.s32 %s243, 1
      %p247 = scmp.eq.s32.totalorder %s20, 1
      %p248 = scmp.ne.s32.totalorder %s243, %s245
      %p249 = scmp.eq.s32.totalorder %s20, 0
      %p250 = por %p248, %p249
      %p251 = scmp.ne.s32.totalorder %s243, %s245
      %p252 = scmp.eq.s32.totalorder %s25, 1
      %p253 = por %p251, %p252
      %p254 = scmp.ne.s32.totalorder %s245, %s246
      %p255 = scmp.eq.s32.totalorder %s25, 0
      %p256 = por %p254, %p255
      %p257 = scmp.ne.s32.totalorder %s245, %s246
      %p258 = scmp.eq.s32.totalorder %s26, 1
      %p259 = por %p257, %p258
      %p261 = scmp.ne.s32.totalorder %s246, %s260
      %p262 = scmp.eq.s32.totalorder %s26, 0
      %p263 = por %p261, %p262
      %s265 = sadd.s32 %s264, 1
      %p268 = scmp.eq.s32.totalorder %s20, 1
      %p269 = scmp.ne.s32.totalorder %s264, %s266
      %p270 = scmp.eq.s32.totalorder %s20, 0
      %p271 = por %p269, %p270
      %p272 = scmp.ne.s32.totalorder %s264, %s266
      %p273 = scmp.eq.s32.totalorder %s25, 1
      %p274 = por %p272, %p273
      %p275 = scmp.ne.s32.totalorder %s266, %s267
      %p276 = scmp.eq.s32.totalorder %s25, 0
      %p277 = por %p275, %p276
      %p278 = scmp.ne.s32.totalorder %s266, %s267
      %p279 = scmp.eq.s32.totalorder %s26, 1
      %p280 = por %p278, %p279
      %p282 = scmp.ne.s32.totalorder %s267, %s281
      %p283 = scmp.eq.s32.totalorder %s26, 0
      %p284 = por %p282, %p283
      %s285 = ssub.s32 %s20, %s27
      %p286 = scmp.eq.s32.totalorder %s285, 0
      %s288 = sadd.s32 %s287, 1
      %s289 = scalar_select %p286, %s287, %s288
      %p292 = pneg %p286
      %p293 = scmp.eq.s32.totalorder %s20, 1
      %p294 = por %p292, %p293
      %p295 = scmp.ne.s32.totalorder %s287, %s290
      %p296 = scmp.eq.s32.totalorder %s20, 0
      %p297 = por %p295, %p296
      %p298 = scmp.ne.s32.totalorder %s287, %s290
      %p299 = scmp.eq.s32.totalorder %s25, 1
      %p300 = por %p298, %p299
      %p301 = scmp.ne.s32.totalorder %s290, %s291
      %p302 = scmp.eq.s32.totalorder %s25, 0
      %p303 = por %p301, %p302
      %p304 = scmp.ne.s32.totalorder %s290, %s291
      %p305 = scmp.eq.s32.totalorder %s26, 1
      %p306 = por %p304, %p305
      %p308 = scmp.ne.s32.totalorder %s291, %s307
      %p309 = scmp.eq.s32.totalorder %s26, 0
      %p310 = por %p308, %p309
      %p311 = scmp.le.s32.totalorder 1, %s20
      %p312 = scmp.lt.s32.totalorder %s20, 3
      %p313 = pnand %p311, %p312
      %p314 = pneg %p313
      // Predicated region
      $region9: #{next_word_forward.1} parent=5 // pred_check
        _
      $region10: #{next_word_forward.1} parent=5 // pred_check_branch
        %316 = sbr.rel (%p313) target = $region12
      $region11: #{next_word_forward.1} parent=5 // pred_region
        %s317 = ssub.s32 %s20, 1
        // Predicated region
        $region13: #{next_word_forward.1} parent=11 // pred_check
          %p318 = pneg %p67
        $region14: #{next_word_forward.1} parent=11 // pred_check_branch
          %320 = sbr.rel (%p318) target = $region16
        $region15: #{next_word_forward.1} parent=11 // pred_region
          _
        $region16: #{next_word_forward.1} parent=11 // pred_fallthru
          _
        // Predicated region
        $region17: #{next_word_forward.1} parent=11 // pred_check
          %p321 = pneg %p88
        $region18: #{next_word_forward.1} parent=11 // pred_check_branch
          %323 = sbr.rel (%p321) target = $region20
        $region19: #{next_word_forward.1} parent=11 // pred_region
          _
        $region20: #{next_word_forward.1} parent=11 // pred_fallthru
          _
        // Predicated region
        $region21: #{next_word_forward.1} parent=11 // pred_check
          %p324 = pneg %p109
        $region22: #{next_word_forward.1} parent=11 // pred_check_branch
          %326 = sbr.rel (%p324) target = $region24
        $region23: #{next_word_forward.1} parent=11 // pred_region
          _
        $region24: #{next_word_forward.1} parent=11 // pred_fallthru
          _
        // Predicated region
        $region25: #{next_word_forward.1} parent=11 // pred_check
          %p327 = pneg %p130
        $region26: #{next_word_forward.1} parent=11 // pred_check_branch
          %329 = sbr.rel (%p327) target = $region28
        $region27: #{next_word_forward.1} parent=11 // pred_region
          _
        $region28: #{next_word_forward.1} parent=11 // pred_fallthru
          _
        // Predicated region
        $region29: #{next_word_forward.1} parent=11 // pred_check
          %p330 = pneg %p151
        $region30: #{next_word_forward.1} parent=11 // pred_check_branch
          %332 = sbr.rel (%p330) target = $region32
        $region31: #{next_word_forward.1} parent=11 // pred_region
          _
        $region32: #{next_word_forward.1} parent=11 // pred_fallthru
          _
        // Predicated region
        $region33: #{next_word_forward.1} parent=11 // pred_check
          %p333 = pneg %p172
        $region34: #{next_word_forward.1} parent=11 // pred_check_branch
          %335 = sbr.rel (%p333) target = $region36
        $region35: #{next_word_forward.1} parent=11 // pred_region
          %s337 = ssub.s32 2048, 2048
          %338 = vsyncadd [#allocation3], %s337
          %s339 = sshll.u32 [#allocation2], 4
          %s340 = int_to_ptr.vmem [resolvable:$true] %s339
          %345 = dma.hbm_to_vmem [thread:$0]  %s6, 2048, %s340, [#allocation3], 128, 128, 8
        $region36: #{next_word_forward.1} parent=11 // pred_fallthru
          _
        // Predicated region
        $region37: #{next_word_forward.1} parent=11 // pred_check
          %p346 = pneg %p193
        $region38: #{next_word_forward.1} parent=11 // pred_check_branch
          %348 = sbr.rel (%p346) target = $region40
        $region39: #{next_word_forward.1} parent=11 // pred_region
          _
        $region40: #{next_word_forward.1} parent=11 // pred_fallthru
          _
        // Predicated region
        $region41: #{next_word_forward.1} parent=11 // pred_check
          %p349 = pneg %p214
        $region42: #{next_word_forward.1} parent=11 // pred_check_branch
          %351 = sbr.rel (%p349) target = $region44
        $region43: #{next_word_forward.1} parent=11 // pred_region
          %s353 = ssub.s32 2048, 2048
          %354 = vsyncadd [#allocation5], %s353
          %s355 = sshll.u32 [#allocation4], 4
          %s356 = int_to_ptr.vmem [resolvable:$true] %s355
          %361 = dma.hbm_to_vmem [thread:$0]  %s8, 2048, %s356, [#allocation5], 128, 128, 8
        $region44: #{next_word_forward.1} parent=11 // pred_fallthru
          _
        // Predicated region
        $region45: #{next_word_forward.1} parent=11 // pred_check
          %p362 = pneg %p235
        $region46: #{next_word_forward.1} parent=11 // pred_check_branch
          %364 = sbr.rel (%p362) target = $region48
        $region47: #{next_word_forward.1} parent=11 // pred_region
          _
        $region48: #{next_word_forward.1} parent=11 // pred_fallthru
          _
        // Predicated region
        $region49: #{next_word_forward.1} parent=11 // pred_check
          %p365 = pneg %p256
        $region50: #{next_word_forward.1} parent=11 // pred_check_branch
          %367 = sbr.rel (%p365) target = $region52
        $region51: #{next_word_forward.1} parent=11 // pred_region
          %s369 = ssub.s32 2048, 2048
          %370 = vsyncadd [#allocation5], %s369
          %s371 = sshll.u32 [#allocation6], 4
          %s372 = int_to_ptr.vmem [resolvable:$true] %s371
          %377 = dma.hbm_to_vmem [thread:$0]  %s10, 2048, %s372, [#allocation5], 128, 128, 8
        $region52: #{next_word_forward.1} parent=11 // pred_fallthru
          _
        // Predicated region
        $region53: #{next_word_forward.1} parent=11 // pred_check
          %p378 = pneg %p277
        $region54: #{next_word_forward.1} parent=11 // pred_check_branch
          %380 = sbr.rel (%p378) target = $region56
        $region55: #{next_word_forward.1} parent=11 // pred_region
          _
        $region56: #{next_word_forward.1} parent=11 // pred_fallthru
          _
      $region12: #{next_word_forward.1} parent=5 // pred_fallthru
        _
      %p381 = scmp.lt.s32.totalorder %s20, 2
      // Predicated region
      $region57: #{next_word_forward.1} parent=5 // pred_check
        %p382 = pneg %p381
      $region58: #{next_word_forward.1} parent=5 // pred_check_branch
        %384 = sbr.rel (%p382) target = $region60
      $region59: #{next_word_forward.1} parent=5 // pred_region
        // Predicated region
        $region61: #{next_word_forward.1} parent=59 // pred_check
          %p385 = pneg %p40
        $region62: #{next_word_forward.1} parent=59 // pred_check_branch
          %387 = sbr.rel (%p385) target = $region64
        $region63: #{next_word_forward.1} parent=59 // pred_region
          %s388 = smul.u32 16, %s20
          %p389 = scmp.lt.s32.totalorder %s388, 31
          %s390 = scalar_select %p389, %s388, 31
          %s391 = smul.addr %s390, 8
          %s392 = scalar_lea.vmem %s0, %s391
          %s393 = smul.u32 16, %s20
        $region64: #{next_word_forward.1} parent=59 // pred_fallthru
          _
      $region60: #{next_word_forward.1} parent=5 // pred_fallthru
        _
      %p394 = scmp.le.s32.totalorder 1, %s20
      %p395 = scmp.lt.s32.totalorder %s20, 3
      %p396 = pnand %p394, %p395
      %p397 = pneg %p396
      // Predicated region
      $region65: #{next_word_forward.1} parent=5 // pred_check
        _
      $region66: #{next_word_forward.1} parent=5 // pred_check_branch
        %399 = sbr.rel (%p396) target = $region68
      $region67: #{next_word_forward.1} parent=5 // pred_region
        %s400 = ssub.s32 %s20, 1
        // Predicated region
        $region69: #{next_word_forward.1} parent=67 // pred_check
          %p401 = pneg %p172
        $region70: #{next_word_forward.1} parent=67 // pred_check_branch
          %403 = sbr.rel (%p401) target = $region72
        $region71: #{next_word_forward.1} parent=67 // pred_region
          %404 = dma.done [#allocation3], 2048
        $region72: #{next_word_forward.1} parent=67 // pred_fallthru
          _
        // Predicated region
        $region73: #{next_word_forward.1} parent=67 // pred_check
          %p405 = pneg %p214
        $region74: #{next_word_forward.1} parent=67 // pred_check_branch
          %407 = sbr.rel (%p405) target = $region76
        $region75: #{next_word_forward.1} parent=67 // pred_region
          %408 = dma.done [#allocation5], 2048
        $region76: #{next_word_forward.1} parent=67 // pred_fallthru
          _
        // Predicated region
        $region77: #{next_word_forward.1} parent=67 // pred_check
          %p409 = pneg %p256
        $region78: #{next_word_forward.1} parent=67 // pred_check_branch
          %411 = sbr.rel (%p409) target = $region80
        $region79: #{next_word_forward.1} parent=67 // pred_region
          %412 = dma.done [#allocation5], 2048
        $region80: #{next_word_forward.1} parent=67 // pred_fallthru
          _
        %s413 = smul.u32 16, %s25
        %p414 = scmp.lt.s32.totalorder %s413, 31
        %s415 = scalar_select %p414, %s413, 31
        %s416 = smul.addr %s415, 8
        %s417 = scalar_lea.vmem %s0, %s416
        %p418 = pneg %p46
        %p419 = pneg %p43
        %p420 = pneg %p67
        %p421 = pneg %p64
        %p422 = pneg %p88
        %p423 = pneg %p85
        %p424 = pneg %p109
        %p425 = pneg %p106
        %p426 = pneg %p130
        %p427 = pneg %p127
        %p428 = pneg %p151
        %p429 = pneg %p148
        %p430 = pneg %p172
        %p431 = pneg %p169
        %p432 = pneg %p193
        %p433 = pneg %p190
        %p434 = pneg %p214
        %p435 = pneg %p211
        %p436 = pneg %p235
        %p437 = pneg %p232
        %p438 = pneg %p256
        %p439 = pneg %p253
        %p440 = pneg %p277
        %p441 = pneg %p274
        %p442 = pneg %p303
        %p443 = pneg %p300
        %s444 = smul.u32 16, %s25
        %p445 = scmp.lt.s32.totalorder %s444, 31
        %s446 = scalar_select %p445, %s444, 31
        %s447 = smul.addr %s446, 8
        %s448 = scalar_lea.vmem %s12, %s447
        %s449 = smul.u32 16, %s25
        %p450 = scmp.lt.s32.totalorder %s449, 31
        %s451 = scalar_select %p450, %s449, 31
        %s452 = smul.addr %s451, 8
        %s453 = scalar_lea.vmem %s0, %s452
        %s454 = smul.u32 16, %s25
        %s455 = smul.u32 16, %s25
        %p456 = scmp.lt.s32.totalorder %s455, 31
        %s457 = scalar_select %p456, %s455, 31
        %s458 = smul.addr %s457, 8
        %s459 = scalar_lea.vmem %s12, %s458
        %s460 = smul.u32 16, %s25
        %v461 = vld [vmem:[%s453] sm:$0xff]
        %v462 = vld [vmem:[%s453 + $0x8] sm:$0xff]
        %v463 = vld [vmem:[%s453 + $0x10] sm:$0xff]
        %v464 = vld [vmem:[%s453 + $0x18] sm:$0xff]
        %v465 = vld [vmem:[%s453 + $0x20] sm:$0xff]
        %v466 = vld [vmem:[%s453 + $0x28] sm:$0xff]
        %v467 = vld [vmem:[%s453 + $0x30] sm:$0xff]
        %v468 = vld [vmem:[%s453 + $0x38] sm:$0xff]
        %v469 = vld [vmem:[%s453 + $0x40] sm:$0xff]
        %v470 = vld [vmem:[%s453 + $0x48] sm:$0xff]
        %v471 = vld [vmem:[%s453 + $0x50] sm:$0xff]
        %v472 = vld [vmem:[%s453 + $0x58] sm:$0xff]
        %v473 = vld [vmem:[%s453 + $0x60] sm:$0xff]
        %v474 = vld [vmem:[%s453 + $0x68] sm:$0xff]
        %v475 = vld [vmem:[%s453 + $0x70] sm:$0xff]
        %v476 = vld [vmem:[%s453 + $0x78] sm:$0xff]
        %v477 = vcvt.s32.f32 %v461
        %v478 = vcvt.s32.f32 %v462
        %v479 = vcvt.s32.f32 %v463
        %v480 = vcvt.s32.f32 %v464
        %v481 = vcvt.s32.f32 %v465
        %v482 = vcvt.s32.f32 %v466
        %v483 = vcvt.s32.f32 %v467
        %v484 = vcvt.s32.f32 %v468
        %v485 = vcvt.s32.f32 %v469
        %v486 = vcvt.s32.f32 %v470
        %v487 = vcvt.s32.f32 %v471
        %v488 = vcvt.s32.f32 %v472
        %v489 = vcvt.s32.f32 %v473
        %v490 = vcvt.s32.f32 %v474
        %v491 = vcvt.s32.f32 %v475
        %v492 = vcvt.s32.f32 %v476
        %v493 = vld [vmem:[%s1] sm:$0xff]
        %v494 = vld [vmem:[%s1 + $0x8] sm:$0xff]
        %v495 = vld [vmem:[%s1 + $0x10] sm:$0xff]
        %v496 = vld [vmem:[%s1 + $0x18] sm:$0xff]
        %vm497 = vcmask 64512
        %v499 = vsel %vm497, %v477, 0
        %v502 = vsel %vm497, %v478, 0
        %v505 = vsel %vm497, %v479, 0
        %v508 = vsel %vm497, %v480, 0
        %v511 = vsel %vm497, %v481, 0
        %v514 = vsel %vm497, %v482, 0
        %v517 = vsel %vm497, %v483, 0
        %v520 = vsel %vm497, %v484, 0
        %v523 = vsel %vm497, %v485, 0
        %v526 = vsel %vm497, %v486, 0
        %v529 = vsel %vm497, %v487, 0
        %v532 = vsel %vm497, %v488, 0
        %v535 = vsel %vm497, %v489, 0
        %v538 = vsel %vm497, %v490, 0
        %v541 = vsel %vm497, %v491, 0
        %v544 = vsel %vm497, %v492, 0
        %546 = vmatprep.subr.mxu0 0.0
        %547 = vmatpush1.msra.mxu0 0.0
        %548 = vmatprep.subr.mxu0 0.0
        %549 = vmatpush1.msra.mxu0 0.0
        %550 = vmatprep.subr.mxu0 0.0
        %551 = vmatpush1.msra.mxu0 0.0
        %552 = vmatprep.subr.mxu0 0.0
        %553 = vmatpush1.msra.mxu0 0.0
        %554 = vmatprep.subr.mxu0 0.0
        %555 = vmatpush1.msra.mxu0 0.0
        %556 = vmatprep.subr.mxu0 0.0
        %557 = vmatpush1.msra.mxu0 0.0
        %558 = vmatprep.subr.mxu0 0.0
        %559 = vmatpush1.msra.mxu0 0.0
        %560 = vmatprep.subr.mxu0 0.0
        %561 = vmatpush1.msra.mxu0 0.0
        %562 = vmatprep.subr.mxu0 0.0
        %563 = vmatpush1.msra.mxu0 0.0
        %564 = vmatprep.subr.mxu0 0.0
        %565 = vmatpush1.msra.mxu0 0.0
        %566 = vmatprep.subr.mxu0 0.0
        %567 = vmatpush1.msra.mxu0 0.0
        %568 = vmatprep.subr.mxu0 0.0
        %569 = vmatpush1.msra.mxu0 0.0
        %570 = vmatprep.subr.mxu0 0.0
        %571 = vmatpush1.msra.mxu0 0.0
        %572 = vmatprep.subr.mxu0 0.0
        %573 = vmatpush1.msra.mxu0 0.0
        %574 = vmatprep.subr.mxu0 0.0
        %575 = vmatpush1.msra.mxu0 0.0
        %576 = vmatprep.subr.mxu0 %v494
        %577 = vmatpush1.msra.mxu0 %v493
        %578 = vmatprep.subr.mxu0 0.0
        %579 = vmatpush2.msra.mxu0 0.0
        %580 = vmatprep.subr.mxu0 0.0
        %581 = vmatpush2.msra.mxu0 0.0
        %582 = vmatprep.subr.mxu0 0.0
        %583 = vmatpush2.msra.mxu0 0.0
        %584 = vmatprep.subr.mxu0 0.0
        %585 = vmatpush2.msra.mxu0 0.0
        %586 = vmatprep.subr.mxu0 0.0
        %587 = vmatpush2.msra.mxu0 0.0
        %588 = vmatprep.subr.mxu0 0.0
        %589 = vmatpush2.msra.mxu0 0.0
        %590 = vmatprep.subr.mxu0 0.0
        %591 = vmatpush2.msra.mxu0 0.0
        %592 = vmatprep.subr.mxu0 0.0
        %593 = vmatpush2.msra.mxu0 0.0
        %594 = vmatprep.subr.mxu0 0.0
        %595 = vmatpush2.msra.mxu0 0.0
        %596 = vmatprep.subr.mxu0 0.0
        %597 = vmatpush2.msra.mxu0 0.0
        %598 = vmatprep.subr.mxu0 0.0
        %599 = vmatpush2.msra.mxu0 0.0
        %600 = vmatprep.subr.mxu0 0.0
        %601 = vmatpush2.msra.mxu0 0.0
        %602 = vmatprep.subr.mxu0 0.0
        %603 = vmatpush2.msra.mxu0 0.0
        %604 = vmatprep.subr.mxu0 0.0
        %605 = vmatpush2.msra.mxu0 0.0
        %606 = vmatprep.subr.mxu0 0.0
        %607 = vmatpush2.msra.mxu0 0.0
        %608 = vmatprep.subr.mxu0 0.0
        %609 = vmatpush2.msra.mxu0 0.0
        %610 = vmatprep.mubr.f32.mxu0 0.0
        %611 = vmatmul.mubr.f32.gmra.mxu0 %v499
        %v612 = vpop.f32.mrf.mxu0
        %v613 = vadd.f32 0.0, %v612
        %v614 = vpop.f32.mrf.mxu0
        %v615 = vadd.f32 0.0, %v614
        %616 = vmatprep.mubr.f32.mxu0 0.0
        %617 = vmatmul.mubr.f32.gmra.mxu0 %v502
        %v618 = vpop.f32.mrf.mxu0
        %v619 = vadd.f32 0.0, %v618
        %v620 = vpop.f32.mrf.mxu0
        %v621 = vadd.f32 0.0, %v620
        %622 = vmatprep.mubr.f32.mxu0 0.0
        %623 = vmatmul.mubr.f32.gmra.mxu0 %v505
        %v624 = vpop.f32.mrf.mxu0
        %v625 = vadd.f32 0.0, %v624
        %v626 = vpop.f32.mrf.mxu0
        %v627 = vadd.f32 0.0, %v626
        %628 = vmatprep.mubr.f32.mxu0 0.0
        %629 = vmatmul.mubr.f32.gmra.mxu0 %v508
        %v630 = vpop.f32.mrf.mxu0
        %v631 = vadd.f32 0.0, %v630
        %v632 = vpop.f32.mrf.mxu0
        %v633 = vadd.f32 0.0, %v632
        %634 = vmatprep.mubr.f32.mxu0 0.0
        %635 = vmatmul.mubr.f32.gmra.mxu0 %v511
        %v636 = vpop.f32.mrf.mxu0
        %v637 = vadd.f32 0.0, %v636
        %v638 = vpop.f32.mrf.mxu0
        %v639 = vadd.f32 0.0, %v638
        %640 = vmatprep.mubr.f32.mxu0 0.0
        %641 = vmatmul.mubr.f32.gmra.mxu0 %v514
        %v642 = vpop.f32.mrf.mxu0
        %v643 = vadd.f32 0.0, %v642
        %v644 = vpop.f32.mrf.mxu0
        %v645 = vadd.f32 0.0, %v644
        %646 = vmatprep.mubr.f32.mxu0 0.0
        %647 = vmatmul.mubr.f32.gmra.mxu0 %v517
        %v648 = vpop.f32.mrf.mxu0
        %v649 = vadd.f32 0.0, %v648
        %v650 = vpop.f32.mrf.mxu0
        %v651 = vadd.f32 0.0, %v650
        %652 = vmatprep.mubr.f32.mxu0 0.0
        %653 = vmatmul.mubr.f32.gmra.mxu0 %v520
        %v654 = vpop.f32.mrf.mxu0
        %v655 = vadd.f32 0.0, %v654
        %v656 = vpop.f32.mrf.mxu0
        %v657 = vadd.f32 0.0, %v656
        %658 = vmatprep.mubr.f32.mxu0 0.0
        %659 = vmatmul.mubr.f32.gmra.mxu0 %v523
        %v660 = vpop.f32.mrf.mxu0
        %v661 = vadd.f32 0.0, %v660
        %v662 = vpop.f32.mrf.mxu0
        %v663 = vadd.f32 0.0, %v662
        %664 = vmatprep.mubr.f32.mxu0 0.0
        %665 = vmatmul.mubr.f32.gmra.mxu0 %v526
        %v666 = vpop.f32.mrf.mxu0
        %v667 = vadd.f32 0.0, %v666
        %v668 = vpop.f32.mrf.mxu0
        %v669 = vadd.f32 0.0, %v668
        %670 = vmatprep.mubr.f32.mxu0 0.0
        %671 = vmatmul.mubr.f32.gmra.mxu0 %v529
        %v672 = vpop.f32.mrf.mxu0
        %v673 = vadd.f32 0.0, %v672
        %v674 = vpop.f32.mrf.mxu0
        %v675 = vadd.f32 0.0, %v674
        %676 = vmatprep.mubr.f32.mxu0 0.0
        %677 = vmatmul.mubr.f32.gmra.mxu0 %v532
        %v678 = vpop.f32.mrf.mxu0
        %v679 = vadd.f32 0.0, %v678
        %v680 = vpop.f32.mrf.mxu0
        %v681 = vadd.f32 0.0, %v680
        %682 = vmatprep.mubr.f32.mxu0 0.0
        %683 = vmatmul.mubr.f32.gmra.mxu0 %v535
        %v684 = vpop.f32.mrf.mxu0
        %v685 = vadd.f32 0.0, %v684
        %v686 = vpop.f32.mrf.mxu0
        %v687 = vadd.f32 0.0, %v686
        %688 = vmatprep.mubr.f32.mxu0 0.0
        %689 = vmatmul.mubr.f32.gmra.mxu0 %v538
        %v690 = vpop.f32.mrf.mxu0
        %v691 = vadd.f32 0.0, %v690
        %v692 = vpop.f32.mrf.mxu0
        %v693 = vadd.f32 0.0, %v692
        %694 = vmatprep.mubr.f32.mxu0 0.0
        %695 = vmatmul.mubr.f32.gmra.mxu0 %v541
        %v696 = vpop.f32.mrf.mxu0
        %v697 = vadd.f32 0.0, %v696
        %v698 = vpop.f32.mrf.mxu0
        %v699 = vadd.f32 0.0, %v698
        %700 = vmatprep.mubr.f32.mxu0 0.0
        %701 = vmatmul.mubr.f32.gmra.mxu0 %v544
        %v702 = vpop.f32.mrf.mxu0
        %v703 = vadd.f32 0.0, %v702
        %v704 = vpop.f32.mrf.mxu0
        %v705 = vadd.f32 0.0, %v704
        %706 = vdwg.mxu0
        %707 = vmatprep.subr.mxu0 0.0
        %708 = vmatpush1.msra.mxu0 0.0
        %709 = vmatprep.subr.mxu0 0.0
        %710 = vmatpush1.msra.mxu0 0.0
        %711 = vmatprep.subr.mxu0 0.0
        %712 = vmatpush1.msra.mxu0 0.0
        %713 = vmatprep.subr.mxu0 0.0
        %714 = vmatpush1.msra.mxu0 0.0
        %715 = vmatprep.subr.mxu0 0.0
        %716 = vmatpush1.msra.mxu0 0.0
        %717 = vmatprep.subr.mxu0 0.0
        %718 = vmatpush1.msra.mxu0 0.0
        %719 = vmatprep.subr.mxu0 0.0
        %720 = vmatpush1.msra.mxu0 0.0
        %721 = vmatprep.subr.mxu0 0.0
        %722 = vmatpush1.msra.mxu0 0.0
        %723 = vmatprep.subr.mxu0 0.0
        %724 = vmatpush1.msra.mxu0 0.0
        %725 = vmatprep.subr.mxu0 0.0
        %726 = vmatpush1.msra.mxu0 0.0
        %727 = vmatprep.subr.mxu0 0.0
        %728 = vmatpush1.msra.mxu0 0.0
        %729 = vmatprep.subr.mxu0 0.0
        %730 = vmatpush1.msra.mxu0 0.0
        %731 = vmatprep.subr.mxu0 0.0
        %732 = vmatpush1.msra.mxu0 0.0
        %733 = vmatprep.subr.mxu0 0.0
        %734 = vmatpush1.msra.mxu0 0.0
        %735 = vmatprep.subr.mxu0 0.0
        %736 = vmatpush1.msra.mxu0 0.0
        %737 = vmatprep.subr.mxu0 %v496
        %738 = vmatpush1.msra.mxu0 %v495
        %739 = vmatprep.subr.mxu0 0.0
        %740 = vmatpush2.msra.mxu0 0.0
        %741 = vmatprep.subr.mxu0 0.0
        %742 = vmatpush2.msra.mxu0 0.0
        %743 = vmatprep.subr.mxu0 0.0
        %744 = vmatpush2.msra.mxu0 0.0
        %745 = vmatprep.subr.mxu0 0.0
        %746 = vmatpush2.msra.mxu0 0.0
        %747 = vmatprep.subr.mxu0 0.0
        %748 = vmatpush2.msra.mxu0 0.0
        %749 = vmatprep.subr.mxu0 0.0
        %750 = vmatpush2.msra.mxu0 0.0
        %751 = vmatprep.subr.mxu0 0.0
        %752 = vmatpush2.msra.mxu0 0.0
        %753 = vmatprep.subr.mxu0 0.0
        %754 = vmatpush2.msra.mxu0 0.0
        %755 = vmatprep.subr.mxu0 0.0
        %756 = vmatpush2.msra.mxu0 0.0
        %757 = vmatprep.subr.mxu0 0.0
        %758 = vmatpush2.msra.mxu0 0.0
        %759 = vmatprep.subr.mxu0 0.0
        %760 = vmatpush2.msra.mxu0 0.0
        %761 = vmatprep.subr.mxu0 0.0
        %762 = vmatpush2.msra.mxu0 0.0
        %763 = vmatprep.subr.mxu0 0.0
        %764 = vmatpush2.msra.mxu0 0.0
        %765 = vmatprep.subr.mxu0 0.0
        %766 = vmatpush2.msra.mxu0 0.0
        %767 = vmatprep.subr.mxu0 0.0
        %768 = vmatpush2.msra.mxu0 0.0
        %769 = vmatprep.subr.mxu0 0.0
        %770 = vmatpush2.msra.mxu0 0.0
        %771 = vmatprep.mubr.f32.mxu0 0.0
        %772 = vmatmul.mubr.f32.gmra.mxu0 %v499
        %v773 = vpop.f32.mrf.mxu0
        %v774 = vadd.f32 0.0, %v773
        %v775 = vpop.f32.mrf.mxu0
        %v776 = vadd.f32 0.0, %v775
        %777 = vmatprep.mubr.f32.mxu0 0.0
        %778 = vmatmul.mubr.f32.gmra.mxu0 %v502
        %v779 = vpop.f32.mrf.mxu0
        %v780 = vadd.f32 0.0, %v779
        %v781 = vpop.f32.mrf.mxu0
        %v782 = vadd.f32 0.0, %v781
        %783 = vmatprep.mubr.f32.mxu0 0.0
        %784 = vmatmul.mubr.f32.gmra.mxu0 %v505
        %v785 = vpop.f32.mrf.mxu0
        %v786 = vadd.f32 0.0, %v785
        %v787 = vpop.f32.mrf.mxu0
        %v788 = vadd.f32 0.0, %v787
        %789 = vmatprep.mubr.f32.mxu0 0.0
        %790 = vmatmul.mubr.f32.gmra.mxu0 %v508
        %v791 = vpop.f32.mrf.mxu0
        %v792 = vadd.f32 0.0, %v791
        %v793 = vpop.f32.mrf.mxu0
        %v794 = vadd.f32 0.0, %v793
        %795 = vmatprep.mubr.f32.mxu0 0.0
        %796 = vmatmul.mubr.f32.gmra.mxu0 %v511
        %v797 = vpop.f32.mrf.mxu0
        %v798 = vadd.f32 0.0, %v797
        %v799 = vpop.f32.mrf.mxu0
        %v800 = vadd.f32 0.0, %v799
        %801 = vmatprep.mubr.f32.mxu0 0.0
        %802 = vmatmul.mubr.f32.gmra.mxu0 %v514
        %v803 = vpop.f32.mrf.mxu0
        %v804 = vadd.f32 0.0, %v803
        %v805 = vpop.f32.mrf.mxu0
        %v806 = vadd.f32 0.0, %v805
        %807 = vmatprep.mubr.f32.mxu0 0.0
        %808 = vmatmul.mubr.f32.gmra.mxu0 %v517
        %v809 = vpop.f32.mrf.mxu0
        %v810 = vadd.f32 0.0, %v809
        %v811 = vpop.f32.mrf.mxu0
        %v812 = vadd.f32 0.0, %v811
        %813 = vmatprep.mubr.f32.mxu0 0.0
        %814 = vmatmul.mubr.f32.gmra.mxu0 %v520
        %v815 = vpop.f32.mrf.mxu0
        %v816 = vadd.f32 0.0, %v815
        %v817 = vpop.f32.mrf.mxu0
        %v818 = vadd.f32 0.0, %v817
        %819 = vmatprep.mubr.f32.mxu0 0.0
        %820 = vmatmul.mubr.f32.gmra.mxu0 %v523
        %v821 = vpop.f32.mrf.mxu0
        %v822 = vadd.f32 0.0, %v821
        %v823 = vpop.f32.mrf.mxu0
        %v824 = vadd.f32 0.0, %v823
        %825 = vmatprep.mubr.f32.mxu0 0.0
        %826 = vmatmul.mubr.f32.gmra.mxu0 %v526
        %v827 = vpop.f32.mrf.mxu0
        %v828 = vadd.f32 0.0, %v827
        %v829 = vpop.f32.mrf.mxu0
        %v830 = vadd.f32 0.0, %v829
        %831 = vmatprep.mubr.f32.mxu0 0.0
        %832 = vmatmul.mubr.f32.gmra.mxu0 %v529
        %v833 = vpop.f32.mrf.mxu0
        %v834 = vadd.f32 0.0, %v833
        %v835 = vpop.f32.mrf.mxu0
        %v836 = vadd.f32 0.0, %v835
        %837 = vmatprep.mubr.f32.mxu0 0.0
        %838 = vmatmul.mubr.f32.gmra.mxu0 %v532
        %v839 = vpop.f32.mrf.mxu0
        %v840 = vadd.f32 0.0, %v839
        %v841 = vpop.f32.mrf.mxu0
        %v842 = vadd.f32 0.0, %v841
        %843 = vmatprep.mubr.f32.mxu0 0.0
        %844 = vmatmul.mubr.f32.gmra.mxu0 %v535
        %v845 = vpop.f32.mrf.mxu0
        %v846 = vadd.f32 0.0, %v845
        %v847 = vpop.f32.mrf.mxu0
        %v848 = vadd.f32 0.0, %v847
        %849 = vmatprep.mubr.f32.mxu0 0.0
        %850 = vmatmul.mubr.f32.gmra.mxu0 %v538
        %v851 = vpop.f32.mrf.mxu0
        %v852 = vadd.f32 0.0, %v851
        %v853 = vpop.f32.mrf.mxu0
        %v854 = vadd.f32 0.0, %v853
        %855 = vmatprep.mubr.f32.mxu0 0.0
        %856 = vmatmul.mubr.f32.gmra.mxu0 %v541
        %v857 = vpop.f32.mrf.mxu0
        %v858 = vadd.f32 0.0, %v857
        %v859 = vpop.f32.mrf.mxu0
        %v860 = vadd.f32 0.0, %v859
        %861 = vmatprep.mubr.f32.mxu0 0.0
        %862 = vmatmul.mubr.f32.gmra.mxu0 %v544
        %v863 = vpop.f32.mrf.mxu0
        %v864 = vadd.f32 0.0, %v863
        %v865 = vpop.f32.mrf.mxu0
        %v866 = vadd.f32 0.0, %v865
        %867 = vdwg.mxu0
        %v868 = vlaneseq
        %v869 = vand.u32 %v868, 127
        %v870 = vadd.s32 %v869, 128
        %v871 = vadd.s32 %v869, 256
        %v872 = vadd.s32 %v869, 384
        %vm873 = vcmp.lt.s32.totalorder %v869, 0
        %v874 = vsub.s32 0, %v869
        %v875 = vsel %vm873, %v874, %v869
        %v876 = vshrl.u32 %v875, 6
        %v877 = vand.u32 %v875, 63
        %v878 = vsub.s32 0, %v877
        %v879 = vsel %vm873, %v878, %v877
        %vm880 = vcmp.lt.s32.totalorder %v870, 0
        %v881 = vsub.s32 0, %v870
        %v882 = vsel %vm880, %v881, %v870
        %v883 = vshrl.u32 %v882, 6
        %v884 = vand.u32 %v882, 63
        %v885 = vsub.s32 0, %v884
        %v886 = vsel %vm880, %v885, %v884
        %vm887 = vcmp.lt.s32.totalorder %v871, 0
        %v888 = vsub.s32 0, %v871
        %v889 = vsel %vm887, %v888, %v871
        %v890 = vshrl.u32 %v889, 6
        %v891 = vand.u32 %v889, 63
        %v892 = vsub.s32 0, %v891
        %v893 = vsel %vm887, %v892, %v891
        %vm894 = vcmp.lt.s32.totalorder %v872, 0
        %v895 = vsub.s32 0, %v872
        %v896 = vsel %vm894, %v895, %v872
        %v897 = vshrl.u32 %v896, 6
        %v898 = vand.u32 %v896, 63
        %v899 = vsub.s32 0, %v898
        %v900 = vsel %vm894, %v899, %v898
        %vm901 = vcmp.ne.s32.totalorder %v879, 0
        %vm902 = vcmp.ne.s32.totalorder %v886, 0
        %vm903 = vcmp.ne.s32.totalorder %v893, 0
        %vm904 = vcmp.ne.s32.totalorder %v900, 0
        %vm905 = vcmp.lt.s32.totalorder %v879, 0
        %vm906 = vcmp.lt.s32.totalorder %v886, 0
        %vm907 = vcmp.lt.s32.totalorder %v893, 0
        %vm908 = vcmp.lt.s32.totalorder %v900, 0
        %vm909 = vmand %vm905, %vm901
        %vm910 = vmand %vm906, %vm902
        %vm911 = vmand %vm907, %vm903
        %vm912 = vmand %vm908, %vm904
        %v913 = vadd.s32 %v879, 64
        %v914 = vadd.s32 %v886, 64
        %v915 = vadd.s32 %v893, 64
        %v916 = vadd.s32 %v900, 64
        %v917 = vsel %vm909, %v913, %v879
        %v918 = vsel %vm910, %v914, %v886
        %v919 = vsel %vm911, %v915, %v893
        %v920 = vsel %vm912, %v916, %v900
        %v921 = vcvt.s32.f32 %v917
        %v922 = vcvt.s32.f32 %v918
        %v923 = vcvt.s32.f32 %v919
        %v924 = vcvt.s32.f32 %v920
        %vm925 = vcmp.eq.f32.partialorder %v613, %v921
        %vm926 = vcmp.eq.f32.partialorder %v615, %v922
        %vm927 = vcmp.eq.f32.partialorder %v774, %v923
        %vm928 = vcmp.eq.f32.partialorder %v776, %v924
        %vm929 = vcmp.eq.f32.partialorder %v619, %v921
        %vm930 = vcmp.eq.f32.partialorder %v621, %v922
        %vm931 = vcmp.eq.f32.partialorder %v780, %v923
        %vm932 = vcmp.eq.f32.partialorder %v782, %v924
        %vm933 = vcmp.eq.f32.partialorder %v625, %v921
        %vm934 = vcmp.eq.f32.partialorder %v627, %v922
        %vm935 = vcmp.eq.f32.partialorder %v786, %v923
        %vm936 = vcmp.eq.f32.partialorder %v788, %v924
        %vm937 = vcmp.eq.f32.partialorder %v631, %v921
        %vm938 = vcmp.eq.f32.partialorder %v633, %v922
        %vm939 = vcmp.eq.f32.partialorder %v792, %v923
        %vm940 = vcmp.eq.f32.partialorder %v794, %v924
        %vm941 = vcmp.eq.f32.partialorder %v637, %v921
        %vm942 = vcmp.eq.f32.partialorder %v639, %v922
        %vm943 = vcmp.eq.f32.partialorder %v798, %v923
        %vm944 = vcmp.eq.f32.partialorder %v800, %v924
        %vm945 = vcmp.eq.f32.partialorder %v643, %v921
        %vm946 = vcmp.eq.f32.partialorder %v645, %v922
        %vm947 = vcmp.eq.f32.partialorder %v804, %v923
        %vm948 = vcmp.eq.f32.partialorder %v806, %v924
        %vm949 = vcmp.eq.f32.partialorder %v649, %v921
        %vm950 = vcmp.eq.f32.partialorder %v651, %v922
        %vm951 = vcmp.eq.f32.partialorder %v810, %v923
        %vm952 = vcmp.eq.f32.partialorder %v812, %v924
        %vm953 = vcmp.eq.f32.partialorder %v655, %v921
        %vm954 = vcmp.eq.f32.partialorder %v657, %v922
        %vm955 = vcmp.eq.f32.partialorder %v816, %v923
        %vm956 = vcmp.eq.f32.partialorder %v818, %v924
        %vm957 = vcmp.eq.f32.partialorder %v661, %v921
        %vm958 = vcmp.eq.f32.partialorder %v663, %v922
        %vm959 = vcmp.eq.f32.partialorder %v822, %v923
        %vm960 = vcmp.eq.f32.partialorder %v824, %v924
        %vm961 = vcmp.eq.f32.partialorder %v667, %v921
        %vm962 = vcmp.eq.f32.partialorder %v669, %v922
        %vm963 = vcmp.eq.f32.partialorder %v828, %v923
        %vm964 = vcmp.eq.f32.partialorder %v830, %v924
        %vm965 = vcmp.eq.f32.partialorder %v673, %v921
        %vm966 = vcmp.eq.f32.partialorder %v675, %v922
        %vm967 = vcmp.eq.f32.partialorder %v834, %v923
        %vm968 = vcmp.eq.f32.partialorder %v836, %v924
        %vm969 = vcmp.eq.f32.partialorder %v679, %v921
        %vm970 = vcmp.eq.f32.partialorder %v681, %v922
        %vm971 = vcmp.eq.f32.partialorder %v840, %v923
        %vm972 = vcmp.eq.f32.partialorder %v842, %v924
        %vm973 = vcmp.eq.f32.partialorder %v685, %v921
        %vm974 = vcmp.eq.f32.partialorder %v687, %v922
        %vm975 = vcmp.eq.f32.partialorder %v846, %v923
        %vm976 = vcmp.eq.f32.partialorder %v848, %v924
        %vm977 = vcmp.eq.f32.partialorder %v691, %v921
        %vm978 = vcmp.eq.f32.partialorder %v693, %v922
        %vm979 = vcmp.eq.f32.partialorder %v852, %v923
        %vm980 = vcmp.eq.f32.partialorder %v854, %v924
        %vm981 = vcmp.eq.f32.partialorder %v697, %v921
        %vm982 = vcmp.eq.f32.partialorder %v699, %v922
        %vm983 = vcmp.eq.f32.partialorder %v858, %v923
        %vm984 = vcmp.eq.f32.partialorder %v860, %v924
        %vm985 = vcmp.eq.f32.partialorder %v703, %v921
        %vm986 = vcmp.eq.f32.partialorder %v705, %v922
        %vm987 = vcmp.eq.f32.partialorder %v864, %v923
        %vm988 = vcmp.eq.f32.partialorder %v866, %v924
        %v989 = vsel %vm925, 1.0, 0.0
        %v990 = vsel %vm926, 1.0, 0.0
        %v991 = vsel %vm927, 1.0, 0.0
        %v992 = vsel %vm928, 1.0, 0.0
        %v993 = vsel %vm929, 1.0, 0.0
        %v994 = vsel %vm930, 1.0, 0.0
        %v995 = vsel %vm931, 1.0, 0.0
        %v996 = vsel %vm932, 1.0, 0.0
        %v997 = vsel %vm933, 1.0, 0.0
        %v998 = vsel %vm934, 1.0, 0.0
        %v999 = vsel %vm935, 1.0, 0.0
        %v1000 = vsel %vm936, 1.0, 0.0
        %v1001 = vsel %vm937, 1.0, 0.0
        %v1002 = vsel %vm938, 1.0, 0.0
        %v1003 = vsel %vm939, 1.0, 0.0
        %v1004 = vsel %vm940, 1.0, 0.0
        %v1005 = vsel %vm941, 1.0, 0.0
        %v1006 = vsel %vm942, 1.0, 0.0
        %v1007 = vsel %vm943, 1.0, 0.0
        %v1008 = vsel %vm944, 1.0, 0.0
        %v1009 = vsel %vm945, 1.0, 0.0
        %v1010 = vsel %vm946, 1.0, 0.0
        %v1011 = vsel %vm947, 1.0, 0.0
        %v1012 = vsel %vm948, 1.0, 0.0
        %v1013 = vsel %vm949, 1.0, 0.0
        %v1014 = vsel %vm950, 1.0, 0.0
        %v1015 = vsel %vm951, 1.0, 0.0
        %v1016 = vsel %vm952, 1.0, 0.0
        %v1017 = vsel %vm953, 1.0, 0.0
        %v1018 = vsel %vm954, 1.0, 0.0
        %v1019 = vsel %vm955, 1.0, 0.0
        %v1020 = vsel %vm956, 1.0, 0.0
        %v1021 = vsel %vm957, 1.0, 0.0
        %v1022 = vsel %vm958, 1.0, 0.0
        %v1023 = vsel %vm959, 1.0, 0.0
        %v1024 = vsel %vm960, 1.0, 0.0
        %v1025 = vsel %vm961, 1.0, 0.0
        %v1026 = vsel %vm962, 1.0, 0.0
        %v1027 = vsel %vm963, 1.0, 0.0
        %v1028 = vsel %vm964, 1.0, 0.0
        %v1029 = vsel %vm965, 1.0, 0.0
        %v1030 = vsel %vm966, 1.0, 0.0
        %v1031 = vsel %vm967, 1.0, 0.0
        %v1032 = vsel %vm968, 1.0, 0.0
        %v1033 = vsel %vm969, 1.0, 0.0
        %v1034 = vsel %vm970, 1.0, 0.0
        %v1035 = vsel %vm971, 1.0, 0.0
        %v1036 = vsel %vm972, 1.0, 0.0
        %v1037 = vsel %vm973, 1.0, 0.0
        %v1038 = vsel %vm974, 1.0, 0.0
        %v1039 = vsel %vm975, 1.0, 0.0
        %v1040 = vsel %vm976, 1.0, 0.0
        %v1041 = vsel %vm977, 1.0, 0.0
        %v1042 = vsel %vm978, 1.0, 0.0
        %v1043 = vsel %vm979, 1.0, 0.0
        %v1044 = vsel %vm980, 1.0, 0.0
        %v1045 = vsel %vm981, 1.0, 0.0
        %v1046 = vsel %vm982, 1.0, 0.0
        %v1047 = vsel %vm983, 1.0, 0.0
        %v1048 = vsel %vm984, 1.0, 0.0
        %v1049 = vsel %vm985, 1.0, 0.0
        %v1050 = vsel %vm986, 1.0, 0.0
        %v1051 = vsel %vm987, 1.0, 0.0
        %v1052 = vsel %vm988, 1.0, 0.0
        %v1053 = vld [vmem:[%s2] sm:$0xff]
        %v1054 = vld [vmem:[%s2 + $0x8] sm:$0xff]
        %v1055 = vld [vmem:[%s2 + $0x10] sm:$0xff]
        %v1056 = vld [vmem:[%s2 + $0x18] sm:$0xff]
        %v1057 = vld [vmem:[%s2 + $0x20] sm:$0xff]
        %v1058 = vld [vmem:[%s2 + $0x28] sm:$0xff]
        %v1059 = vld [vmem:[%s2 + $0x30] sm:$0xff]
        %v1060 = vld [vmem:[%s2 + $0x38] sm:$0xff]
        %v1061 = vld [vmem:[%s2 + $0x40] sm:$0xff]
        %v1062 = vld [vmem:[%s2 + $0x48] sm:$0xff]
        %v1063 = vld [vmem:[%s2 + $0x50] sm:$0xff]
        %v1064 = vld [vmem:[%s2 + $0x58] sm:$0xff]
        %v1065 = vld [vmem:[%s2 + $0x60] sm:$0xff]
        %v1066 = vld [vmem:[%s2 + $0x68] sm:$0xff]
        %v1067 = vld [vmem:[%s2 + $0x70] sm:$0xff]
        %v1068 = vld [vmem:[%s2 + $0x78] sm:$0xff]
        %v1069 = vld [vmem:[%s2 + $0x80] sm:$0xff]
        %v1070 = vld [vmem:[%s2 + $0x88] sm:$0xff]
        %v1071 = vld [vmem:[%s2 + $0x90] sm:$0xff]
        %v1072 = vld [vmem:[%s2 + $0x98] sm:$0xff]
        %v1073 = vld [vmem:[%s2 + $0xa0] sm:$0xff]
        %v1074 = vld [vmem:[%s2 + $0xa8] sm:$0xff]
        %v1075 = vld [vmem:[%s2 + $0xb0] sm:$0xff]
        %v1076 = vld [vmem:[%s2 + $0xb8] sm:$0xff]
        %v1077 = vld [vmem:[%s2 + $0xc0] sm:$0xff]
        %v1078 = vld [vmem:[%s2 + $0xc8] sm:$0xff]
        %v1079 = vld [vmem:[%s2 + $0xd0] sm:$0xff]
        %v1080 = vld [vmem:[%s2 + $0xd8] sm:$0xff]
        %v1081 = vld [vmem:[%s2 + $0xe0] sm:$0xff]
        %v1082 = vld [vmem:[%s2 + $0xe8] sm:$0xff]
        %v1083 = vld [vmem:[%s2 + $0xf0] sm:$0xff]
        %v1084 = vld [vmem:[%s2 + $0xf8] sm:$0xff]
        %v1085 = vld [vmem:[%s2 + $0x100] sm:$0xff]
        %v1086 = vld [vmem:[%s2 + $0x108] sm:$0xff]
        %v1087 = vld [vmem:[%s2 + $0x110] sm:$0xff]
        %v1088 = vld [vmem:[%s2 + $0x118] sm:$0xff]
        %v1089 = vld [vmem:[%s2 + $0x120] sm:$0xff]
        %v1090 = vld [vmem:[%s2 + $0x128] sm:$0xff]
        %v1091 = vld [vmem:[%s2 + $0x130] sm:$0xff]
        %v1092 = vld [vmem:[%s2 + $0x138] sm:$0xff]
        %v1093 = vld [vmem:[%s2 + $0x140] sm:$0xff]
        %v1094 = vld [vmem:[%s2 + $0x148] sm:$0xff]
        %v1095 = vld [vmem:[%s2 + $0x150] sm:$0xff]
        %v1096 = vld [vmem:[%s2 + $0x158] sm:$0xff]
        %v1097 = vld [vmem:[%s2 + $0x160] sm:$0xff]
        %v1098 = vld [vmem:[%s2 + $0x168] sm:$0xff]
        %v1099 = vld [vmem:[%s2 + $0x170] sm:$0xff]
        %v1100 = vld [vmem:[%s2 + $0x178] sm:$0xff]
        %v1101 = vld [vmem:[%s2 + $0x180] sm:$0xff]
        %v1102 = vld [vmem:[%s2 + $0x188] sm:$0xff]
        %v1103 = vld [vmem:[%s2 + $0x190] sm:$0xff]
        %v1104 = vld [vmem:[%s2 + $0x198] sm:$0xff]
        %v1105 = vld [vmem:[%s2 + $0x1a0] sm:$0xff]
        %v1106 = vld [vmem:[%s2 + $0x1a8] sm:$0xff]
        %v1107 = vld [vmem:[%s2 + $0x1b0] sm:$0xff]
        %v1108 = vld [vmem:[%s2 + $0x1b8] sm:$0xff]
        %v1109 = vld [vmem:[%s2 + $0x1c0] sm:$0xff]
        %v1110 = vld [vmem:[%s2 + $0x1c8] sm:$0xff]
        %v1111 = vld [vmem:[%s2 + $0x1d0] sm:$0xff]
        %v1112 = vld [vmem:[%s2 + $0x1d8] sm:$0xff]
        %v1113 = vld [vmem:[%s2 + $0x1e0] sm:$0xff]
        %v1114 = vld [vmem:[%s2 + $0x1e8] sm:$0xff]
        %v1115 = vld [vmem:[%s2 + $0x1f0] sm:$0xff]
        %v1116 = vld [vmem:[%s2 + $0x1f8] sm:$0xff]
        %v1117 = vld [vmem:[%s3] sm:$0x1]
        %v1119 = vlaneseq
        %v1120 = vshrl.u32 %v1119, 7
        %v1121 = vsub.s32 0, %v1120
        %v1122 = vrot.slane %v1117, %v1121
        %1124 = vmatprep.subr.mxu0 0.0
        %1125 = vmatpush1.msra.mxu0 %v1068
        %1126 = vmatprep.subr.mxu0 0.0
        %1127 = vmatpush1.msra.mxu0 %v1067
        %1128 = vmatprep.subr.mxu0 0.0
        %1129 = vmatpush1.msra.mxu0 %v1066
        %1130 = vmatprep.subr.mxu0 0.0
        %1131 = vmatpush1.msra.mxu0 %v1065
        %1132 = vmatprep.subr.mxu0 0.0
        %1133 = vmatpush1.msra.mxu0 %v1064
        %1134 = vmatprep.subr.mxu0 0.0
        %1135 = vmatpush1.msra.mxu0 %v1063
        %1136 = vmatprep.subr.mxu0 0.0
        %1137 = vmatpush1.msra.mxu0 %v1062
        %1138 = vmatprep.subr.mxu0 0.0
        %1139 = vmatpush1.msra.mxu0 %v1061
        %1140 = vmatprep.subr.mxu0 0.0
        %1141 = vmatpush1.msra.mxu0 %v1060
        %1142 = vmatprep.subr.mxu0 0.0
        %1143 = vmatpush1.msra.mxu0 %v1059
        %1144 = vmatprep.subr.mxu0 0.0
        %1145 = vmatpush1.msra.mxu0 %v1058
        %1146 = vmatprep.subr.mxu0 0.0
        %1147 = vmatpush1.msra.mxu0 %v1057
        %1148 = vmatprep.subr.mxu0 0.0
        %1149 = vmatpush1.msra.mxu0 %v1056
        %1150 = vmatprep.subr.mxu0 0.0
        %1151 = vmatpush1.msra.mxu0 %v1055
        %1152 = vmatprep.subr.mxu0 0.0
        %1153 = vmatpush1.msra.mxu0 %v1054
        %1154 = vmatprep.subr.mxu0 0.0
        %1155 = vmatpush1.msra.mxu0 %v1053
        %1156 = vmatprep.subr.mxu0 0.0
        %1157 = vmatpush2.msra.mxu0 %v1084
        %1158 = vmatprep.subr.mxu0 0.0
        %1159 = vmatpush2.msra.mxu0 %v1083
        %1160 = vmatprep.subr.mxu0 0.0
        %1161 = vmatpush2.msra.mxu0 %v1082
        %1162 = vmatprep.subr.mxu0 0.0
        %1163 = vmatpush2.msra.mxu0 %v1081
        %1164 = vmatprep.subr.mxu0 0.0
        %1165 = vmatpush2.msra.mxu0 %v1080
        %1166 = vmatprep.subr.mxu0 0.0
        %1167 = vmatpush2.msra.mxu0 %v1079
        %1168 = vmatprep.subr.mxu0 0.0
        %1169 = vmatpush2.msra.mxu0 %v1078
        %1170 = vmatprep.subr.mxu0 0.0
        %1171 = vmatpush2.msra.mxu0 %v1077
        %1172 = vmatprep.subr.mxu0 0.0
        %1173 = vmatpush2.msra.mxu0 %v1076
        %1174 = vmatprep.subr.mxu0 0.0
        %1175 = vmatpush2.msra.mxu0 %v1075
        %1176 = vmatprep.subr.mxu0 0.0
        %1177 = vmatpush2.msra.mxu0 %v1074
        %1178 = vmatprep.subr.mxu0 0.0
        %1179 = vmatpush2.msra.mxu0 %v1073
        %1180 = vmatprep.subr.mxu0 0.0
        %1181 = vmatpush2.msra.mxu0 %v1072
        %1182 = vmatprep.subr.mxu0 0.0
        %1183 = vmatpush2.msra.mxu0 %v1071
        %1184 = vmatprep.subr.mxu0 0.0
        %1185 = vmatpush2.msra.mxu0 %v1070
        %1186 = vmatprep.subr.mxu0 0.0
        %1187 = vmatpush2.msra.mxu0 %v1069
        %1188 = vmatprep.mubr.f32.mxu0 %v990
        %1189 = vmatmul.mubr.f32.gmra.mxu0 %v989
        %v1190 = vpop.f32.mrf.mxu0
        %v1191 = vadd.f32 %v1122, %v1190
        %v1192 = vpop.f32.mrf.mxu0
        %1193 = vmatprep.mubr.f32.mxu0 %v994
        %1194 = vmatmul.mubr.f32.gmra.mxu0 %v993
        %v1195 = vpop.f32.mrf.mxu0
        %v1196 = vadd.f32 %v1122, %v1195
        %v1197 = vpop.f32.mrf.mxu0
        %1198 = vmatprep.mubr.f32.mxu0 %v998
        %1199 = vmatmul.mubr.f32.gmra.mxu0 %v997
        %v1200 = vpop.f32.mrf.mxu0
        %v1201 = vadd.f32 %v1122, %v1200
        %v1202 = vpop.f32.mrf.mxu0
        %1203 = vmatprep.mubr.f32.mxu0 %v1002
        %1204 = vmatmul.mubr.f32.gmra.mxu0 %v1001
        %v1205 = vpop.f32.mrf.mxu0
        %v1206 = vadd.f32 %v1122, %v1205
        %v1207 = vpop.f32.mrf.mxu0
        %1208 = vmatprep.mubr.f32.mxu0 %v1006
        %1209 = vmatmul.mubr.f32.gmra.mxu0 %v1005
        %v1210 = vpop.f32.mrf.mxu0
        %v1211 = vadd.f32 %v1122, %v1210
        %v1212 = vpop.f32.mrf.mxu0
        %1213 = vmatprep.mubr.f32.mxu0 %v1010
        %1214 = vmatmul.mubr.f32.gmra.mxu0 %v1009
        %v1215 = vpop.f32.mrf.mxu0
        %v1216 = vadd.f32 %v1122, %v1215
        %v1217 = vpop.f32.mrf.mxu0
        %1218 = vmatprep.mubr.f32.mxu0 %v1014
        %1219 = vmatmul.mubr.f32.gmra.mxu0 %v1013
        %v1220 = vpop.f32.mrf.mxu0
        %v1221 = vadd.f32 %v1122, %v1220
        %v1222 = vpop.f32.mrf.mxu0
        %1223 = vmatprep.mubr.f32.mxu0 %v1018
        %1224 = vmatmul.mubr.f32.gmra.mxu0 %v1017
        %v1225 = vpop.f32.mrf.mxu0
        %v1226 = vadd.f32 %v1122, %v1225
        %v1227 = vpop.f32.mrf.mxu0
        %1228 = vmatprep.mubr.f32.mxu0 %v1022
        %1229 = vmatmul.mubr.f32.gmra.mxu0 %v1021
        %v1230 = vpop.f32.mrf.mxu0
        %v1231 = vadd.f32 %v1122, %v1230
        %v1232 = vpop.f32.mrf.mxu0
        %1233 = vmatprep.mubr.f32.mxu0 %v1026
        %1234 = vmatmul.mubr.f32.gmra.mxu0 %v1025
        %v1235 = vpop.f32.mrf.mxu0
        %v1236 = vadd.f32 %v1122, %v1235
        %v1237 = vpop.f32.mrf.mxu0
        %1238 = vmatprep.mubr.f32.mxu0 %v1030
        %1239 = vmatmul.mubr.f32.gmra.mxu0 %v1029
        %v1240 = vpop.f32.mrf.mxu0
        %v1241 = vadd.f32 %v1122, %v1240
        %v1242 = vpop.f32.mrf.mxu0
        %1243 = vmatprep.mubr.f32.mxu0 %v1034
        %1244 = vmatmul.mubr.f32.gmra.mxu0 %v1033
        %v1245 = vpop.f32.mrf.mxu0
        %v1246 = vadd.f32 %v1122, %v1245
        %v1247 = vpop.f32.mrf.mxu0
        %1248 = vmatprep.mubr.f32.mxu0 %v1038
        %1249 = vmatmul.mubr.f32.gmra.mxu0 %v1037
        %v1250 = vpop.f32.mrf.mxu0
        %v1251 = vadd.f32 %v1122, %v1250
        %v1252 = vpop.f32.mrf.mxu0
        %1253 = vmatprep.mubr.f32.mxu0 %v1042
        %1254 = vmatmul.mubr.f32.gmra.mxu0 %v1041
        %v1255 = vpop.f32.mrf.mxu0
        %v1256 = vadd.f32 %v1122, %v1255
        %v1257 = vpop.f32.mrf.mxu0
        %1258 = vmatprep.mubr.f32.mxu0 %v1046
        %1259 = vmatmul.mubr.f32.gmra.mxu0 %v1045
        %v1260 = vpop.f32.mrf.mxu0
        %v1261 = vadd.f32 %v1122, %v1260
        %v1262 = vpop.f32.mrf.mxu0
        %1263 = vmatprep.mubr.f32.mxu0 %v1050
        %1264 = vmatmul.mubr.f32.gmra.mxu0 %v1049
        %v1265 = vpop.f32.mrf.mxu0
        %v1266 = vadd.f32 %v1122, %v1265
        %v1267 = vpop.f32.mrf.mxu0
        %1268 = vdwg.mxu0
        %1269 = vmatprep.subr.mxu0 0.0
        %1270 = vmatpush1.msra.mxu0 %v1100
        %1271 = vmatprep.subr.mxu0 0.0
        %1272 = vmatpush1.msra.mxu0 %v1099
        %1273 = vmatprep.subr.mxu0 0.0
        %1274 = vmatpush1.msra.mxu0 %v1098
        %1275 = vmatprep.subr.mxu0 0.0
        %1276 = vmatpush1.msra.mxu0 %v1097
        %1277 = vmatprep.subr.mxu0 0.0
        %1278 = vmatpush1.msra.mxu0 %v1096
        %1279 = vmatprep.subr.mxu0 0.0
        %1280 = vmatpush1.msra.mxu0 %v1095
        %1281 = vmatprep.subr.mxu0 0.0
        %1282 = vmatpush1.msra.mxu0 %v1094
        %1283 = vmatprep.subr.mxu0 0.0
        %1284 = vmatpush1.msra.mxu0 %v1093
        %1285 = vmatprep.subr.mxu0 0.0
        %1286 = vmatpush1.msra.mxu0 %v1092
        %1287 = vmatprep.subr.mxu0 0.0
        %1288 = vmatpush1.msra.mxu0 %v1091
        %1289 = vmatprep.subr.mxu0 0.0
        %1290 = vmatpush1.msra.mxu0 %v1090
        %1291 = vmatprep.subr.mxu0 0.0
        %1292 = vmatpush1.msra.mxu0 %v1089
        %1293 = vmatprep.subr.mxu0 0.0
        %1294 = vmatpush1.msra.mxu0 %v1088
        %1295 = vmatprep.subr.mxu0 0.0
        %1296 = vmatpush1.msra.mxu0 %v1087
        %1297 = vmatprep.subr.mxu0 0.0
        %1298 = vmatpush1.msra.mxu0 %v1086
        %1299 = vmatprep.subr.mxu0 0.0
        %1300 = vmatpush1.msra.mxu0 %v1085
        %1301 = vmatprep.subr.mxu0 0.0
        %1302 = vmatpush2.msra.mxu0 %v1116
        %1303 = vmatprep.subr.mxu0 0.0
        %1304 = vmatpush2.msra.mxu0 %v1115
        %1305 = vmatprep.subr.mxu0 0.0
        %1306 = vmatpush2.msra.mxu0 %v1114
        %1307 = vmatprep.subr.mxu0 0.0
        %1308 = vmatpush2.msra.mxu0 %v1113
        %1309 = vmatprep.subr.mxu0 0.0
        %1310 = vmatpush2.msra.mxu0 %v1112
        %1311 = vmatprep.subr.mxu0 0.0
        %1312 = vmatpush2.msra.mxu0 %v1111
        %1313 = vmatprep.subr.mxu0 0.0
        %1314 = vmatpush2.msra.mxu0 %v1110
        %1315 = vmatprep.subr.mxu0 0.0
        %1316 = vmatpush2.msra.mxu0 %v1109
        %1317 = vmatprep.subr.mxu0 0.0
        %1318 = vmatpush2.msra.mxu0 %v1108
        %1319 = vmatprep.subr.mxu0 0.0
        %1320 = vmatpush2.msra.mxu0 %v1107
        %1321 = vmatprep.subr.mxu0 0.0
        %1322 = vmatpush2.msra.mxu0 %v1106
        %1323 = vmatprep.subr.mxu0 0.0
        %1324 = vmatpush2.msra.mxu0 %v1105
        %1325 = vmatprep.subr.mxu0 0.0
        %1326 = vmatpush2.msra.mxu0 %v1104
        %1327 = vmatprep.subr.mxu0 0.0
        %1328 = vmatpush2.msra.mxu0 %v1103
        %1329 = vmatprep.subr.mxu0 0.0
        %1330 = vmatpush2.msra.mxu0 %v1102
        %1331 = vmatprep.subr.mxu0 0.0
        %1332 = vmatpush2.msra.mxu0 %v1101
        %1333 = vmatprep.mubr.f32.mxu0 %v992
        %1334 = vmatmul.mubr.f32.gmra.mxu0 %v991
        %v1335 = vpop.f32.mrf.mxu0
        %v1336 = vadd.f32 %v1191, %v1335
        %v1337 = vpop.f32.mrf.mxu0
        %1338 = vmatprep.mubr.f32.mxu0 %v996
        %1339 = vmatmul.mubr.f32.gmra.mxu0 %v995
        %v1340 = vpop.f32.mrf.mxu0
        %v1341 = vadd.f32 %v1196, %v1340
        %v1342 = vpop.f32.mrf.mxu0
        %1343 = vmatprep.mubr.f32.mxu0 %v1000
        %1344 = vmatmul.mubr.f32.gmra.mxu0 %v999
        %v1345 = vpop.f32.mrf.mxu0
        %v1346 = vadd.f32 %v1201, %v1345
        %v1347 = vpop.f32.mrf.mxu0
        %1348 = vmatprep.mubr.f32.mxu0 %v1004
        %1349 = vmatmul.mubr.f32.gmra.mxu0 %v1003
        %v1350 = vpop.f32.mrf.mxu0
        %v1351 = vadd.f32 %v1206, %v1350
        %v1352 = vpop.f32.mrf.mxu0
        %1353 = vmatprep.mubr.f32.mxu0 %v1008
        %1354 = vmatmul.mubr.f32.gmra.mxu0 %v1007
        %v1355 = vpop.f32.mrf.mxu0
        %v1356 = vadd.f32 %v1211, %v1355
        %v1357 = vpop.f32.mrf.mxu0
        %1358 = vmatprep.mubr.f32.mxu0 %v1012
        %1359 = vmatmul.mubr.f32.gmra.mxu0 %v1011
        %v1360 = vpop.f32.mrf.mxu0
        %v1361 = vadd.f32 %v1216, %v1360
        %v1362 = vpop.f32.mrf.mxu0
        %1363 = vmatprep.mubr.f32.mxu0 %v1016
        %1364 = vmatmul.mubr.f32.gmra.mxu0 %v1015
        %v1365 = vpop.f32.mrf.mxu0
        %v1366 = vadd.f32 %v1221, %v1365
        %v1367 = vpop.f32.mrf.mxu0
        %1368 = vmatprep.mubr.f32.mxu0 %v1020
        %1369 = vmatmul.mubr.f32.gmra.mxu0 %v1019
        %v1370 = vpop.f32.mrf.mxu0
        %v1371 = vadd.f32 %v1226, %v1370
        %v1372 = vpop.f32.mrf.mxu0
        %1373 = vmatprep.mubr.f32.mxu0 %v1024
        %1374 = vmatmul.mubr.f32.gmra.mxu0 %v1023
        %v1375 = vpop.f32.mrf.mxu0
        %v1376 = vadd.f32 %v1231, %v1375
        %v1377 = vpop.f32.mrf.mxu0
        %1378 = vmatprep.mubr.f32.mxu0 %v1028
        %1379 = vmatmul.mubr.f32.gmra.mxu0 %v1027
        %v1380 = vpop.f32.mrf.mxu0
        %v1381 = vadd.f32 %v1236, %v1380
        %v1382 = vpop.f32.mrf.mxu0
        %1383 = vmatprep.mubr.f32.mxu0 %v1032
        %1384 = vmatmul.mubr.f32.gmra.mxu0 %v1031
        %v1385 = vpop.f32.mrf.mxu0
        %v1386 = vadd.f32 %v1241, %v1385
        %v1387 = vpop.f32.mrf.mxu0
        %1388 = vmatprep.mubr.f32.mxu0 %v1036
        %1389 = vmatmul.mubr.f32.gmra.mxu0 %v1035
        %v1390 = vpop.f32.mrf.mxu0
        %v1391 = vadd.f32 %v1246, %v1390
        %v1392 = vpop.f32.mrf.mxu0
        %1393 = vmatprep.mubr.f32.mxu0 %v1040
        %1394 = vmatmul.mubr.f32.gmra.mxu0 %v1039
        %v1395 = vpop.f32.mrf.mxu0
        %v1396 = vadd.f32 %v1251, %v1395
        %v1397 = vpop.f32.mrf.mxu0
        %1398 = vmatprep.mubr.f32.mxu0 %v1044
        %1399 = vmatmul.mubr.f32.gmra.mxu0 %v1043
        %v1400 = vpop.f32.mrf.mxu0
        %v1401 = vadd.f32 %v1256, %v1400
        %v1402 = vpop.f32.mrf.mxu0
        %1403 = vmatprep.mubr.f32.mxu0 %v1048
        %1404 = vmatmul.mubr.f32.gmra.mxu0 %v1047
        %v1405 = vpop.f32.mrf.mxu0
        %v1406 = vadd.f32 %v1261, %v1405
        %v1407 = vpop.f32.mrf.mxu0
        %1408 = vmatprep.mubr.f32.mxu0 %v1052
        %1409 = vmatmul.mubr.f32.gmra.mxu0 %v1051
        %v1410 = vpop.f32.mrf.mxu0
        %v1411 = vadd.f32 %v1266, %v1410
        %v1412 = vpop.f32.mrf.mxu0
        %1413 = vdwg.mxu0
        %v1414 = vmax.f32 %v1336, 0.0
        %v1415 = vmax.f32 %v1341, 0.0
        %v1416 = vmax.f32 %v1346, 0.0
        %v1417 = vmax.f32 %v1351, 0.0
        %v1418 = vmax.f32 %v1356, 0.0
        %v1419 = vmax.f32 %v1361, 0.0
        %v1420 = vmax.f32 %v1366, 0.0
        %v1421 = vmax.f32 %v1371, 0.0
        %v1422 = vmax.f32 %v1376, 0.0
        %v1423 = vmax.f32 %v1381, 0.0
        %v1424 = vmax.f32 %v1386, 0.0
        %v1425 = vmax.f32 %v1391, 0.0
        %v1426 = vmax.f32 %v1396, 0.0
        %v1427 = vmax.f32 %v1401, 0.0
        %v1428 = vmax.f32 %v1406, 0.0
        %v1429 = vmax.f32 %v1411, 0.0
        %v1430 = vld [vmem:[%s4] sm:$0xff]
        %v1431 = vld [vmem:[%s4 + $0x8] sm:$0xff]
        %v1432 = vld [vmem:[%s4 + $0x10] sm:$0xff]
        %v1433 = vld [vmem:[%s4 + $0x18] sm:$0xff]
        %v1434 = vld [vmem:[%s4 + $0x20] sm:$0xff]
        %v1435 = vld [vmem:[%s4 + $0x28] sm:$0xff]
        %v1436 = vld [vmem:[%s4 + $0x30] sm:$0xff]
        %v1437 = vld [vmem:[%s4 + $0x38] sm:$0xff]
        %v1438 = vld [vmem:[%s4 + $0x40] sm:$0xff]
        %v1439 = vld [vmem:[%s4 + $0x48] sm:$0xff]
        %v1440 = vld [vmem:[%s4 + $0x50] sm:$0xff]
        %v1441 = vld [vmem:[%s4 + $0x58] sm:$0xff]
        %v1442 = vld [vmem:[%s4 + $0x60] sm:$0xff]
        %v1443 = vld [vmem:[%s4 + $0x68] sm:$0xff]
        %v1444 = vld [vmem:[%s4 + $0x70] sm:$0xff]
        %v1445 = vld [vmem:[%s4 + $0x78] sm:$0xff]
        %v1446 = vld [vmem:[%s5] sm:$0x1]
        %v1448 = vlaneseq
        %v1449 = vshrl.u32 %v1448, 7
        %v1450 = vsub.s32 0, %v1449
        %v1451 = vrot.slane %v1446, %v1450
        %1453 = vmatprep.subr.mxu0 0.0
        %1454 = vmatpush1.msra.mxu0 %v1445
        %1455 = vmatprep.subr.mxu0 0.0
        %1456 = vmatpush1.msra.mxu0 %v1444
        %1457 = vmatprep.subr.mxu0 0.0
        %1458 = vmatpush1.msra.mxu0 %v1443
        %1459 = vmatprep.subr.mxu0 0.0
        %1460 = vmatpush1.msra.mxu0 %v1442
        %1461 = vmatprep.subr.mxu0 0.0
        %1462 = vmatpush1.msra.mxu0 %v1441
        %1463 = vmatprep.subr.mxu0 0.0
        %1464 = vmatpush1.msra.mxu0 %v1440
        %1465 = vmatprep.subr.mxu0 0.0
        %1466 = vmatpush1.msra.mxu0 %v1439
        %1467 = vmatprep.subr.mxu0 0.0
        %1468 = vmatpush1.msra.mxu0 %v1438
        %1469 = vmatprep.subr.mxu0 0.0
        %1470 = vmatpush1.msra.mxu0 %v1437
        %1471 = vmatprep.subr.mxu0 0.0
        %1472 = vmatpush1.msra.mxu0 %v1436
        %1473 = vmatprep.subr.mxu0 0.0
        %1474 = vmatpush1.msra.mxu0 %v1435
        %1475 = vmatprep.subr.mxu0 0.0
        %1476 = vmatpush1.msra.mxu0 %v1434
        %1477 = vmatprep.subr.mxu0 0.0
        %1478 = vmatpush1.msra.mxu0 %v1433
        %1479 = vmatprep.subr.mxu0 0.0
        %1480 = vmatpush1.msra.mxu0 %v1432
        %1481 = vmatprep.subr.mxu0 0.0
        %1482 = vmatpush1.msra.mxu0 %v1431
        %1483 = vmatprep.subr.mxu0 0.0
        %1484 = vmatpush1.msra.mxu0 %v1430
        %1485 = vmatprep.subr.mxu0 0.0
        %1486 = vmatpush2.msra.mxu0 0.0
        %1487 = vmatprep.subr.mxu0 0.0
        %1488 = vmatpush2.msra.mxu0 0.0
        %1489 = vmatprep.subr.mxu0 0.0
        %1490 = vmatpush2.msra.mxu0 0.0
        %1491 = vmatprep.subr.mxu0 0.0
        %1492 = vmatpush2.msra.mxu0 0.0
        %1493 = vmatprep.subr.mxu0 0.0
        %1494 = vmatpush2.msra.mxu0 0.0
        %1495 = vmatprep.subr.mxu0 0.0
        %1496 = vmatpush2.msra.mxu0 0.0
        %1497 = vmatprep.subr.mxu0 0.0
        %1498 = vmatpush2.msra.mxu0 0.0
        %1499 = vmatprep.subr.mxu0 0.0
        %1500 = vmatpush2.msra.mxu0 0.0
        %1501 = vmatprep.subr.mxu0 0.0
        %1502 = vmatpush2.msra.mxu0 0.0
        %1503 = vmatprep.subr.mxu0 0.0
        %1504 = vmatpush2.msra.mxu0 0.0
        %1505 = vmatprep.subr.mxu0 0.0
        %1506 = vmatpush2.msra.mxu0 0.0
        %1507 = vmatprep.subr.mxu0 0.0
        %1508 = vmatpush2.msra.mxu0 0.0
        %1509 = vmatprep.subr.mxu0 0.0
        %1510 = vmatpush2.msra.mxu0 0.0
        %1511 = vmatprep.subr.mxu0 0.0
        %1512 = vmatpush2.msra.mxu0 0.0
        %1513 = vmatprep.subr.mxu0 0.0
        %1514 = vmatpush2.msra.mxu0 0.0
        %1515 = vmatprep.subr.mxu0 0.0
        %1516 = vmatpush2.msra.mxu0 0.0
        %1517 = vmatprep.mubr.f32.mxu0 0.0
        %1518 = vmatmul.mubr.f32.gmra.mxu0 %v1414
        %v1519 = vpop.f32.mrf.mxu0
        %v1520 = vadd.f32 %v1451, %v1519
        %v1521 = vpop.f32.mrf.mxu0
        %1522 = vmatprep.mubr.f32.mxu0 0.0
        %1523 = vmatmul.mubr.f32.gmra.mxu0 %v1415
        %v1524 = vpop.f32.mrf.mxu0
        %v1525 = vadd.f32 %v1451, %v1524
        %v1526 = vpop.f32.mrf.mxu0
        %1527 = vmatprep.mubr.f32.mxu0 0.0
        %1528 = vmatmul.mubr.f32.gmra.mxu0 %v1416
        %v1529 = vpop.f32.mrf.mxu0
        %v1530 = vadd.f32 %v1451, %v1529
        %v1531 = vpop.f32.mrf.mxu0
        %1532 = vmatprep.mubr.f32.mxu0 0.0
        %1533 = vmatmul.mubr.f32.gmra.mxu0 %v1417
        %v1534 = vpop.f32.mrf.mxu0
        %v1535 = vadd.f32 %v1451, %v1534
        %v1536 = vpop.f32.mrf.mxu0
        %1537 = vmatprep.mubr.f32.mxu0 0.0
        %1538 = vmatmul.mubr.f32.gmra.mxu0 %v1418
        %v1539 = vpop.f32.mrf.mxu0
        %v1540 = vadd.f32 %v1451, %v1539
        %v1541 = vpop.f32.mrf.mxu0
        %1542 = vmatprep.mubr.f32.mxu0 0.0
        %1543 = vmatmul.mubr.f32.gmra.mxu0 %v1419
        %v1544 = vpop.f32.mrf.mxu0
        %v1545 = vadd.f32 %v1451, %v1544
        %v1546 = vpop.f32.mrf.mxu0
        %1547 = vmatprep.mubr.f32.mxu0 0.0
        %1548 = vmatmul.mubr.f32.gmra.mxu0 %v1420
        %v1549 = vpop.f32.mrf.mxu0
        %v1550 = vadd.f32 %v1451, %v1549
        %v1551 = vpop.f32.mrf.mxu0
        %1552 = vmatprep.mubr.f32.mxu0 0.0
        %1553 = vmatmul.mubr.f32.gmra.mxu0 %v1421
        %v1554 = vpop.f32.mrf.mxu0
        %v1555 = vadd.f32 %v1451, %v1554
        %v1556 = vpop.f32.mrf.mxu0
        %1557 = vmatprep.mubr.f32.mxu0 0.0
        %1558 = vmatmul.mubr.f32.gmra.mxu0 %v1422
        %v1559 = vpop.f32.mrf.mxu0
        %v1560 = vadd.f32 %v1451, %v1559
        %v1561 = vpop.f32.mrf.mxu0
        %1562 = vmatprep.mubr.f32.mxu0 0.0
        %1563 = vmatmul.mubr.f32.gmra.mxu0 %v1423
        %v1564 = vpop.f32.mrf.mxu0
        %v1565 = vadd.f32 %v1451, %v1564
        %v1566 = vpop.f32.mrf.mxu0
        %1567 = vmatprep.mubr.f32.mxu0 0.0
        %1568 = vmatmul.mubr.f32.gmra.mxu0 %v1424
        %v1569 = vpop.f32.mrf.mxu0
        %v1570 = vadd.f32 %v1451, %v1569
        %v1571 = vpop.f32.mrf.mxu0
        %1572 = vmatprep.mubr.f32.mxu0 0.0
        %1573 = vmatmul.mubr.f32.gmra.mxu0 %v1425
        %v1574 = vpop.f32.mrf.mxu0
        %v1575 = vadd.f32 %v1451, %v1574
        %v1576 = vpop.f32.mrf.mxu0
        %1577 = vmatprep.mubr.f32.mxu0 0.0
        %1578 = vmatmul.mubr.f32.gmra.mxu0 %v1426
        %v1579 = vpop.f32.mrf.mxu0
        %v1580 = vadd.f32 %v1451, %v1579
        %v1581 = vpop.f32.mrf.mxu0
        %1582 = vmatprep.mubr.f32.mxu0 0.0
        %1583 = vmatmul.mubr.f32.gmra.mxu0 %v1427
        %v1584 = vpop.f32.mrf.mxu0
        %v1585 = vadd.f32 %v1451, %v1584
        %v1586 = vpop.f32.mrf.mxu0
        %1587 = vmatprep.mubr.f32.mxu0 0.0
        %1588 = vmatmul.mubr.f32.gmra.mxu0 %v1428
        %v1589 = vpop.f32.mrf.mxu0
        %v1590 = vadd.f32 %v1451, %v1589
        %v1591 = vpop.f32.mrf.mxu0
        %1592 = vmatprep.mubr.f32.mxu0 0.0
        %1593 = vmatmul.mubr.f32.gmra.mxu0 %v1429
        %v1594 = vpop.f32.mrf.mxu0
        %v1595 = vadd.f32 %v1451, %v1594
        %v1596 = vpop.f32.mrf.mxu0
        %1597 = vdwg.mxu0
        %v1598 = vmax.f32 %v1520, 0.0
        %v1599 = vmax.f32 %v1525, 0.0
        %v1600 = vmax.f32 %v1530, 0.0
        %v1601 = vmax.f32 %v1535, 0.0
        %v1602 = vmax.f32 %v1540, 0.0
        %v1603 = vmax.f32 %v1545, 0.0
        %v1604 = vmax.f32 %v1550, 0.0
        %v1605 = vmax.f32 %v1555, 0.0
        %v1606 = vmax.f32 %v1560, 0.0
        %v1607 = vmax.f32 %v1565, 0.0
        %v1608 = vmax.f32 %v1570, 0.0
        %v1609 = vmax.f32 %v1575, 0.0
        %v1610 = vmax.f32 %v1580, 0.0
        %v1611 = vmax.f32 %v1585, 0.0
        %v1612 = vmax.f32 %v1590, 0.0
        %v1613 = vmax.f32 %v1595, 0.0
        %v1614 = vld [vmem:[#allocation2] sm:$0xff]
        %v1615 = vld [vmem:[#allocation2 + $0x8] sm:$0xff]
        %v1616 = vld [vmem:[#allocation2 + $0x10] sm:$0xff]
        %v1617 = vld [vmem:[#allocation2 + $0x18] sm:$0xff]
        %v1618 = vld [vmem:[#allocation2 + $0x20] sm:$0xff]
        %v1619 = vld [vmem:[#allocation2 + $0x28] sm:$0xff]
        %v1620 = vld [vmem:[#allocation2 + $0x30] sm:$0xff]
        %v1621 = vld [vmem:[#allocation2 + $0x38] sm:$0xff]
        %v1622 = vld [vmem:[#allocation2 + $0x40] sm:$0xff]
        %v1623 = vld [vmem:[#allocation2 + $0x48] sm:$0xff]
        %v1624 = vld [vmem:[#allocation2 + $0x50] sm:$0xff]
        %v1625 = vld [vmem:[#allocation2 + $0x58] sm:$0xff]
        %v1626 = vld [vmem:[#allocation2 + $0x60] sm:$0xff]
        %v1627 = vld [vmem:[#allocation2 + $0x68] sm:$0xff]
        %v1628 = vld [vmem:[#allocation2 + $0x70] sm:$0xff]
        %v1629 = vld [vmem:[#allocation2 + $0x78] sm:$0xff]
        %v1630 = vld [vmem:[%s7] sm:$0x1]
        %v1632 = vlaneseq
        %v1633 = vshrl.u32 %v1632, 7
        %v1634 = vsub.s32 0, %v1633
        %v1635 = vrot.slane %v1630, %v1634
        %1637 = vmatprep.subr.mxu0 0.0
        %1638 = vmatpush1.msra.mxu0 %v1629
        %1639 = vmatprep.subr.mxu0 0.0
        %1640 = vmatpush1.msra.mxu0 %v1628
        %1641 = vmatprep.subr.mxu0 0.0
        %1642 = vmatpush1.msra.mxu0 %v1627
        %1643 = vmatprep.subr.mxu0 0.0
        %1644 = vmatpush1.msra.mxu0 %v1626
        %1645 = vmatprep.subr.mxu0 0.0
        %1646 = vmatpush1.msra.mxu0 %v1625
        %1647 = vmatprep.subr.mxu0 0.0
        %1648 = vmatpush1.msra.mxu0 %v1624
        %1649 = vmatprep.subr.mxu0 0.0
        %1650 = vmatpush1.msra.mxu0 %v1623
        %1651 = vmatprep.subr.mxu0 0.0
        %1652 = vmatpush1.msra.mxu0 %v1622
        %1653 = vmatprep.subr.mxu0 0.0
        %1654 = vmatpush1.msra.mxu0 %v1621
        %1655 = vmatprep.subr.mxu0 0.0
        %1656 = vmatpush1.msra.mxu0 %v1620
        %1657 = vmatprep.subr.mxu0 0.0
        %1658 = vmatpush1.msra.mxu0 %v1619
        %1659 = vmatprep.subr.mxu0 0.0
        %1660 = vmatpush1.msra.mxu0 %v1618
        %1661 = vmatprep.subr.mxu0 0.0
        %1662 = vmatpush1.msra.mxu0 %v1617
        %1663 = vmatprep.subr.mxu0 0.0
        %1664 = vmatpush1.msra.mxu0 %v1616
        %1665 = vmatprep.subr.mxu0 0.0
        %1666 = vmatpush1.msra.mxu0 %v1615
        %1667 = vmatprep.subr.mxu0 0.0
        %1668 = vmatpush1.msra.mxu0 %v1614
        %1669 = vmatprep.subr.mxu0 0.0
        %1670 = vmatpush2.msra.mxu0 0.0
        %1671 = vmatprep.subr.mxu0 0.0
        %1672 = vmatpush2.msra.mxu0 0.0
        %1673 = vmatprep.subr.mxu0 0.0
        %1674 = vmatpush2.msra.mxu0 0.0
        %1675 = vmatprep.subr.mxu0 0.0
        %1676 = vmatpush2.msra.mxu0 0.0
        %1677 = vmatprep.subr.mxu0 0.0
        %1678 = vmatpush2.msra.mxu0 0.0
        %1679 = vmatprep.subr.mxu0 0.0
        %1680 = vmatpush2.msra.mxu0 0.0
        %1681 = vmatprep.subr.mxu0 0.0
        %1682 = vmatpush2.msra.mxu0 0.0
        %1683 = vmatprep.subr.mxu0 0.0
        %1684 = vmatpush2.msra.mxu0 0.0
        %1685 = vmatprep.subr.mxu0 0.0
        %1686 = vmatpush2.msra.mxu0 0.0
        %1687 = vmatprep.subr.mxu0 0.0
        %1688 = vmatpush2.msra.mxu0 0.0
        %1689 = vmatprep.subr.mxu0 0.0
        %1690 = vmatpush2.msra.mxu0 0.0
        %1691 = vmatprep.subr.mxu0 0.0
        %1692 = vmatpush2.msra.mxu0 0.0
        %1693 = vmatprep.subr.mxu0 0.0
        %1694 = vmatpush2.msra.mxu0 0.0
        %1695 = vmatprep.subr.mxu0 0.0
        %1696 = vmatpush2.msra.mxu0 0.0
        %1697 = vmatprep.subr.mxu0 0.0
        %1698 = vmatpush2.msra.mxu0 0.0
        %1699 = vmatprep.subr.mxu0 0.0
        %1700 = vmatpush2.msra.mxu0 0.0
        %1701 = vmatprep.mubr.f32.mxu0 0.0
        %1702 = vmatmul.mubr.f32.gmra.mxu0 %v1598
        %v1703 = vpop.f32.mrf.mxu0
        %v1704 = vadd.f32 %v1635, %v1703
        %v1705 = vpop.f32.mrf.mxu0
        %1706 = vmatprep.mubr.f32.mxu0 0.0
        %1707 = vmatmul.mubr.f32.gmra.mxu0 %v1599
        %v1708 = vpop.f32.mrf.mxu0
        %v1709 = vadd.f32 %v1635, %v1708
        %v1710 = vpop.f32.mrf.mxu0
        %1711 = vmatprep.mubr.f32.mxu0 0.0
        %1712 = vmatmul.mubr.f32.gmra.mxu0 %v1600
        %v1713 = vpop.f32.mrf.mxu0
        %v1714 = vadd.f32 %v1635, %v1713
        %v1715 = vpop.f32.mrf.mxu0
        %1716 = vmatprep.mubr.f32.mxu0 0.0
        %1717 = vmatmul.mubr.f32.gmra.mxu0 %v1601
        %v1718 = vpop.f32.mrf.mxu0
        %v1719 = vadd.f32 %v1635, %v1718
        %v1720 = vpop.f32.mrf.mxu0
        %1721 = vmatprep.mubr.f32.mxu0 0.0
        %1722 = vmatmul.mubr.f32.gmra.mxu0 %v1602
        %v1723 = vpop.f32.mrf.mxu0
        %v1724 = vadd.f32 %v1635, %v1723
        %v1725 = vpop.f32.mrf.mxu0
        %1726 = vmatprep.mubr.f32.mxu0 0.0
        %1727 = vmatmul.mubr.f32.gmra.mxu0 %v1603
        %v1728 = vpop.f32.mrf.mxu0
        %v1729 = vadd.f32 %v1635, %v1728
        %v1730 = vpop.f32.mrf.mxu0
        %1731 = vmatprep.mubr.f32.mxu0 0.0
        %1732 = vmatmul.mubr.f32.gmra.mxu0 %v1604
        %v1733 = vpop.f32.mrf.mxu0
        %v1734 = vadd.f32 %v1635, %v1733
        %v1735 = vpop.f32.mrf.mxu0
        %1736 = vmatprep.mubr.f32.mxu0 0.0
        %1737 = vmatmul.mubr.f32.gmra.mxu0 %v1605
        %v1738 = vpop.f32.mrf.mxu0
        %v1739 = vadd.f32 %v1635, %v1738
        %v1740 = vpop.f32.mrf.mxu0
        %1741 = vmatprep.mubr.f32.mxu0 0.0
        %1742 = vmatmul.mubr.f32.gmra.mxu0 %v1606
        %v1743 = vpop.f32.mrf.mxu0
        %v1744 = vadd.f32 %v1635, %v1743
        %v1745 = vpop.f32.mrf.mxu0
        %1746 = vmatprep.mubr.f32.mxu0 0.0
        %1747 = vmatmul.mubr.f32.gmra.mxu0 %v1607
        %v1748 = vpop.f32.mrf.mxu0
        %v1749 = vadd.f32 %v1635, %v1748
        %v1750 = vpop.f32.mrf.mxu0
        %1751 = vmatprep.mubr.f32.mxu0 0.0
        %1752 = vmatmul.mubr.f32.gmra.mxu0 %v1608
        %v1753 = vpop.f32.mrf.mxu0
        %v1754 = vadd.f32 %v1635, %v1753
        %v1755 = vpop.f32.mrf.mxu0
        %1756 = vmatprep.mubr.f32.mxu0 0.0
        %1757 = vmatmul.mubr.f32.gmra.mxu0 %v1609
        %v1758 = vpop.f32.mrf.mxu0
        %v1759 = vadd.f32 %v1635, %v1758
        %v1760 = vpop.f32.mrf.mxu0
        %1761 = vmatprep.mubr.f32.mxu0 0.0
        %1762 = vmatmul.mubr.f32.gmra.mxu0 %v1610
        %v1763 = vpop.f32.mrf.mxu0
        %v1764 = vadd.f32 %v1635, %v1763
        %v1765 = vpop.f32.mrf.mxu0
        %1766 = vmatprep.mubr.f32.mxu0 0.0
        %1767 = vmatmul.mubr.f32.gmra.mxu0 %v1611
        %v1768 = vpop.f32.mrf.mxu0
        %v1769 = vadd.f32 %v1635, %v1768
        %v1770 = vpop.f32.mrf.mxu0
        %1771 = vmatprep.mubr.f32.mxu0 0.0
        %1772 = vmatmul.mubr.f32.gmra.mxu0 %v1612
        %v1773 = vpop.f32.mrf.mxu0
        %v1774 = vadd.f32 %v1635, %v1773
        %v1775 = vpop.f32.mrf.mxu0
        %1776 = vmatprep.mubr.f32.mxu0 0.0
        %1777 = vmatmul.mubr.f32.gmra.mxu0 %v1613
        %v1778 = vpop.f32.mrf.mxu0
        %v1779 = vadd.f32 %v1635, %v1778
        %v1780 = vpop.f32.mrf.mxu0
        %1781 = vdwg.mxu0
        %v1782 = vmax.f32 %v1704, 0.0
        %v1783 = vmax.f32 %v1709, 0.0
        %v1784 = vmax.f32 %v1714, 0.0
        %v1785 = vmax.f32 %v1719, 0.0
        %v1786 = vmax.f32 %v1724, 0.0
        %v1787 = vmax.f32 %v1729, 0.0
        %v1788 = vmax.f32 %v1734, 0.0
        %v1789 = vmax.f32 %v1739, 0.0
        %v1790 = vmax.f32 %v1744, 0.0
        %v1791 = vmax.f32 %v1749, 0.0
        %v1792 = vmax.f32 %v1754, 0.0
        %v1793 = vmax.f32 %v1759, 0.0
        %v1794 = vmax.f32 %v1764, 0.0
        %v1795 = vmax.f32 %v1769, 0.0
        %v1796 = vmax.f32 %v1774, 0.0
        %v1797 = vmax.f32 %v1779, 0.0
        %v1798 = vld [vmem:[#allocation4] sm:$0xff]
        %v1799 = vld [vmem:[#allocation4 + $0x8] sm:$0xff]
        %v1800 = vld [vmem:[#allocation4 + $0x10] sm:$0xff]
        %v1801 = vld [vmem:[#allocation4 + $0x18] sm:$0xff]
        %v1802 = vld [vmem:[#allocation4 + $0x20] sm:$0xff]
        %v1803 = vld [vmem:[#allocation4 + $0x28] sm:$0xff]
        %v1804 = vld [vmem:[#allocation4 + $0x30] sm:$0xff]
        %v1805 = vld [vmem:[#allocation4 + $0x38] sm:$0xff]
        %v1806 = vld [vmem:[#allocation4 + $0x40] sm:$0xff]
        %v1807 = vld [vmem:[#allocation4 + $0x48] sm:$0xff]
        %v1808 = vld [vmem:[#allocation4 + $0x50] sm:$0xff]
        %v1809 = vld [vmem:[#allocation4 + $0x58] sm:$0xff]
        %v1810 = vld [vmem:[#allocation4 + $0x60] sm:$0xff]
        %v1811 = vld [vmem:[#allocation4 + $0x68] sm:$0xff]
        %v1812 = vld [vmem:[#allocation4 + $0x70] sm:$0xff]
        %v1813 = vld [vmem:[#allocation4 + $0x78] sm:$0xff]
        %v1814 = vld [vmem:[%s9] sm:$0x1]
        %v1816 = vlaneseq
        %v1817 = vshrl.u32 %v1816, 7
        %v1818 = vsub.s32 0, %v1817
        %v1819 = vrot.slane %v1814, %v1818
        %1821 = vmatprep.subr.mxu0 0.0
        %1822 = vmatpush1.msra.mxu0 %v1813
        %1823 = vmatprep.subr.mxu0 0.0
        %1824 = vmatpush1.msra.mxu0 %v1812
        %1825 = vmatprep.subr.mxu0 0.0
        %1826 = vmatpush1.msra.mxu0 %v1811
        %1827 = vmatprep.subr.mxu0 0.0
        %1828 = vmatpush1.msra.mxu0 %v1810
        %1829 = vmatprep.subr.mxu0 0.0
        %1830 = vmatpush1.msra.mxu0 %v1809
        %1831 = vmatprep.subr.mxu0 0.0
        %1832 = vmatpush1.msra.mxu0 %v1808
        %1833 = vmatprep.subr.mxu0 0.0
        %1834 = vmatpush1.msra.mxu0 %v1807
        %1835 = vmatprep.subr.mxu0 0.0
        %1836 = vmatpush1.msra.mxu0 %v1806
        %1837 = vmatprep.subr.mxu0 0.0
        %1838 = vmatpush1.msra.mxu0 %v1805
        %1839 = vmatprep.subr.mxu0 0.0
        %1840 = vmatpush1.msra.mxu0 %v1804
        %1841 = vmatprep.subr.mxu0 0.0
        %1842 = vmatpush1.msra.mxu0 %v1803
        %1843 = vmatprep.subr.mxu0 0.0
        %1844 = vmatpush1.msra.mxu0 %v1802
        %1845 = vmatprep.subr.mxu0 0.0
        %1846 = vmatpush1.msra.mxu0 %v1801
        %1847 = vmatprep.subr.mxu0 0.0
        %1848 = vmatpush1.msra.mxu0 %v1800
        %1849 = vmatprep.subr.mxu0 0.0
        %1850 = vmatpush1.msra.mxu0 %v1799
        %1851 = vmatprep.subr.mxu0 0.0
        %1852 = vmatpush1.msra.mxu0 %v1798
        %1853 = vmatprep.subr.mxu0 0.0
        %1854 = vmatpush2.msra.mxu0 0.0
        %1855 = vmatprep.subr.mxu0 0.0
        %1856 = vmatpush2.msra.mxu0 0.0
        %1857 = vmatprep.subr.mxu0 0.0
        %1858 = vmatpush2.msra.mxu0 0.0
        %1859 = vmatprep.subr.mxu0 0.0
        %1860 = vmatpush2.msra.mxu0 0.0
        %1861 = vmatprep.subr.mxu0 0.0
        %1862 = vmatpush2.msra.mxu0 0.0
        %1863 = vmatprep.subr.mxu0 0.0
        %1864 = vmatpush2.msra.mxu0 0.0
        %1865 = vmatprep.subr.mxu0 0.0
        %1866 = vmatpush2.msra.mxu0 0.0
        %1867 = vmatprep.subr.mxu0 0.0
        %1868 = vmatpush2.msra.mxu0 0.0
        %1869 = vmatprep.subr.mxu0 0.0
        %1870 = vmatpush2.msra.mxu0 0.0
        %1871 = vmatprep.subr.mxu0 0.0
        %1872 = vmatpush2.msra.mxu0 0.0
        %1873 = vmatprep.subr.mxu0 0.0
        %1874 = vmatpush2.msra.mxu0 0.0
        %1875 = vmatprep.subr.mxu0 0.0
        %1876 = vmatpush2.msra.mxu0 0.0
        %1877 = vmatprep.subr.mxu0 0.0
        %1878 = vmatpush2.msra.mxu0 0.0
        %1879 = vmatprep.subr.mxu0 0.0
        %1880 = vmatpush2.msra.mxu0 0.0
        %1881 = vmatprep.subr.mxu0 0.0
        %1882 = vmatpush2.msra.mxu0 0.0
        %1883 = vmatprep.subr.mxu0 0.0
        %1884 = vmatpush2.msra.mxu0 0.0
        %1885 = vmatprep.mubr.f32.mxu0 0.0
        %1886 = vmatmul.mubr.f32.gmra.mxu0 %v1782
        %v1887 = vpop.f32.mrf.mxu0
        %v1888 = vadd.f32 %v1819, %v1887
        %v1889 = vpop.f32.mrf.mxu0
        %1890 = vmatprep.mubr.f32.mxu0 0.0
        %1891 = vmatmul.mubr.f32.gmra.mxu0 %v1783
        %v1892 = vpop.f32.mrf.mxu0
        %v1893 = vadd.f32 %v1819, %v1892
        %v1894 = vpop.f32.mrf.mxu0
        %1895 = vmatprep.mubr.f32.mxu0 0.0
        %1896 = vmatmul.mubr.f32.gmra.mxu0 %v1784
        %v1897 = vpop.f32.mrf.mxu0
        %v1898 = vadd.f32 %v1819, %v1897
        %v1899 = vpop.f32.mrf.mxu0
        %1900 = vmatprep.mubr.f32.mxu0 0.0
        %1901 = vmatmul.mubr.f32.gmra.mxu0 %v1785
        %v1902 = vpop.f32.mrf.mxu0
        %v1903 = vadd.f32 %v1819, %v1902
        %v1904 = vpop.f32.mrf.mxu0
        %1905 = vmatprep.mubr.f32.mxu0 0.0
        %1906 = vmatmul.mubr.f32.gmra.mxu0 %v1786
        %v1907 = vpop.f32.mrf.mxu0
        %v1908 = vadd.f32 %v1819, %v1907
        %v1909 = vpop.f32.mrf.mxu0
        %1910 = vmatprep.mubr.f32.mxu0 0.0
        %1911 = vmatmul.mubr.f32.gmra.mxu0 %v1787
        %v1912 = vpop.f32.mrf.mxu0
        %v1913 = vadd.f32 %v1819, %v1912
        %v1914 = vpop.f32.mrf.mxu0
        %1915 = vmatprep.mubr.f32.mxu0 0.0
        %1916 = vmatmul.mubr.f32.gmra.mxu0 %v1788
        %v1917 = vpop.f32.mrf.mxu0
        %v1918 = vadd.f32 %v1819, %v1917
        %v1919 = vpop.f32.mrf.mxu0
        %1920 = vmatprep.mubr.f32.mxu0 0.0
        %1921 = vmatmul.mubr.f32.gmra.mxu0 %v1789
        %v1922 = vpop.f32.mrf.mxu0
        %v1923 = vadd.f32 %v1819, %v1922
        %v1924 = vpop.f32.mrf.mxu0
        %1925 = vmatprep.mubr.f32.mxu0 0.0
        %1926 = vmatmul.mubr.f32.gmra.mxu0 %v1790
        %v1927 = vpop.f32.mrf.mxu0
        %v1928 = vadd.f32 %v1819, %v1927
        %v1929 = vpop.f32.mrf.mxu0
        %1930 = vmatprep.mubr.f32.mxu0 0.0
        %1931 = vmatmul.mubr.f32.gmra.mxu0 %v1791
        %v1932 = vpop.f32.mrf.mxu0
        %v1933 = vadd.f32 %v1819, %v1932
        %v1934 = vpop.f32.mrf.mxu0
        %1935 = vmatprep.mubr.f32.mxu0 0.0
        %1936 = vmatmul.mubr.f32.gmra.mxu0 %v1792
        %v1937 = vpop.f32.mrf.mxu0
        %v1938 = vadd.f32 %v1819, %v1937
        %v1939 = vpop.f32.mrf.mxu0
        %1940 = vmatprep.mubr.f32.mxu0 0.0
        %1941 = vmatmul.mubr.f32.gmra.mxu0 %v1793
        %v1942 = vpop.f32.mrf.mxu0
        %v1943 = vadd.f32 %v1819, %v1942
        %v1944 = vpop.f32.mrf.mxu0
        %1945 = vmatprep.mubr.f32.mxu0 0.0
        %1946 = vmatmul.mubr.f32.gmra.mxu0 %v1794
        %v1947 = vpop.f32.mrf.mxu0
        %v1948 = vadd.f32 %v1819, %v1947
        %v1949 = vpop.f32.mrf.mxu0
        %1950 = vmatprep.mubr.f32.mxu0 0.0
        %1951 = vmatmul.mubr.f32.gmra.mxu0 %v1795
        %v1952 = vpop.f32.mrf.mxu0
        %v1953 = vadd.f32 %v1819, %v1952
        %v1954 = vpop.f32.mrf.mxu0
        %1955 = vmatprep.mubr.f32.mxu0 0.0
        %1956 = vmatmul.mubr.f32.gmra.mxu0 %v1796
        %v1957 = vpop.f32.mrf.mxu0
        %v1958 = vadd.f32 %v1819, %v1957
        %v1959 = vpop.f32.mrf.mxu0
        %1960 = vmatprep.mubr.f32.mxu0 0.0
        %1961 = vmatmul.mubr.f32.gmra.mxu0 %v1797
        %v1962 = vpop.f32.mrf.mxu0
        %v1963 = vadd.f32 %v1819, %v1962
        %v1964 = vpop.f32.mrf.mxu0
        %1965 = vdwg.mxu0
        %v1966 = vmax.f32 %v1888, 0.0
        %v1967 = vmax.f32 %v1893, 0.0
        %v1968 = vmax.f32 %v1898, 0.0
        %v1969 = vmax.f32 %v1903, 0.0
        %v1970 = vmax.f32 %v1908, 0.0
        %v1971 = vmax.f32 %v1913, 0.0
        %v1972 = vmax.f32 %v1918, 0.0
        %v1973 = vmax.f32 %v1923, 0.0
        %v1974 = vmax.f32 %v1928, 0.0
        %v1975 = vmax.f32 %v1933, 0.0
        %v1976 = vmax.f32 %v1938, 0.0
        %v1977 = vmax.f32 %v1943, 0.0
        %v1978 = vmax.f32 %v1948, 0.0
        %v1979 = vmax.f32 %v1953, 0.0
        %v1980 = vmax.f32 %v1958, 0.0
        %v1981 = vmax.f32 %v1963, 0.0
        %v1982 = vld [vmem:[#allocation6] sm:$0xff]
        %v1983 = vld [vmem:[#allocation6 + $0x8] sm:$0xff]
        %v1984 = vld [vmem:[#allocation6 + $0x10] sm:$0xff]
        %v1985 = vld [vmem:[#allocation6 + $0x18] sm:$0xff]
        %v1986 = vld [vmem:[#allocation6 + $0x20] sm:$0xff]
        %v1987 = vld [vmem:[#allocation6 + $0x28] sm:$0xff]
        %v1988 = vld [vmem:[#allocation6 + $0x30] sm:$0xff]
        %v1989 = vld [vmem:[#allocation6 + $0x38] sm:$0xff]
        %v1990 = vld [vmem:[#allocation6 + $0x40] sm:$0xff]
        %v1991 = vld [vmem:[#allocation6 + $0x48] sm:$0xff]
        %v1992 = vld [vmem:[#allocation6 + $0x50] sm:$0xff]
        %v1993 = vld [vmem:[#allocation6 + $0x58] sm:$0xff]
        %v1994 = vld [vmem:[#allocation6 + $0x60] sm:$0xff]
        %v1995 = vld [vmem:[#allocation6 + $0x68] sm:$0xff]
        %v1996 = vld [vmem:[#allocation6 + $0x70] sm:$0xff]
        %v1997 = vld [vmem:[#allocation6 + $0x78] sm:$0xff]
        %v1998 = vld [vmem:[%s11] sm:$0x1]
        %v2000 = vlaneseq
        %v2001 = vshrl.u32 %v2000, 7
        %v2002 = vsub.s32 0, %v2001
        %v2003 = vrot.slane %v1998, %v2002
        %2005 = vmatprep.subr.mxu0 0.0
        %2006 = vmatpush1.msra.mxu0 %v1997
        %2007 = vmatprep.subr.mxu0 0.0
        %2008 = vmatpush1.msra.mxu0 %v1996
        %2009 = vmatprep.subr.mxu0 0.0
        %2010 = vmatpush1.msra.mxu0 %v1995
        %2011 = vmatprep.subr.mxu0 0.0
        %2012 = vmatpush1.msra.mxu0 %v1994
        %2013 = vmatprep.subr.mxu0 0.0
        %2014 = vmatpush1.msra.mxu0 %v1993
        %2015 = vmatprep.subr.mxu0 0.0
        %2016 = vmatpush1.msra.mxu0 %v1992
        %2017 = vmatprep.subr.mxu0 0.0
        %2018 = vmatpush1.msra.mxu0 %v1991
        %2019 = vmatprep.subr.mxu0 0.0
        %2020 = vmatpush1.msra.mxu0 %v1990
        %2021 = vmatprep.subr.mxu0 0.0
        %2022 = vmatpush1.msra.mxu0 %v1989
        %2023 = vmatprep.subr.mxu0 0.0
        %2024 = vmatpush1.msra.mxu0 %v1988
        %2025 = vmatprep.subr.mxu0 0.0
        %2026 = vmatpush1.msra.mxu0 %v1987
        %2027 = vmatprep.subr.mxu0 0.0
        %2028 = vmatpush1.msra.mxu0 %v1986
        %2029 = vmatprep.subr.mxu0 0.0
        %2030 = vmatpush1.msra.mxu0 %v1985
        %2031 = vmatprep.subr.mxu0 0.0
        %2032 = vmatpush1.msra.mxu0 %v1984
        %2033 = vmatprep.subr.mxu0 0.0
        %2034 = vmatpush1.msra.mxu0 %v1983
        %2035 = vmatprep.subr.mxu0 0.0
        %2036 = vmatpush1.msra.mxu0 %v1982
        %2037 = vmatprep.subr.mxu0 0.0
        %2038 = vmatpush2.msra.mxu0 0.0
        %2039 = vmatprep.subr.mxu0 0.0
        %2040 = vmatpush2.msra.mxu0 0.0
        %2041 = vmatprep.subr.mxu0 0.0
        %2042 = vmatpush2.msra.mxu0 0.0
        %2043 = vmatprep.subr.mxu0 0.0
        %2044 = vmatpush2.msra.mxu0 0.0
        %2045 = vmatprep.subr.mxu0 0.0
        %2046 = vmatpush2.msra.mxu0 0.0
        %2047 = vmatprep.subr.mxu0 0.0
        %2048 = vmatpush2.msra.mxu0 0.0
        %2049 = vmatprep.subr.mxu0 0.0
        %2050 = vmatpush2.msra.mxu0 0.0
        %2051 = vmatprep.subr.mxu0 0.0
        %2052 = vmatpush2.msra.mxu0 0.0
        %2053 = vmatprep.subr.mxu0 0.0
        %2054 = vmatpush2.msra.mxu0 0.0
        %2055 = vmatprep.subr.mxu0 0.0
        %2056 = vmatpush2.msra.mxu0 0.0
        %2057 = vmatprep.subr.mxu0 0.0
        %2058 = vmatpush2.msra.mxu0 0.0
        %2059 = vmatprep.subr.mxu0 0.0
        %2060 = vmatpush2.msra.mxu0 0.0
        %2061 = vmatprep.subr.mxu0 0.0
        %2062 = vmatpush2.msra.mxu0 0.0
        %2063 = vmatprep.subr.mxu0 0.0
        %2064 = vmatpush2.msra.mxu0 0.0
        %2065 = vmatprep.subr.mxu0 0.0
        %2066 = vmatpush2.msra.mxu0 0.0
        %2067 = vmatprep.subr.mxu0 0.0
        %2068 = vmatpush2.msra.mxu0 0.0
        %2069 = vmatprep.mubr.f32.mxu0 0.0
        %2070 = vmatmul.mubr.f32.gmra.mxu0 %v1966
        %v2071 = vpop.f32.mrf.mxu0
        %v2072 = vadd.f32 %v2003, %v2071
        %v2073 = vpop.f32.mrf.mxu0
        %2074 = vmatprep.mubr.f32.mxu0 0.0
        %2075 = vmatmul.mubr.f32.gmra.mxu0 %v1967
        %v2076 = vpop.f32.mrf.mxu0
        %v2077 = vadd.f32 %v2003, %v2076
        %v2078 = vpop.f32.mrf.mxu0
        %2079 = vmatprep.mubr.f32.mxu0 0.0
        %2080 = vmatmul.mubr.f32.gmra.mxu0 %v1968
        %v2081 = vpop.f32.mrf.mxu0
        %v2082 = vadd.f32 %v2003, %v2081
        %v2083 = vpop.f32.mrf.mxu0
        %2084 = vmatprep.mubr.f32.mxu0 0.0
        %2085 = vmatmul.mubr.f32.gmra.mxu0 %v1969
        %v2086 = vpop.f32.mrf.mxu0
        %v2087 = vadd.f32 %v2003, %v2086
        %v2088 = vpop.f32.mrf.mxu0
        %2089 = vmatprep.mubr.f32.mxu0 0.0
        %2090 = vmatmul.mubr.f32.gmra.mxu0 %v1970
        %v2091 = vpop.f32.mrf.mxu0
        %v2092 = vadd.f32 %v2003, %v2091
        %v2093 = vpop.f32.mrf.mxu0
        %2094 = vmatprep.mubr.f32.mxu0 0.0
        %2095 = vmatmul.mubr.f32.gmra.mxu0 %v1971
        %v2096 = vpop.f32.mrf.mxu0
        %v2097 = vadd.f32 %v2003, %v2096
        %v2098 = vpop.f32.mrf.mxu0
        %2099 = vmatprep.mubr.f32.mxu0 0.0
        %2100 = vmatmul.mubr.f32.gmra.mxu0 %v1972
        %v2101 = vpop.f32.mrf.mxu0
        %v2102 = vadd.f32 %v2003, %v2101
        %v2103 = vpop.f32.mrf.mxu0
        %2104 = vmatprep.mubr.f32.mxu0 0.0
        %2105 = vmatmul.mubr.f32.gmra.mxu0 %v1973
        %v2106 = vpop.f32.mrf.mxu0
        %v2107 = vadd.f32 %v2003, %v2106
        %v2108 = vpop.f32.mrf.mxu0
        %2109 = vmatprep.mubr.f32.mxu0 0.0
        %2110 = vmatmul.mubr.f32.gmra.mxu0 %v1974
        %v2111 = vpop.f32.mrf.mxu0
        %v2112 = vadd.f32 %v2003, %v2111
        %v2113 = vpop.f32.mrf.mxu0
        %2114 = vmatprep.mubr.f32.mxu0 0.0
        %2115 = vmatmul.mubr.f32.gmra.mxu0 %v1975
        %v2116 = vpop.f32.mrf.mxu0
        %v2117 = vadd.f32 %v2003, %v2116
        %v2118 = vpop.f32.mrf.mxu0
        %2119 = vmatprep.mubr.f32.mxu0 0.0
        %2120 = vmatmul.mubr.f32.gmra.mxu0 %v1976
        %v2121 = vpop.f32.mrf.mxu0
        %v2122 = vadd.f32 %v2003, %v2121
        %v2123 = vpop.f32.mrf.mxu0
        %2124 = vmatprep.mubr.f32.mxu0 0.0
        %2125 = vmatmul.mubr.f32.gmra.mxu0 %v1977
        %v2126 = vpop.f32.mrf.mxu0
        %v2127 = vadd.f32 %v2003, %v2126
        %v2128 = vpop.f32.mrf.mxu0
        %2129 = vmatprep.mubr.f32.mxu0 0.0
        %2130 = vmatmul.mubr.f32.gmra.mxu0 %v1978
        %v2131 = vpop.f32.mrf.mxu0
        %v2132 = vadd.f32 %v2003, %v2131
        %v2133 = vpop.f32.mrf.mxu0
        %2134 = vmatprep.mubr.f32.mxu0 0.0
        %2135 = vmatmul.mubr.f32.gmra.mxu0 %v1979
        %v2136 = vpop.f32.mrf.mxu0
        %v2137 = vadd.f32 %v2003, %v2136
        %v2138 = vpop.f32.mrf.mxu0
        %2139 = vmatprep.mubr.f32.mxu0 0.0
        %2140 = vmatmul.mubr.f32.gmra.mxu0 %v1980
        %v2141 = vpop.f32.mrf.mxu0
        %v2142 = vadd.f32 %v2003, %v2141
        %v2143 = vpop.f32.mrf.mxu0
        %2144 = vmatprep.mubr.f32.mxu0 0.0
        %2145 = vmatmul.mubr.f32.gmra.mxu0 %v1981
        %v2146 = vpop.f32.mrf.mxu0
        %v2147 = vadd.f32 %v2003, %v2146
        %v2148 = vpop.f32.mrf.mxu0
        %2149 = vdwg.mxu0
        %2150 = vst [vmem:[%s459] sm:$0xff] %v2072
        %2151 = vst [vmem:[%s459 + $0x8] sm:$0xff] %v2077
        %2152 = vst [vmem:[%s459 + $0x10] sm:$0xff] %v2082
        %2153 = vst [vmem:[%s459 + $0x18] sm:$0xff] %v2087
        %2154 = vst [vmem:[%s459 + $0x20] sm:$0xff] %v2092
        %2155 = vst [vmem:[%s459 + $0x28] sm:$0xff] %v2097
        %2156 = vst [vmem:[%s459 + $0x30] sm:$0xff] %v2102
        %2157 = vst [vmem:[%s459 + $0x38] sm:$0xff] %v2107
        %2158 = vst [vmem:[%s459 + $0x40] sm:$0xff] %v2112
        %2159 = vst [vmem:[%s459 + $0x48] sm:$0xff] %v2117
        %2160 = vst [vmem:[%s459 + $0x50] sm:$0xff] %v2122
        %2161 = vst [vmem:[%s459 + $0x58] sm:$0xff] %v2127
        %2162 = vst [vmem:[%s459 + $0x60] sm:$0xff] %v2132
        %2163 = vst [vmem:[%s459 + $0x68] sm:$0xff] %v2137
        %2164 = vst [vmem:[%s459 + $0x70] sm:$0xff] %v2142
        %2165 = vst [vmem:[%s459 + $0x78] sm:$0xff] %v2147
        %s2166 = smul.u32 16, %s25
        %p2167 = scmp.lt.s32.totalorder %s2166, 31
        %s2168 = scalar_select %p2167, %s2166, 31
        %s2169 = smul.addr %s2168, 8
        %s2170 = scalar_lea.vmem %s12, %s2169
        // Predicated region
        $region81: #{next_word_forward.1} parent=67 // pred_check
          %p2171 = pneg %p300
        $region82: #{next_word_forward.1} parent=67 // pred_check_branch
          %2173 = sbr.rel (%p2171) target = $region84
        $region83: #{next_word_forward.1} parent=67 // pred_region
          %s2174 = smul.u32 16, %s25
        $region84: #{next_word_forward.1} parent=67 // pred_fallthru
          _
      $region68: #{next_word_forward.1} parent=5 // pred_fallthru
        _
      %p2175 = scmp.le.s32.totalorder 2, %s20
      // Predicated region
      $region85: #{next_word_forward.1} parent=5 // pred_check
        %p2176 = pneg %p2175
      $region86: #{next_word_forward.1} parent=5 // pred_check_branch
        %2178 = sbr.rel (%p2176) target = $region88
      $region87: #{next_word_forward.1} parent=5 // pred_region
        %s2179 = ssub.s32 %s20, 2
        // Predicated region
        $region89: #{next_word_forward.1} parent=87 // pred_check
          %p2180 = pneg %p306
        $region90: #{next_word_forward.1} parent=87 // pred_check_branch
          %2182 = sbr.rel (%p2180) target = $region92
        $region91: #{next_word_forward.1} parent=87 // pred_region
          %s2183 = smul.u32 16, %s26
          %p2184 = scmp.lt.s32.totalorder %s2183, 31
          %s2185 = scalar_select %p2184, %s2183, 31
          %s2186 = smul.addr %s2185, 8
          %s2187 = scalar_lea.vmem %s12, %s2186
        $region92: #{next_word_forward.1} parent=87 // pred_fallthru
          _
      $region88: #{next_word_forward.1} parent=5 // pred_fallthru
        _
    $region6: #{next_word_forward.1} parent=1 // loop_footer
      %s24 = sadd.s32 1, %s20
    $region7: #{next_word_forward.1} parent=1 // loop_footer_branch
      %19 = sbr.rel target = $region3
    $region8: #{next_word_forward.1} parent=1 // loop_exit
      _
    %2188 = vsyncpa [#allocation3], 1
    %s2189 = scalar_lea.sflag [#allocation3], 1
    %2190 = vsyncpa %s2189, 1
    %2191 = vsyncpa [#allocation5], 1

</llo_original>
